<compile_context>
chip_gen: v6e
topology: v6e:2x2x1
jax: 0.10.0
libtpu: 0.0.40
codegen_flags: <defaults>
</compile_context>

<pallas_src>
import math

import jax
import jax.numpy as jnp
from jax.experimental import pallas as pl
from jax.experimental.pallas import tpu as pltpu


def _vmem_limit_bytes():
    """Generation-aware scoped-VMEM request (v5e/v6e: 128 MiB, v7x: 64 MiB)."""
    try:
        cap = pltpu.get_tpu_info().vmem_capacity_bytes
    except Exception:
        cap = 64 * 1024 * 1024          # conservative (v7x-sized) fallback
    return int(min(cap * 5 // 8, 96 * 1024 * 1024))


def _make_mha_kernel(n_heads, head_dim, seq_len, tq, hid_dim, with_att):
    NH, hd, S, H = n_heads, head_dim, seq_len, hid_dim

    def _heads_front(x):   # [T, NH, hd] -> [NH, T, hd]
        if hasattr(pltpu, "einshape"):
            return pltpu.einshape("tnd->ntd", x)
        return jnp.swapaxes(x, 0, 1)

    def _heads_back(x):    # [NH, T, hd] -> [T, NH, hd]
        if hasattr(pltpu, "einshape"):
            return pltpu.einshape("ntd->tnd", x)
        return jnp.swapaxes(x, 0, 1)

    def body(q_ref, k_ref, v_ref, wq_ref, bq_ref, wk_ref, bk_ref,
             wv_ref, bv_ref, wo_ref, bo_ref, ctx_ref, att_ref, kv_scr):
        cd = wq_ref.dtype            # MXU operand dtype (bf16 by default)

        # --- K/V projection: only on the first query tile of each batch row ---
        # (the projected, head-major K/V persist in VMEM scratch and are reused
        # by every subsequent query tile of the same b -> no redundant MXU work)
        @pl.when(pl.program_id(1) == 0)
        def _project_kv():
            k = k_ref[0].astype(cd)                                      # [S, H]
            v = v_ref[0].astype(cd)
            K = jnp.dot(k, wk_ref[...], preferred_element_type=jnp.float32) + bk_ref[...]
            V = jnp.dot(v, wv_ref[...], preferred_element_type=jnp.float32) + bv_ref[...]
            kv_scr[0] = _heads_front(K.reshape(S, NH, hd)).astype(cd)    # [NH,S,hd]
            kv_scr[1] = _heads_front(V.reshape(S, NH, hd)).astype(cd)

        # --- Q projection for this query tile (1/sqrt(hd) folded into wq/bq) --
        q = q_ref[0].astype(cd)                                          # [TQ, H]
        Q = jnp.dot(q, wq_ref[...], preferred_element_type=jnp.float32) + bq_ref[...]
        Qh = _heads_front(Q.reshape(tq, NH, hd)).astype(cd)              # [NH,TQ,hd]

        Kh = kv_scr[0]                                                   # [NH,S,hd]
        Vh = kv_scr[1]

        # --- scaled dot-product attention, all heads batched ------------------
        energy = jnp.einsum('nqd,nkd->nqk', Qh, Kh,
                            preferred_element_type=jnp.float32)          # [NH,TQ,S]
        m = jnp.max(energy, axis=-1, keepdims=True)
        e = jnp.exp(energy - m)
        # exact reciprocal of the tiny [NH,TQ,1] denominator -> tight parity
        att = e * (1.0 / jnp.sum(e, axis=-1, keepdims=True))

        if with_att:
            att_ref[0] = att.astype(att_ref.dtype)      # single coalesced store

        # dropout(p) in eval mode == identity
        ctx_h = jnp.einsum('nqk,nkd->nqd', att.astype(cd), Vh,
                           preferred_element_type=jnp.float32)           # [NH,TQ,hd]

        # --- output projection + cross-head sum fused into one MXU contraction
        ctx2 = _heads_back(ctx_h).reshape(tq, H).astype(cd)              # [TQ, H]
        out = jnp.dot(ctx2, wo_ref[...], preferred_element_type=jnp.float32) + bo_ref[...]
        ctx_ref[0] = out.astype(ctx_ref.dtype)

    if with_att:
        def kernel(q_ref, k_ref, v_ref, wq_ref, bq_ref, wk_ref, bk_ref,
                   wv_ref, bv_ref, wo_ref, bo_ref, ctx_ref, att_ref, kv_scr):
            body(q_ref, k_ref, v_ref, wq_ref, bq_ref, wk_ref, bk_ref,
                 wv_ref, bv_ref, wo_ref, bo_ref, ctx_ref, att_ref, kv_scr)
    else:
        def kernel(q_ref, k_ref, v_ref, wq_ref, bq_ref, wk_ref, bk_ref,
                   wv_ref, bv_ref, wo_ref, bo_ref, ctx_ref, kv_scr):
            body(q_ref, k_ref, v_ref, wq_ref, bq_ref, wk_ref, bk_ref,
                 wv_ref, bv_ref, wo_ref, bo_ref, ctx_ref, None, kv_scr)
    return kernel


def multi_head_attention(query, key, value, params, n_heads, *,
                         compute_dtype=jnp.bfloat16, tq=None,
                         return_attention=True, att_dtype=jnp.float32):
    """Pallas forward of MultiHeadAttentionLayer (mask=None, eval mode).

    compute_dtype : dtype of MXU operands.  bf16 (default) gives ~2-3x matmul
        throughput on v5e/v6e/v7x with f32 accumulation / f32 softmax; pass
        jnp.float32 for exact parity with the PyTorch reference.
    return_attention / att_dtype : the S x S attention map dominates HBM write
        traffic at large S; set att_dtype=jnp.bfloat16 to halve it, or
        return_attention=False to drop it entirely.
    """
    B, S, H = query.shape
    assert key.shape == (B, S, H) and value.shape == (B, S, H)
    assert H % n_heads == 0
    hd = H // n_heads
    scale = math.sqrt(float(hd))

    # Query-row tiling: larger tiles -> fewer grid steps and lane-dense stores.
    if tq is None:
        tq = S
        if S > 256:
            for cand in (512, 256, 128, 64):
                if S % cand == 0:
                    tq = cand
                    break
    if S % tq != 0:
        raise ValueError("sequence length must be divisible by the query tile")
    n_q_tiles = S // tq

    wq, bq, wk, bk, wv, bv, wo, bo = params

    # Host-side repacking (free): transpose to [in, out]; fold 1/scale into fc_q.
    wq_t = (wq.T / scale).astype(compute_dtype)
    bq2 = (bq / scale).reshape(1, H).astype(jnp.float32)
    wk_t = wk.T.astype(compute_dtype)
    bk2 = bk.reshape(1, H).astype(jnp.float32)
    wv_t = wv.T.astype(compute_dtype)
    bv2 = bv.reshape(1, H).astype(jnp.float32)
    wo_t = wo.T.astype(compute_dtype)
    bo2 = bo.reshape(1, H).astype(jnp.float32)

    kernel = _make_mha_kernel(n_heads, hd, S, tq, H, return_attention)

    ctx_shape = jax.ShapeDtypeStruct((B, S, H), jnp.float32)
    ctx_spec = pl.BlockSpec((1, tq, H), lambda b, qi: (b, qi, 0))
    if return_attention:
        out_shape = (ctx_shape, jax.ShapeDtypeStruct((B, n_heads, S, S), att_dtype))
        out_specs = (ctx_spec,
                     pl.BlockSpec((1, n_heads, tq, S), lambda b, qi: (b, 0, qi, 0)))
    else:
        out_shape = ctx_shape
        out_specs = ctx_spec

    def build(weight_mode):
        def w_spec(shape):
            zeros = (0,) * len(shape)
            idx = lambda b, qi: zeros
            if weight_mode is None:
                return pl.BlockSpec(shape, idx)
            return pl.BlockSpec(shape, idx, pipeline_mode=weight_mode)

        in_specs = [
            pl.BlockSpec((1, tq, H), lambda b, qi: (b, qi, 0)),   # query tile
            pl.BlockSpec((1, S, H), lambda b, qi: (b, 0, 0)),     # key  (DMA once per b)
            pl.BlockSpec((1, S, H), lambda b, qi: (b, 0, 0)),     # value(DMA once per b)
            w_spec((H, H)), w_spec((1, H)),                        # wq_t (scaled), bq (scaled)
            w_spec((H, H)), w_spec((1, H)),                        # wk_t, bk
            w_spec((H, H)), w_spec((1, H)),                        # wv_t, bv
            w_spec((H, H)), w_spec((1, H)),                        # wo_t, bo
        ]
        return pl.pallas_call(
            kernel,
            out_shape=out_shape,
            grid_spec=pltpu.PrefetchScalarGridSpec(
                num_scalar_prefetch=0,
                grid=(B, n_q_tiles),
                in_specs=in_specs,
                out_specs=out_specs,
                scratch_shapes=[pltpu.VMEM((2, n_heads, S, hd), compute_dtype)],
            ),
            compiler_params=pltpu.CompilerParams(
                # qi is "arbitrary": projected K/V persist in VMEM scratch across
                # query tiles of the same batch row.  (For B == 1 on v7x one
                # could instead recompute K/V per tile and mark qi parallel.)
                dimension_semantics=("parallel", "arbitrary"),
                vmem_limit_bytes=_vmem_limit_bytes(),
            ),
        )

    args = (query, key, value, wq_t, bq2, wk_t, bk2, wv_t, bv2, wo_t, bo2)
    try:
        # Single-buffer the constant weight/bias tiles (their block index never
        # changes, default double-buffering only wastes VMEM).
        outs = build(pl.Buffered(1))(*args)
    except Exception:
        # Fallback if this JAX build rejects Buffered(1) on a pallas_call spec.
        outs = build(None)(*args)

    if return_attention:
        return outs[0], outs[1]
    return outs


def _reference(query, key, value, params, n_heads):
    """Pure-JAX reference mirroring the PyTorch forward (mask=None, eval)."""
    B, S, H = query.shape
    hd = H // n_heads
    wq, bq, wk, bk, wv, bv, wo, bo = params
    hp = jax.lax.Precision.HIGHEST

    def proj(x, w, b):
        return jnp.dot(x, w.T, precision=hp) + b

    Q = proj(query, wq, bq).reshape(B, S, n_heads, hd).transpose(0, 2, 1, 3)
    K = proj(key, wk, bk).reshape(B, S, n_heads, hd).transpose(0, 2, 1, 3)
    V = proj(value, wv, bv).reshape(B, S, n_heads, hd).transpose(0, 2, 1, 3)

    energy = jnp.einsum('bhqd,bhkd->bhqk', Q, K, precision=hp) / jnp.sqrt(jnp.float32(hd))
    att = jax.nn.softmax(energy, axis=-1)
    ctx = jnp.einsum('bhqk,bhkd->bhqd', att, V, precision=hp)
    ctx = ctx.transpose(0, 2, 1, 3).reshape(B, S, H)
    ctx = jnp.dot(ctx, wo.T, precision=hp) + bo
    return ctx, att


def _init_linear(key, in_dim, out_dim):
    # torch.nn.Linear default: U(-1/sqrt(in), 1/sqrt(in)) for both W and b.
    kw, kb = jax.random.split(key)
    bound = 1.0 / math.sqrt(in_dim)
    w = jax.random.uniform(kw, (out_dim, in_dim), jnp.float32, -bound, bound)
    b = jax.random.uniform(kb, (out_dim,), jnp.float32, -bound, bound)
    return w, b


if __name__ == "__main__":
    B, S, H, NH = 2, 8, 32, 4   # batch, seq, hid_dim, n_heads  (head_dim = 8)

    root = jax.random.PRNGKey(0)
    kq, kk, kv, ko, kx1, kx2, kx3 = jax.random.split(root, 7)

    wq, bq = _init_linear(kq, H, H)
    wk, bk = _init_linear(kk, H, H)
    wv, bv = _init_linear(kv, H, H)
    wo, bo = _init_linear(ko, H, H)
    params = (wq, bq, wk, bk, wv, bv, wo, bo)

    query = jax.random.normal(kx1, (B, S, H), jnp.float32)
    key_ = jax.random.normal(kx2, (B, S, H), jnp.float32)
    value = jax.random.normal(kx3, (B, S, H), jnp.float32)

    ctx_ref, att_ref = _reference(query, key_, value, params, NH)

    # 1) Default fast path: bf16 MXU operands, f32 accumulation / f32 softmax.
    ctx, att = multi_head_attention(query, key_, value, params, NH)
    jax.block_until_ready((ctx, att))
    assert ctx.shape == (B, S, H) and att.shape == (B, NH, S, S)
    assert jnp.allclose(ctx, ctx_ref, atol=5e-2, rtol=5e-2)
    assert jnp.allclose(att, att_ref, atol=5e-2, rtol=5e-2)

    # 2) Exact-parity path: f32 operands everywhere + exact softmax divide.
    ctx32, att32 = multi_head_attention(query, key_, value, params, NH,
                                        compute_dtype=jnp.float32)
    jax.block_until_ready((ctx32, att32))
    assert jnp.allclose(ctx32, ctx_ref, atol=1e-3, rtol=1e-3)
    assert jnp.allclose(att32, att_ref, atol=1e-3, rtol=1e-3)

    print("KERNEL_OK")
</pallas_src>

<mosaic_0001>
module attributes {stable_mosaic.version = 11 : i64} {
  func.func @kernel(%arg0: i32, %arg1: i32, %arg2: memref<1x8x32xf32, #tpu.memory_space<vmem>>, %arg3: memref<1x8x32xf32, #tpu.memory_space<vmem>>, %arg4: memref<1x8x32xf32, #tpu.memory_space<vmem>>, %arg5: memref<32x32xbf16, #tpu.memory_space<vmem>>, %arg6: memref<1x32xf32, #tpu.memory_space<vmem>>, %arg7: memref<32x32xbf16, #tpu.memory_space<vmem>>, %arg8: memref<1x32xf32, #tpu.memory_space<vmem>>, %arg9: memref<32x32xbf16, #tpu.memory_space<vmem>>, %arg10: memref<1x32xf32, #tpu.memory_space<vmem>>, %arg11: memref<32x32xbf16, #tpu.memory_space<vmem>>, %arg12: memref<1x32xf32, #tpu.memory_space<vmem>>, %arg13: memref<1x8x32xf32, #tpu.memory_space<vmem>>, %arg14: memref<1x4x8x8xf32, #tpu.memory_space<vmem>>, %arg15: memref<2x4x8x8xbf16, #tpu.memory_space<vmem>>) attributes {dimension_semantics = [#tpu.dimension_semantics<parallel>, #tpu.dimension_semantics<arbitrary>], iteration_bounds = array<i64: 2, 1>, scalar_prefetch = 0 : i64, scratch_operands = 1 : i64, tpu.core_type = #tpu.core_type<tc>, window_params = [{transform_indices = @transform_0, window_bounds = array<i64: 1, 8, 32>}, {transform_indices = @transform_1, window_bounds = array<i64: 1, 8, 32>}, {transform_indices = @transform_2, window_bounds = array<i64: 1, 8, 32>}, {pipeline_mode = #tpu.pipeline_mode<synchronous>, transform_indices = @transform_3, window_bounds = array<i64: 32, 32>}, {pipeline_mode = #tpu.pipeline_mode<synchronous>, transform_indices = @transform_4, window_bounds = array<i64: 1, 32>}, {pipeline_mode = #tpu.pipeline_mode<synchronous>, transform_indices = @transform_5, window_bounds = array<i64: 32, 32>}, {pipeline_mode = #tpu.pipeline_mode<synchronous>, transform_indices = @transform_6, window_bounds = array<i64: 1, 32>}, {pipeline_mode = #tpu.pipeline_mode<synchronous>, transform_indices = @transform_7, window_bounds = array<i64: 32, 32>}, {pipeline_mode = #tpu.pipeline_mode<synchronous>, transform_indices = @transform_8, window_bounds = array<i64: 1, 32>}, {pipeline_mode = #tpu.pipeline_mode<synchronous>, transform_indices = @transform_9, window_bounds = array<i64: 32, 32>}, {pipeline_mode = #tpu.pipeline_mode<synchronous>, transform_indices = @transform_10, window_bounds = array<i64: 1, 32>}, {transform_indices = @transform_11, window_bounds = array<i64: 1, 8, 32>}, {transform_indices = @transform_12, window_bounds = array<i64: 1, 4, 8, 8>}]} {
    %c0_i32 = arith.constant 0 : i32
    %0 = arith.cmpi eq, %arg1, %c0_i32 : i32
    %1 = arith.extui %0 : i1 to i32
    %c0_i32_0 = arith.constant 0 : i32
    %2 = arith.cmpi ne, %1, %c0_i32_0 : i32
    scf.if %2 {
      %c0_31 = arith.constant 0 : index
      %c0_32 = arith.constant 0 : index
      %c0_33 = arith.constant 0 : index
      %46 = vector.load %arg3[%c0_31, %c0_32, %c0_33] : memref<1x8x32xf32, #tpu.memory_space<vmem>>, vector<1x8x32xf32>
      %47 = vector.shape_cast %46 : vector<1x8x32xf32> to vector<8x32xf32>
      %48 = arith.truncf %47 : vector<8x32xf32> to vector<8x32xbf16>
      %c0_34 = arith.constant 0 : index
      %c0_35 = arith.constant 0 : index
      %c0_36 = arith.constant 0 : index
      %49 = vector.load %arg4[%c0_34, %c0_35, %c0_36] : memref<1x8x32xf32, #tpu.memory_space<vmem>>, vector<1x8x32xf32>
      %50 = vector.shape_cast %49 : vector<1x8x32xf32> to vector<8x32xf32>
      %51 = arith.truncf %50 : vector<8x32xf32> to vector<8x32xbf16>
      %c0_37 = arith.constant 0 : index
      %c0_38 = arith.constant 0 : index
      %52 = vector.load %arg7[%c0_37, %c0_38] : memref<32x32xbf16, #tpu.memory_space<vmem>>, vector<32x32xbf16>
      %cst_39 = arith.constant dense<0.000000e+00> : vector<8x32xf32>
      %53 = tpu.matmul %48, %52, %cst_39 {dimension_numbers = #tpu.dot_dimension_numbers<[1], [0], [0], [1], [0, 0, 1, 1], [], []>} : vector<8x32xbf16>, vector<32x32xbf16>, vector<8x32xf32> -> vector<8x32xf32>
      %c0_40 = arith.constant 0 : index
      %c0_41 = arith.constant 0 : index
      %54 = vector.load %arg8[%c0_40, %c0_41] : memref<1x32xf32, #tpu.memory_space<vmem>>, vector<1x32xf32>
      %55 = vector.broadcast %54 : vector<1x32xf32> to vector<8x32xf32>
      %56 = arith.addf %53, %55 : vector<8x32xf32>
      %c0_42 = arith.constant 0 : index
      %c0_43 = arith.constant 0 : index
      %57 = vector.load %arg9[%c0_42, %c0_43] : memref<32x32xbf16, #tpu.memory_space<vmem>>, vector<32x32xbf16>
      %cst_44 = arith.constant dense<0.000000e+00> : vector<8x32xf32>
      %58 = tpu.matmul %51, %57, %cst_44 {dimension_numbers = #tpu.dot_dimension_numbers<[1], [0], [0], [1], [0, 0, 1, 1], [], []>} : vector<8x32xbf16>, vector<32x32xbf16>, vector<8x32xf32> -> vector<8x32xf32>
      %c0_45 = arith.constant 0 : index
      %c0_46 = arith.constant 0 : index
      %59 = vector.load %arg10[%c0_45, %c0_46] : memref<1x32xf32, #tpu.memory_space<vmem>>, vector<1x32xf32>
      %60 = vector.broadcast %59 : vector<1x32xf32> to vector<8x32xf32>
      %61 = arith.addf %58, %60 : vector<8x32xf32>
      %62 = vector.shape_cast %56 : vector<8x32xf32> to vector<8x4x8xf32>
      %63 = tpu.transpose %62, [1, 0, 2] : vector<8x4x8xf32> -> vector<4x8x8xf32>
      %64 = arith.truncf %63 : vector<4x8x8xf32> to vector<4x8x8xbf16>
      %c0_47 = arith.constant 0 : index
      %c0_48 = arith.constant 0 : index
      %c0_49 = arith.constant 0 : index
      %c0_50 = arith.constant 0 : index
      %65 = vector.load %arg15[%c0_47, %c0_48, %c0_49, %c0_50] : memref<2x4x8x8xbf16, #tpu.memory_space<vmem>>, vector<1x4x8x8xbf16>
      %66 = vector.shape_cast %65 : vector<1x4x8x8xbf16> to vector<4x8x8xbf16>
      %67 = vector.shape_cast %64 : vector<4x8x8xbf16> to vector<1x4x8x8xbf16>
      tpu.vector_store %arg15[%c0_47, %c0_48, %c0_49, %c0_50], %67 {strides = array<i32>} : memref<2x4x8x8xbf16, #tpu.memory_space<vmem>>, vector<1x4x8x8xbf16>,
      %68 = vector.shape_cast %61 : vector<8x32xf32> to vector<8x4x8xf32>
      %69 = tpu.transpose %68, [1, 0, 2] : vector<8x4x8xf32> -> vector<4x8x8xf32>
      %70 = arith.truncf %69 : vector<4x8x8xf32> to vector<4x8x8xbf16>
      %c1_51 = arith.constant 1 : index
      %c0_52 = arith.constant 0 : index
      %c0_53 = arith.constant 0 : index
      %c0_54 = arith.constant 0 : index
      %71 = vector.load %arg15[%c1_51, %c0_52, %c0_53, %c0_54] : memref<2x4x8x8xbf16, #tpu.memory_space<vmem>>, vector<1x4x8x8xbf16>
      %72 = vector.shape_cast %71 : vector<1x4x8x8xbf16> to vector<4x8x8xbf16>
      %73 = vector.shape_cast %70 : vector<4x8x8xbf16> to vector<1x4x8x8xbf16>
      tpu.vector_store %arg15[%c1_51, %c0_52, %c0_53, %c0_54], %73 {strides = array<i32>} : memref<2x4x8x8xbf16, #tpu.memory_space<vmem>>, vector<1x4x8x8xbf16>,
    } else {
    }
    %c0 = arith.constant 0 : index
    %c0_1 = arith.constant 0 : index
    %c0_2 = arith.constant 0 : index
    %3 = vector.load %arg2[%c0, %c0_1, %c0_2] : memref<1x8x32xf32, #tpu.memory_space<vmem>>, vector<1x8x32xf32>
    %4 = vector.shape_cast %3 : vector<1x8x32xf32> to vector<8x32xf32>
    %5 = arith.truncf %4 : vector<8x32xf32> to vector<8x32xbf16>
    %c0_3 = arith.constant 0 : index
    %c0_4 = arith.constant 0 : index
    %6 = vector.load %arg5[%c0_3, %c0_4] : memref<32x32xbf16, #tpu.memory_space<vmem>>, vector<32x32xbf16>
    %cst = arith.constant dense<0.000000e+00> : vector<8x32xf32>
    %7 = tpu.matmul %5, %6, %cst {dimension_numbers = #tpu.dot_dimension_numbers<[1], [0], [0], [1], [0, 0, 1, 1], [], []>} : vector<8x32xbf16>, vector<32x32xbf16>, vector<8x32xf32> -> vector<8x32xf32>
    %c0_5 = arith.constant 0 : index
    %c0_6 = arith.constant 0 : index
    %8 = vector.load %arg6[%c0_5, %c0_6] : memref<1x32xf32, #tpu.memory_space<vmem>>, vector<1x32xf32>
    %9 = vector.broadcast %8 : vector<1x32xf32> to vector<8x32xf32>
    %10 = arith.addf %7, %9 : vector<8x32xf32>
    %11 = vector.shape_cast %10 : vector<8x32xf32> to vector<8x4x8xf32>
    %12 = tpu.transpose %11, [1, 0, 2] : vector<8x4x8xf32> -> vector<4x8x8xf32>
    %13 = arith.truncf %12 : vector<4x8x8xf32> to vector<4x8x8xbf16>
    %c0_7 = arith.constant 0 : index
    %c0_8 = arith.constant 0 : index
    %c0_9 = arith.constant 0 : index
    %c0_10 = arith.constant 0 : index
    %14 = vector.load %arg15[%c0_7, %c0_8, %c0_9, %c0_10] : memref<2x4x8x8xbf16, #tpu.memory_space<vmem>>, vector<1x4x8x8xbf16>
    %15 = vector.shape_cast %14 : vector<1x4x8x8xbf16> to vector<4x8x8xbf16>
    %c1 = arith.constant 1 : index
    %c0_11 = arith.constant 0 : index
    %c0_12 = arith.constant 0 : index
    %c0_13 = arith.constant 0 : index
    %16 = vector.load %arg15[%c1, %c0_11, %c0_12, %c0_13] : memref<2x4x8x8xbf16, #tpu.memory_space<vmem>>, vector<1x4x8x8xbf16>
    %17 = vector.shape_cast %16 : vector<1x4x8x8xbf16> to vector<4x8x8xbf16>
    "tpu.trace_start"() <{level = 10 : i32, message = "nqd,nkd->nqk"}> : () -> ()
    %cst_14 = arith.constant dense<0.000000e+00> : vector<4x8x8xf32>
    %18 = tpu.matmul %13, %15, %cst_14 {dimension_numbers = #tpu.dot_dimension_numbers<[2], [2], [1], [1], [0, 0, 0, 1, 1, 1], [0], [0]>} : vector<4x8x8xbf16>, vector<4x8x8xbf16>, vector<4x8x8xf32> -> vector<4x8x8xf32>
    "tpu.trace_stop"() : () -> ()
    %cst_15 = arith.constant dense<0xFF800000> : vector<4x8xf32>
    %19 = vector.multi_reduction <maximumf>, %18, %cst_15 [2] : vector<4x8x8xf32> to vector<4x8xf32>
    %20 = vector.shape_cast %19 : vector<4x8xf32> to vector<4x8x1xf32>
    %21 = vector.broadcast %20 : vector<4x8x1xf32> to vector<4x8x8xf32>
    %22 = arith.subf %18, %21 : vector<4x8x8xf32>
    %23 = math.exp %22 : vector<4x8x8xf32>
    %cst_16 = arith.constant dense<0.000000e+00> : vector<4x8xf32>
    %24 = vector.multi_reduction <add>, %23, %cst_16 [2] : vector<4x8x8xf32> to vector<4x8xf32>
    %25 = vector.shape_cast %24 : vector<4x8xf32> to vector<4x8x1xf32>
    %cst_17 = arith.constant 1.000000e+00 : f32
    %26 = vector.broadcast %cst_17 : f32 to vector<4x8x1xf32>
    %27 = arith.divf %26, %25 : vector<4x8x1xf32>
    %28 = vector.broadcast %27 : vector<4x8x1xf32> to vector<4x8x8xf32>
    %29 = arith.mulf %23, %28 : vector<4x8x8xf32>
    %c0_18 = arith.constant 0 : index
    %c0_19 = arith.constant 0 : index
    %c0_20 = arith.constant 0 : index
    %c0_21 = arith.constant 0 : index
    %30 = vector.load %arg14[%c0_18, %c0_19, %c0_20, %c0_21] : memref<1x4x8x8xf32, #tpu.memory_space<vmem>>, vector<1x4x8x8xf32>
    %31 = vector.shape_cast %30 : vector<1x4x8x8xf32> to vector<4x8x8xf32>
    %32 = vector.shape_cast %29 : vector<4x8x8xf32> to vector<1x4x8x8xf32>
    tpu.vector_store %arg14[%c0_18, %c0_19, %c0_20, %c0_21], %32 {strides = array<i32>} : memref<1x4x8x8xf32, #tpu.memory_space<vmem>>, vector<1x4x8x8xf32>,
    %33 = arith.truncf %29 : vector<4x8x8xf32> to vector<4x8x8xbf16>
    "tpu.trace_start"() <{level = 10 : i32, message = "nqk,nkd->nqd"}> : () -> ()
    %cst_22 = arith.constant dense<0.000000e+00> : vector<4x8x8xf32>
    %34 = tpu.matmul %33, %17, %cst_22 {dimension_numbers = #tpu.dot_dimension_numbers<[2], [1], [1], [2], [0, 0, 0, 1, 1, 2], [0], [0]>} : vector<4x8x8xbf16>, vector<4x8x8xbf16>, vector<4x8x8xf32> -> vector<4x8x8xf32>
    "tpu.trace_stop"() : () -> ()
    %35 = tpu.transpose %34, [1, 0, 2] : vector<4x8x8xf32> -> vector<8x4x8xf32>
    %36 = vector.shape_cast %35 : vector<8x4x8xf32> to vector<8x32xf32>
    %37 = arith.truncf %36 : vector<8x32xf32> to vector<8x32xbf16>
    %c0_23 = arith.constant 0 : index
    %c0_24 = arith.constant 0 : index
    %38 = vector.load %arg11[%c0_23, %c0_24] : memref<32x32xbf16, #tpu.memory_space<vmem>>, vector<32x32xbf16>
    %cst_25 = arith.constant dense<0.000000e+00> : vector<8x32xf32>
    %39 = tpu.matmul %37, %38, %cst_25 {dimension_numbers = #tpu.dot_dimension_numbers<[1], [0], [0], [1], [0, 0, 1, 1], [], []>} : vector<8x32xbf16>, vector<32x32xbf16>, vector<8x32xf32> -> vector<8x32xf32>
    %c0_26 = arith.constant 0 : index
    %c0_27 = arith.constant 0 : index
    %40 = vector.load %arg12[%c0_26, %c0_27] : memref<1x32xf32, #tpu.memory_space<vmem>>, vector<1x32xf32>
    %41 = vector.broadcast %40 : vector<1x32xf32> to vector<8x32xf32>
    %42 = arith.addf %39, %41 : vector<8x32xf32>
    %c0_28 = arith.constant 0 : index
    %c0_29 = arith.constant 0 : index
    %c0_30 = arith.constant 0 : index
    %43 = vector.load %arg13[%c0_28, %c0_29, %c0_30] : memref<1x8x32xf32, #tpu.memory_space<vmem>>, vector<1x8x32xf32>
    %44 = vector.shape_cast %43 : vector<1x8x32xf32> to vector<8x32xf32>
    %45 = vector.shape_cast %42 : vector<8x32xf32> to vector<1x8x32xf32>
    tpu.vector_store %arg13[%c0_28, %c0_29, %c0_30], %45 {strides = array<i32>} : memref<1x8x32xf32, #tpu.memory_space<vmem>>, vector<1x8x32xf32>,
    return
  }
  func.func @transform_0(%arg0: i32, %arg1: i32) -> (i32, i32, i32) {
    %c0_i32 = arith.constant 0 : i32
    %c0_i32_0 = arith.constant 0 : i32
    return %arg0, %arg1, %c0_i32 : i32, i32, i32
  }
  func.func @transform_1(%arg0: i32, %arg1: i32) -> (i32, i32, i32) {
    %c0_i32 = arith.constant 0 : i32
    %c0_i32_0 = arith.constant 0 : i32
    %c0_i32_1 = arith.constant 0 : i32
    return %arg0, %c0_i32, %c0_i32_0 : i32, i32, i32
  }
  func.func @transform_2(%arg0: i32, %arg1: i32) -> (i32, i32, i32) {
    %c0_i32 = arith.constant 0 : i32
    %c0_i32_0 = arith.constant 0 : i32
    %c0_i32_1 = arith.constant 0 : i32
    return %arg0, %c0_i32, %c0_i32_0 : i32, i32, i32
  }
  func.func @transform_3(%arg0: i32, %arg1: i32) -> (i32, i32) {
    %c0_i32 = arith.constant 0 : i32
    %c0_i32_0 = arith.constant 0 : i32
    %c0_i32_1 = arith.constant 0 : i32
    return %c0_i32, %c0_i32_0 : i32, i32
  }
  func.func @transform_4(%arg0: i32, %arg1: i32) -> (i32, i32) {
    %c0_i32 = arith.constant 0 : i32
    %c0_i32_0 = arith.constant 0 : i32
    %c0_i32_1 = arith.constant 0 : i32
    return %c0_i32, %c0_i32_0 : i32, i32
  }
  func.func @transform_5(%arg0: i32, %arg1: i32) -> (i32, i32) {
    %c0_i32 = arith.constant 0 : i32
    %c0_i32_0 = arith.constant 0 : i32
    %c0_i32_1 = arith.constant 0 : i32
    return %c0_i32, %c0_i32_0 : i32, i32
  }
  func.func @transform_6(%arg0: i32, %arg1: i32) -> (i32, i32) {
    %c0_i32 = arith.constant 0 : i32
    %c0_i32_0 = arith.constant 0 : i32
    %c0_i32_1 = arith.constant 0 : i32
    return %c0_i32, %c0_i32_0 : i32, i32
  }
  func.func @transform_7(%arg0: i32, %arg1: i32) -> (i32, i32) {
    %c0_i32 = arith.constant 0 : i32
    %c0_i32_0 = arith.constant 0 : i32
    %c0_i32_1 = arith.constant 0 : i32
    return %c0_i32, %c0_i32_0 : i32, i32
  }
  func.func @transform_8(%arg0: i32, %arg1: i32) -> (i32, i32) {
    %c0_i32 = arith.constant 0 : i32
    %c0_i32_0 = arith.constant 0 : i32
    %c0_i32_1 = arith.constant 0 : i32
    return %c0_i32, %c0_i32_0 : i32, i32
  }
  func.func @transform_9(%arg0: i32, %arg1: i32) -> (i32, i32) {
    %c0_i32 = arith.constant 0 : i32
    %c0_i32_0 = arith.constant 0 : i32
    %c0_i32_1 = arith.constant 0 : i32
    return %c0_i32, %c0_i32_0 : i32, i32
  }
  func.func @transform_10(%arg0: i32, %arg1: i32) -> (i32, i32) {
    %c0_i32 = arith.constant 0 : i32
    %c0_i32_0 = arith.constant 0 : i32
    %c0_i32_1 = arith.constant 0 : i32
    return %c0_i32, %c0_i32_0 : i32, i32
  }
  func.func @transform_11(%arg0: i32, %arg1: i32) -> (i32, i32, i32) {
    %c0_i32 = arith.constant 0 : i32
    %c0_i32_0 = arith.constant 0 : i32
    return %arg0, %arg1, %c0_i32 : i32, i32, i32
  }
  func.func @transform_12(%arg0: i32, %arg1: i32) -> (i32, i32, i32, i32) {
    %c0_i32 = arith.constant 0 : i32
    %c0_i32_0 = arith.constant 0 : i32
    %c0_i32_1 = arith.constant 0 : i32
    return %arg0, %c0_i32, %arg1, %c0_i32_0 : i32, i32, i32, i32
  }
}

module attributes {stable_mosaic.version = 11 : i64} {
  func.func @kernel(%arg0: i32, %arg1: i32, %arg2: memref<1x8x32xf32, #tpu.memory_space<vmem>>, %arg3: memref<1x8x32xf32, #tpu.memory_space<vmem>>, %arg4: memref<1x8x32xf32, #tpu.memory_space<vmem>>, %arg5: memref<32x32xbf16, #tpu.memory_space<vmem>>, %arg6: memref<1x32xf32, #tpu.memory_space<vmem>>, %arg7: memref<32x32xbf16, #tpu.memory_space<vmem>>, %arg8: memref<1x32xf32, #tpu.memory_space<vmem>>, %arg9: memref<32x32xbf16, #tpu.memory_space<vmem>>, %arg10: memref<1x32xf32, #tpu.memory_space<vmem>>, %arg11: memref<32x32xbf16, #tpu.memory_space<vmem>>, %arg12: memref<1x32xf32, #tpu.memory_space<vmem>>, %arg13: memref<1x8x32xf32, #tpu.memory_space<vmem>>, %arg14: memref<1x4x8x8xf32, #tpu.memory_space<vmem>>, %arg15: memref<2x4x8x8xbf16, #tpu.memory_space<vmem>>) attributes {dimension_semantics = [#tpu.dimension_semantics<parallel>, #tpu.dimension_semantics<arbitrary>], iteration_bounds = array<i64: 2, 1>, scalar_prefetch = 0 : i64, scratch_operands = 1 : i64, tpu.core_type = #tpu.core_type<tc>, window_params = [{transform_indices = @transform_0, window_bounds = array<i64: 1, 8, 32>}, {transform_indices = @transform_1, window_bounds = array<i64: 1, 8, 32>}, {transform_indices = @transform_2, window_bounds = array<i64: 1, 8, 32>}, {pipeline_mode = #tpu.pipeline_mode<synchronous>, transform_indices = @transform_3, window_bounds = array<i64: 32, 32>}, {pipeline_mode = #tpu.pipeline_mode<synchronous>, transform_indices = @transform_4, window_bounds = array<i64: 1, 32>}, {pipeline_mode = #tpu.pipeline_mode<synchronous>, transform_indices = @transform_5, window_bounds = array<i64: 32, 32>}, {pipeline_mode = #tpu.pipeline_mode<synchronous>, transform_indices = @transform_6, window_bounds = array<i64: 1, 32>}, {pipeline_mode = #tpu.pipeline_mode<synchronous>, transform_indices = @transform_7, window_bounds = array<i64: 32, 32>}, {pipeline_mode = #tpu.pipeline_mode<synchronous>, transform_indices = @transform_8, window_bounds = array<i64: 1, 32>}, {pipeline_mode = #tpu.pipeline_mode<synchronous>, transform_indices = @transform_9, window_bounds = array<i64: 32, 32>}, {pipeline_mode = #tpu.pipeline_mode<synchronous>, transform_indices = @transform_10, window_bounds = array<i64: 1, 32>}, {transform_indices = @transform_11, window_bounds = array<i64: 1, 8, 32>}, {transform_indices = @transform_12, window_bounds = array<i64: 1, 4, 8, 8>}]} {
    %c0_i32 = arith.constant 0 : i32
    %0 = arith.cmpi eq, %arg1, %c0_i32 : i32
    %1 = arith.extui %0 : i1 to i32
    %c0_i32_0 = arith.constant 0 : i32
    %2 = arith.cmpi ne, %1, %c0_i32_0 : i32
    scf.if %2 {
      %c0_31 = arith.constant 0 : index
      %c0_32 = arith.constant 0 : index
      %c0_33 = arith.constant 0 : index
      %46 = vector.load %arg3[%c0_31, %c0_32, %c0_33] : memref<1x8x32xf32, #tpu.memory_space<vmem>>, vector<1x8x32xf32>
      %47 = vector.shape_cast %46 : vector<1x8x32xf32> to vector<8x32xf32>
      %48 = arith.truncf %47 : vector<8x32xf32> to vector<8x32xbf16>
      %c0_34 = arith.constant 0 : index
      %c0_35 = arith.constant 0 : index
      %c0_36 = arith.constant 0 : index
      %49 = vector.load %arg4[%c0_34, %c0_35, %c0_36] : memref<1x8x32xf32, #tpu.memory_space<vmem>>, vector<1x8x32xf32>
      %50 = vector.shape_cast %49 : vector<1x8x32xf32> to vector<8x32xf32>
      %51 = arith.truncf %50 : vector<8x32xf32> to vector<8x32xbf16>
      %c0_37 = arith.constant 0 : index
      %c0_38 = arith.constant 0 : index
      %52 = vector.load %arg7[%c0_37, %c0_38] : memref<32x32xbf16, #tpu.memory_space<vmem>>, vector<32x32xbf16>
      %cst_39 = arith.constant dense<0.000000e+00> : vector<8x32xf32>
      %53 = tpu.matmul %48, %52, %cst_39 {dimension_numbers = #tpu.dot_dimension_numbers<[1], [0], [0], [1], [0, 0, 1, 1], [], []>} : vector<8x32xbf16>, vector<32x32xbf16>, vector<8x32xf32> -> vector<8x32xf32>
      %c0_40 = arith.constant 0 : index
      %c0_41 = arith.constant 0 : index
      %54 = vector.load %arg8[%c0_40, %c0_41] : memref<1x32xf32, #tpu.memory_space<vmem>>, vector<1x32xf32>
      %55 = vector.broadcast %54 : vector<1x32xf32> to vector<8x32xf32>
      %56 = arith.addf %53, %55 : vector<8x32xf32>
      %c0_42 = arith.constant 0 : index
      %c0_43 = arith.constant 0 : index
      %57 = vector.load %arg9[%c0_42, %c0_43] : memref<32x32xbf16, #tpu.memory_space<vmem>>, vector<32x32xbf16>
      %cst_44 = arith.constant dense<0.000000e+00> : vector<8x32xf32>
      %58 = tpu.matmul %51, %57, %cst_44 {dimension_numbers = #tpu.dot_dimension_numbers<[1], [0], [0], [1], [0, 0, 1, 1], [], []>} : vector<8x32xbf16>, vector<32x32xbf16>, vector<8x32xf32> -> vector<8x32xf32>
      %c0_45 = arith.constant 0 : index
      %c0_46 = arith.constant 0 : index
      %59 = vector.load %arg10[%c0_45, %c0_46] : memref<1x32xf32, #tpu.memory_space<vmem>>, vector<1x32xf32>
      %60 = vector.broadcast %59 : vector<1x32xf32> to vector<8x32xf32>
      %61 = arith.addf %58, %60 : vector<8x32xf32>
      %62 = vector.shape_cast %56 : vector<8x32xf32> to vector<8x4x8xf32>
      %63 = tpu.transpose %62, [1, 0, 2] : vector<8x4x8xf32> -> vector<4x8x8xf32>
      %64 = arith.truncf %63 : vector<4x8x8xf32> to vector<4x8x8xbf16>
      %c0_47 = arith.constant 0 : index
      %c0_48 = arith.constant 0 : index
      %c0_49 = arith.constant 0 : index
      %c0_50 = arith.constant 0 : index
      %65 = vector.load %arg15[%c0_47, %c0_48, %c0_49, %c0_50] : memref<2x4x8x8xbf16, #tpu.memory_space<vmem>>, vector<1x4x8x8xbf16>
      %66 = vector.shape_cast %65 : vector<1x4x8x8xbf16> to vector<4x8x8xbf16>
      %67 = vector.shape_cast %64 : vector<4x8x8xbf16> to vector<1x4x8x8xbf16>
      tpu.vector_store %arg15[%c0_47, %c0_48, %c0_49, %c0_50], %67 {strides = array<i32>} : memref<2x4x8x8xbf16, #tpu.memory_space<vmem>>, vector<1x4x8x8xbf16>,
      %68 = vector.shape_cast %61 : vector<8x32xf32> to vector<8x4x8xf32>
      %69 = tpu.transpose %68, [1, 0, 2] : vector<8x4x8xf32> -> vector<4x8x8xf32>
      %70 = arith.truncf %69 : vector<4x8x8xf32> to vector<4x8x8xbf16>
      %c1_51 = arith.constant 1 : index
      %c0_52 = arith.constant 0 : index
      %c0_53 = arith.constant 0 : index
      %c0_54 = arith.constant 0 : index
      %71 = vector.load %arg15[%c1_51, %c0_52, %c0_53, %c0_54] : memref<2x4x8x8xbf16, #tpu.memory_space<vmem>>, vector<1x4x8x8xbf16>
      %72 = vector.shape_cast %71 : vector<1x4x8x8xbf16> to vector<4x8x8xbf16>
      %73 = vector.shape_cast %70 : vector<4x8x8xbf16> to vector<1x4x8x8xbf16>
      tpu.vector_store %arg15[%c1_51, %c0_52, %c0_53, %c0_54], %73 {strides = array<i32>} : memref<2x4x8x8xbf16, #tpu.memory_space<vmem>>, vector<1x4x8x8xbf16>,
    } else {
    }
    %c0 = arith.constant 0 : index
    %c0_1 = arith.constant 0 : index
    %c0_2 = arith.constant 0 : index
    %3 = vector.load %arg2[%c0, %c0_1, %c0_2] : memref<1x8x32xf32, #tpu.memory_space<vmem>>, vector<1x8x32xf32>
    %4 = vector.shape_cast %3 : vector<1x8x32xf32> to vector<8x32xf32>
    %5 = arith.truncf %4 : vector<8x32xf32> to vector<8x32xbf16>
    %c0_3 = arith.constant 0 : index
    %c0_4 = arith.constant 0 : index
    %6 = vector.load %arg5[%c0_3, %c0_4] : memref<32x32xbf16, #tpu.memory_space<vmem>>, vector<32x32xbf16>
    %cst = arith.constant dense<0.000000e+00> : vector<8x32xf32>
    %7 = tpu.matmul %5, %6, %cst {dimension_numbers = #tpu.dot_dimension_numbers<[1], [0], [0], [1], [0, 0, 1, 1], [], []>} : vector<8x32xbf16>, vector<32x32xbf16>, vector<8x32xf32> -> vector<8x32xf32>
    %c0_5 = arith.constant 0 : index
    %c0_6 = arith.constant 0 : index
    %8 = vector.load %arg6[%c0_5, %c0_6] : memref<1x32xf32, #tpu.memory_space<vmem>>, vector<1x32xf32>
    %9 = vector.broadcast %8 : vector<1x32xf32> to vector<8x32xf32>
    %10 = arith.addf %7, %9 : vector<8x32xf32>
    %11 = vector.shape_cast %10 : vector<8x32xf32> to vector<8x4x8xf32>
    %12 = tpu.transpose %11, [1, 0, 2] : vector<8x4x8xf32> -> vector<4x8x8xf32>
    %13 = arith.truncf %12 : vector<4x8x8xf32> to vector<4x8x8xbf16>
    %c0_7 = arith.constant 0 : index
    %c0_8 = arith.constant 0 : index
    %c0_9 = arith.constant 0 : index
    %c0_10 = arith.constant 0 : index
    %14 = vector.load %arg15[%c0_7, %c0_8, %c0_9, %c0_10] : memref<2x4x8x8xbf16, #tpu.memory_space<vmem>>, vector<1x4x8x8xbf16>
    %15 = vector.shape_cast %14 : vector<1x4x8x8xbf16> to vector<4x8x8xbf16>
    %c1 = arith.constant 1 : index
    %c0_11 = arith.constant 0 : index
    %c0_12 = arith.constant 0 : index
    %c0_13 = arith.constant 0 : index
    %16 = vector.load %arg15[%c1, %c0_11, %c0_12, %c0_13] : memref<2x4x8x8xbf16, #tpu.memory_space<vmem>>, vector<1x4x8x8xbf16>
    %17 = vector.shape_cast %16 : vector<1x4x8x8xbf16> to vector<4x8x8xbf16>
    "tpu.trace_start"() <{level = 10 : i32, message = "nqd,nkd->nqk"}> : () -> ()
    %cst_14 = arith.constant dense<0.000000e+00> : vector<4x8x8xf32>
    %18 = tpu.matmul %13, %15, %cst_14 {dimension_numbers = #tpu.dot_dimension_numbers<[2], [2], [1], [1], [0, 0, 0, 1, 1, 1], [0], [0]>} : vector<4x8x8xbf16>, vector<4x8x8xbf16>, vector<4x8x8xf32> -> vector<4x8x8xf32>
    "tpu.trace_stop"() : () -> ()
    %cst_15 = arith.constant dense<0xFF800000> : vector<4x8xf32>
    %19 = vector.multi_reduction <maximumf>, %18, %cst_15 [2] : vector<4x8x8xf32> to vector<4x8xf32>
    %20 = vector.shape_cast %19 : vector<4x8xf32> to vector<4x8x1xf32>
    %21 = vector.broadcast %20 : vector<4x8x1xf32> to vector<4x8x8xf32>
    %22 = arith.subf %18, %21 : vector<4x8x8xf32>
    %23 = math.exp %22 : vector<4x8x8xf32>
    %cst_16 = arith.constant dense<0.000000e+00> : vector<4x8xf32>
    %24 = vector.multi_reduction <add>, %23, %cst_16 [2] : vector<4x8x8xf32> to vector<4x8xf32>
    %25 = vector.shape_cast %24 : vector<4x8xf32> to vector<4x8x1xf32>
    %cst_17 = arith.constant 1.000000e+00 : f32
    %26 = vector.broadcast %cst_17 : f32 to vector<4x8x1xf32>
    %27 = arith.divf %26, %25 : vector<4x8x1xf32>
    %28 = vector.broadcast %27 : vector<4x8x1xf32> to vector<4x8x8xf32>
    %29 = arith.mulf %23, %28 : vector<4x8x8xf32>
    %c0_18 = arith.constant 0 : index
    %c0_19 = arith.constant 0 : index
    %c0_20 = arith.constant 0 : index
    %c0_21 = arith.constant 0 : index
    %30 = vector.load %arg14[%c0_18, %c0_19, %c0_20, %c0_21] : memref<1x4x8x8xf32, #tpu.memory_space<vmem>>, vector<1x4x8x8xf32>
    %31 = vector.shape_cast %30 : vector<1x4x8x8xf32> to vector<4x8x8xf32>
    %32 = vector.shape_cast %29 : vector<4x8x8xf32> to vector<1x4x8x8xf32>
    tpu.vector_store %arg14[%c0_18, %c0_19, %c0_20, %c0_21], %32 {strides = array<i32>} : memref<1x4x8x8xf32, #tpu.memory_space<vmem>>, vector<1x4x8x8xf32>,
    %33 = arith.truncf %29 : vector<4x8x8xf32> to vector<4x8x8xbf16>
    "tpu.trace_start"() <{level = 10 : i32, message = "nqk,nkd->nqd"}> : () -> ()
    %cst_22 = arith.constant dense<0.000000e+00> : vector<4x8x8xf32>
    %34 = tpu.matmul %33, %17, %cst_22 {dimension_numbers = #tpu.dot_dimension_numbers<[2], [1], [1], [2], [0, 0, 0, 1, 1, 2], [0], [0]>} : vector<4x8x8xbf16>, vector<4x8x8xbf16>, vector<4x8x8xf32> -> vector<4x8x8xf32>
    "tpu.trace_stop"() : () -> ()
    %35 = tpu.transpose %34, [1, 0, 2] : vector<4x8x8xf32> -> vector<8x4x8xf32>
    %36 = vector.shape_cast %35 : vector<8x4x8xf32> to vector<8x32xf32>
    %37 = arith.truncf %36 : vector<8x32xf32> to vector<8x32xbf16>
    %c0_23 = arith.constant 0 : index
    %c0_24 = arith.constant 0 : index
    %38 = vector.load %arg11[%c0_23, %c0_24] : memref<32x32xbf16, #tpu.memory_space<vmem>>, vector<32x32xbf16>
    %cst_25 = arith.constant dense<0.000000e+00> : vector<8x32xf32>
    %39 = tpu.matmul %37, %38, %cst_25 {dimension_numbers = #tpu.dot_dimension_numbers<[1], [0], [0], [1], [0, 0, 1, 1], [], []>} : vector<8x32xbf16>, vector<32x32xbf16>, vector<8x32xf32> -> vector<8x32xf32>
    %c0_26 = arith.constant 0 : index
    %c0_27 = arith.constant 0 : index
    %40 = vector.load %arg12[%c0_26, %c0_27] : memref<1x32xf32, #tpu.memory_space<vmem>>, vector<1x32xf32>
    %41 = vector.broadcast %40 : vector<1x32xf32> to vector<8x32xf32>
    %42 = arith.addf %39, %41 : vector<8x32xf32>
    %c0_28 = arith.constant 0 : index
    %c0_29 = arith.constant 0 : index
    %c0_30 = arith.constant 0 : index
    %43 = vector.load %arg13[%c0_28, %c0_29, %c0_30] : memref<1x8x32xf32, #tpu.memory_space<vmem>>, vector<1x8x32xf32>
    %44 = vector.shape_cast %43 : vector<1x8x32xf32> to vector<8x32xf32>
    %45 = vector.shape_cast %42 : vector<8x32xf32> to vector<1x8x32xf32>
    tpu.vector_store %arg13[%c0_28, %c0_29, %c0_30], %45 {strides = array<i32>} : memref<1x8x32xf32, #tpu.memory_space<vmem>>, vector<1x8x32xf32>,
    return
  }
  func.func @transform_0(%arg0: i32, %arg1: i32) -> (i32, i32, i32) {
    %c0_i32 = arith.constant 0 : i32
    %c0_i32_0 = arith.constant 0 : i32
    return %arg0, %arg1, %c0_i32 : i32, i32, i32
  }
  func.func @transform_1(%arg0: i32, %arg1: i32) -> (i32, i32, i32) {
    %c0_i32 = arith.constant 0 : i32
    %c0_i32_0 = arith.constant 0 : i32
    %c0_i32_1 = arith.constant 0 : i32
    return %arg0, %c0_i32, %c0_i32_0 : i32, i32, i32
  }
  func.func @transform_2(%arg0: i32, %arg1: i32) -> (i32, i32, i32) {
    %c0_i32 = arith.constant 0 : i32
    %c0_i32_0 = arith.constant 0 : i32
    %c0_i32_1 = arith.constant 0 : i32
    return %arg0, %c0_i32, %c0_i32_0 : i32, i32, i32
  }
  func.func @transform_3(%arg0: i32, %arg1: i32) -> (i32, i32) {
    %c0_i32 = arith.constant 0 : i32
    %c0_i32_0 = arith.constant 0 : i32
    %c0_i32_1 = arith.constant 0 : i32
    return %c0_i32, %c0_i32_0 : i32, i32
  }
  func.func @transform_4(%arg0: i32, %arg1: i32) -> (i32, i32) {
    %c0_i32 = arith.constant 0 : i32
    %c0_i32_0 = arith.constant 0 : i32
    %c0_i32_1 = arith.constant 0 : i32
    return %c0_i32, %c0_i32_0 : i32, i32
  }
  func.func @transform_5(%arg0: i32, %arg1: i32) -> (i32, i32) {
    %c0_i32 = arith.constant 0 : i32
    %c0_i32_0 = arith.constant 0 : i32
    %c0_i32_1 = arith.constant 0 : i32
    return %c0_i32, %c0_i32_0 : i32, i32
  }
  func.func @transform_6(%arg0: i32, %arg1: i32) -> (i32, i32) {
    %c0_i32 = arith.constant 0 : i32
    %c0_i32_0 = arith.constant 0 : i32
    %c0_i32_1 = arith.constant 0 : i32
    return %c0_i32, %c0_i32_0 : i32, i32
  }
  func.func @transform_7(%arg0: i32, %arg1: i32) -> (i32, i32) {
    %c0_i32 = arith.constant 0 : i32
    %c0_i32_0 = arith.constant 0 : i32
    %c0_i32_1 = arith.constant 0 : i32
    return %c0_i32, %c0_i32_0 : i32, i32
  }
  func.func @transform_8(%arg0: i32, %arg1: i32) -> (i32, i32) {
    %c0_i32 = arith.constant 0 : i32
    %c0_i32_0 = arith.constant 0 : i32
    %c0_i32_1 = arith.constant 0 : i32
    return %c0_i32, %c0_i32_0 : i32, i32
  }
  func.func @transform_9(%arg0: i32, %arg1: i32) -> (i32, i32) {
    %c0_i32 = arith.constant 0 : i32
    %c0_i32_0 = arith.constant 0 : i32
    %c0_i32_1 = arith.constant 0 : i32
    return %c0_i32, %c0_i32_0 : i32, i32
  }
  func.func @transform_10(%arg0: i32, %arg1: i32) -> (i32, i32) {
    %c0_i32 = arith.constant 0 : i32
    %c0_i32_0 = arith.constant 0 : i32
    %c0_i32_1 = arith.constant 0 : i32
    return %c0_i32, %c0_i32_0 : i32, i32
  }
  func.func @transform_11(%arg0: i32, %arg1: i32) -> (i32, i32, i32) {
    %c0_i32 = arith.constant 0 : i32
    %c0_i32_0 = arith.constant 0 : i32
    return %arg0, %arg1, %c0_i32 : i32, i32, i32
  }
  func.func @transform_12(%arg0: i32, %arg1: i32) -> (i32, i32, i32, i32) {
    %c0_i32 = arith.constant 0 : i32
    %c0_i32_0 = arith.constant 0 : i32
    %c0_i32_1 = arith.constant 0 : i32
    return %arg0, %c0_i32, %arg1, %c0_i32_0 : i32, i32, i32, i32
  }
}

</mosaic_0001>

<llo_original>
// kernel: tpu_custom_call.1
$region0: #{tpu_custom_call.1}
  #allocation0 [shape = 'u32[]', space=smem, size = 0x4, offset = 0x4, fixed_abs, tag = 'smem constant byte address 0x4 - core index']
  #allocation1 [shape = 'u32[144,128]{1,0:T(1,128)}', space=vmem, size = 0x12000, scoped, tag = 'internal scratch']
  #allocation2 [shape = 'bf16[2,4,8,8]{3,2,1,0:T(8,128)(2,1)}', space=vmem, size = 0x4000, scoped, tag = 'scratch operand']
  %s0 = inlined_call_operand.hbm [shape: f32[2,8,32], index: 0, kind: input, shape index: {}]
  %s1 = inlined_call_operand.hbm [shape: f32[2,8,32], index: 1, kind: input, shape index: {}]
  %s2 = inlined_call_operand.hbm [shape: f32[2,8,32], index: 2, kind: input, shape index: {}]
  %s3 = inlined_call_operand.hbm [shape: bf16[32,32], index: 3, kind: input, shape index: {}]
  %s4 = inlined_call_operand.hbm [shape: f32[1,32], index: 4, kind: input, shape index: {}]
  %s5 = inlined_call_operand.hbm [shape: bf16[32,32], index: 5, kind: input, shape index: {}]
  %s6 = inlined_call_operand.hbm [shape: f32[1,32], index: 6, kind: input, shape index: {}]
  %s7 = inlined_call_operand.hbm [shape: bf16[32,32], index: 7, kind: input, shape index: {}]
  %s8 = inlined_call_operand.hbm [shape: f32[1,32], index: 8, kind: input, shape index: {}]
  %s9 = inlined_call_operand.vmem [shape: bf16[32,32], index: 9, kind: input, shape index: {}]
  %s10 = inlined_call_operand.vmem [shape: f32[1,32], index: 10, kind: input, shape index: {}]
  %s11 = inlined_call_operand.hbm [shape: f32[2,8,32], index: 11, kind: output, shape index: {0}]
  %s12 = inlined_call_operand.hbm [shape: f32[2,4,8,8], index: 12, kind: output, shape index: {1}]
  %13 = xla_tuple %s11, %s12
  %s14 = sld [smem:[#allocation0]]
  $region125: #{tpu_custom_call.1} parent=0
    _
  %s16 = ssub.s32 1, %s14
  %s17 = scalar_select 0, %s16, %s14
  $region1: #{tpu_custom_call.1} parent=0
    #allocation3 [shape = 'u8[8192]{0}', space=vmem, size = 0x2000, scoped, tag = 'input window, operand 0']
    #allocation4 [shape = 's32[2]{0}', space=sflag, size = 0x8, scoped, tag = 'scoped memory for tpu_custom_call.1']
    #allocation5 [shape = 's32[2]{0}', space=sflag, size = 0x8, scoped, tag = 'scoped memory for tpu_custom_call.1']
    #allocation6 [shape = 'u8[8192]{0}', space=vmem, size = 0x2000, scoped, tag = 'input window, operand 1']
    #allocation7 [shape = 's32[2]{0}', space=sflag, size = 0x8, scoped, tag = 'scoped memory for tpu_custom_call.1']
    #allocation8 [shape = 'u8[8192]{0}', space=vmem, size = 0x2000, scoped, tag = 'input window, operand 2']
    #allocation9 [shape = 'u8[8192]{0}', space=vmem, size = 0x2000, scoped, tag = 'input window, operand 3, single buffered']
    #allocation10 [shape = 's32[1]{0}', space=sflag, size = 0x4, scoped, tag = 'scoped memory for tpu_custom_call.1']
    #allocation11 [shape = 'u8[512]{0}', space=vmem, size = 0x400, scoped, tag = 'input window, operand 4, single buffered']
    #allocation12 [shape = 'u8[8192]{0}', space=vmem, size = 0x2000, scoped, tag = 'input window, operand 5, single buffered']
    #allocation13 [shape = 's32[1]{0}', space=sflag, size = 0x4, scoped, tag = 'scoped memory for tpu_custom_call.1']
    #allocation14 [shape = 'u8[512]{0}', space=vmem, size = 0x400, scoped, tag = 'input window, operand 6, single buffered']
    #allocation15 [shape = 'u8[8192]{0}', space=vmem, size = 0x2000, scoped, tag = 'input window, operand 7, single buffered']
    #allocation16 [shape = 's32[1]{0}', space=sflag, size = 0x4, scoped, tag = 'scoped memory for tpu_custom_call.1']
    #allocation17 [shape = 'u8[512]{0}', space=vmem, size = 0x400, scoped, tag = 'input window, operand 8, single buffered']
    #allocation18 [shape = 'u8[8192]{0}', space=vmem, size = 0x2000, scoped, tag = 'output window, operand 0']
    #allocation19 [shape = 'u8[32768]{0}', space=vmem, size = 0x8000, scoped, tag = 'output window, operand 1']
    #allocation20 [shape = 's32[2]{0}', space=sflag, size = 0x8, scoped, tag = 'scoped memory for tpu_custom_call.1']
    %18 = vsyncpa [#allocation4], 0
    %s19 = scalar_lea.sflag [#allocation4], 1
    %20 = vsyncpa %s19, 0
    %21 = vsyncpa [#allocation7], 0
    %s22 = scalar_lea.sflag [#allocation7], 1
    %23 = vsyncpa %s22, 0
    %24 = vsyncpa [#allocation10], 0
    %25 = vsyncpa [#allocation13], 0
    %26 = vsyncpa [#allocation16], 0
    %27 = vsyncpa [#allocation5], 0
    %s28 = scalar_lea.sflag [#allocation5], 1
    %29 = vsyncpa %s28, 0
    %30 = vsyncpa [#allocation20], 0
    %s31 = scalar_lea.sflag [#allocation20], 1
    %32 = vsyncpa %s31, 0
    loop: start=0, step=1, limit=4
    $region2: #{tpu_custom_call.1} parent=1 // loop_pre_header
      _
    $region3: #{tpu_custom_call.1} parent=1 // loop_header
      %s34 = sphi 0, %s38
      %p35 = scmp.ge.s32.totalorder %s34, 4
      %s41 = sphi 0, %s53
      %s42 = sphi 0, %s49
      %s43 = sphi 0, %s41
      %s44 = sphi 0, %s42
      %s45 = sphi 0, %s43
      %s46 = sphi 0, %s44
      %s58 = sphi 0, %s60
      %s61 = sphi 0, %s58
      %s62 = sphi 0, %s61
      %s78 = sphi 0, %s62
      %s84 = sphi 0, %s86
      %s87 = sphi 0, %s84
      %s88 = sphi 0, %s87
      %s104 = sphi 0, %s88
      %s110 = sphi 0, %s112
      %s113 = sphi 0, %s110
      %s114 = sphi 0, %s113
      %s130 = sphi 0, %s114
      %s134 = sphi 0, %s134
      %s136 = sphi 0, %s134
      %s137 = sphi 0, %s136
      %s151 = sphi 0, %s137
      %s155 = sphi 0, %s155
      %s157 = sphi 0, %s155
      %s158 = sphi 0, %s157
      %s172 = sphi 0, %s158
      %s176 = sphi 0, %s176
      %s178 = sphi 0, %s176
      %s179 = sphi 0, %s178
      %s193 = sphi 0, %s179
      %s197 = sphi 0, %s197
      %s199 = sphi 0, %s197
      %s200 = sphi 0, %s199
      %s214 = sphi 0, %s200
      %s218 = sphi 0, %s218
      %s220 = sphi 0, %s218
      %s221 = sphi 0, %s220
      %s235 = sphi 0, %s221
      %s239 = sphi 0, %s239
      %s241 = sphi 0, %s239
      %s242 = sphi 0, %s241
      %s256 = sphi 0, %s242
      %s260 = sphi 0, %s260
      %s262 = sphi 0, %s260
      %s263 = sphi 0, %s262
      %s277 = sphi 0, %s263
      %s281 = sphi 0, %s281
      %s283 = sphi 0, %s281
      %s284 = sphi 0, %s283
      %s298 = sphi 0, %s284
      %s306 = sphi 0, %s308
      %s309 = sphi 0, %s306
      %s310 = sphi 0, %s309
      %s326 = sphi 0, %s310
      %s334 = sphi 0, %s336
      %s337 = sphi 0, %s334
      %s338 = sphi 0, %s337
      %s354 = sphi 0, %s338
    $region4: #{tpu_custom_call.1} parent=1 // loop_header_branch
      %37 = sbr.rel (%p35) target = $region8
    $region5: #{tpu_custom_call.1} parent=1 // loop_body
      %s39 = ssub.s32 %s34, 1
      %s40 = ssub.s32 %s34, 2
      %s47 = sadd.s32 1, %s42
      %p48 = scmp.ge.s32.totalorder %s47, 1
      %s49 = scalar_select %p48, 0, %s47
      %s50 = sadd.s32 1, %s41
      %s51 = scalar_select %p48, %s50, %s41
      %p52 = scmp.ge.s32.totalorder %s51, 2
      %s53 = scalar_select %p52, 0, %s51
      %s54 = ssub.s32 %s41, %s53
      %s55 = ssub.s32 %s42, %s49
      %s56 = sor.u32 %s54, %s55
      %p57 = scmp.eq.s32.totalorder %s56, 0
      %s59 = sadd.s32 %s58, 1
      %s60 = scalar_select %p57, %s58, %s59
      %p63 = pneg %p57
      %p64 = scmp.eq.s32.totalorder %s34, 1
      %p65 = por %p63, %p64
      %p66 = scmp.ne.s32.totalorder %s58, %s61
      %p67 = scmp.eq.s32.totalorder %s34, 0
      %p68 = por %p66, %p67
      %p69 = scmp.ne.s32.totalorder %s58, %s61
      %p70 = scmp.eq.s32.totalorder %s39, 1
      %p71 = por %p69, %p70
      %p72 = scmp.ne.s32.totalorder %s61, %s62
      %p73 = scmp.eq.s32.totalorder %s39, 0
      %p74 = por %p72, %p73
      %p75 = scmp.ne.s32.totalorder %s61, %s62
      %p76 = scmp.eq.s32.totalorder %s40, 1
      %p77 = por %p75, %p76
      %p79 = scmp.ne.s32.totalorder %s62, %s78
      %p80 = scmp.eq.s32.totalorder %s40, 0
      %p81 = por %p79, %p80
      %s82 = ssub.s32 %s41, %s53
      %p83 = scmp.eq.s32.totalorder %s82, 0
      %s85 = sadd.s32 %s84, 1
      %s86 = scalar_select %p83, %s84, %s85
      %p89 = pneg %p83
      %p90 = scmp.eq.s32.totalorder %s34, 1
      %p91 = por %p89, %p90
      %p92 = scmp.ne.s32.totalorder %s84, %s87
      %p93 = scmp.eq.s32.totalorder %s34, 0
      %p94 = por %p92, %p93
      %p95 = scmp.ne.s32.totalorder %s84, %s87
      %p96 = scmp.eq.s32.totalorder %s39, 1
      %p97 = por %p95, %p96
      %p98 = scmp.ne.s32.totalorder %s87, %s88
      %p99 = scmp.eq.s32.totalorder %s39, 0
      %p100 = por %p98, %p99
      %p101 = scmp.ne.s32.totalorder %s87, %s88
      %p102 = scmp.eq.s32.totalorder %s40, 1
      %p103 = por %p101, %p102
      %p105 = scmp.ne.s32.totalorder %s88, %s104
      %p106 = scmp.eq.s32.totalorder %s40, 0
      %p107 = por %p105, %p106
      %s108 = ssub.s32 %s41, %s53
      %p109 = scmp.eq.s32.totalorder %s108, 0
      %s111 = sadd.s32 %s110, 1
      %s112 = scalar_select %p109, %s110, %s111
      %p115 = pneg %p109
      %p116 = scmp.eq.s32.totalorder %s34, 1
      %p117 = por %p115, %p116
      %p118 = scmp.ne.s32.totalorder %s110, %s113
      %p119 = scmp.eq.s32.totalorder %s34, 0
      %p120 = por %p118, %p119
      %p121 = scmp.ne.s32.totalorder %s110, %s113
      %p122 = scmp.eq.s32.totalorder %s39, 1
      %p123 = por %p121, %p122
      %p124 = scmp.ne.s32.totalorder %s113, %s114
      %p125 = scmp.eq.s32.totalorder %s39, 0
      %p126 = por %p124, %p125
      %p127 = scmp.ne.s32.totalorder %s113, %s114
      %p128 = scmp.eq.s32.totalorder %s40, 1
      %p129 = por %p127, %p128
      %p131 = scmp.ne.s32.totalorder %s114, %s130
      %p132 = scmp.eq.s32.totalorder %s40, 0
      %p133 = por %p131, %p132
      %s135 = sadd.s32 %s134, 1
      %p138 = scmp.eq.s32.totalorder %s34, 1
      %p139 = scmp.ne.s32.totalorder %s134, %s136
      %p140 = scmp.eq.s32.totalorder %s34, 0
      %p141 = por %p139, %p140
      %p142 = scmp.ne.s32.totalorder %s134, %s136
      %p143 = scmp.eq.s32.totalorder %s39, 1
      %p144 = por %p142, %p143
      %p145 = scmp.ne.s32.totalorder %s136, %s137
      %p146 = scmp.eq.s32.totalorder %s39, 0
      %p147 = por %p145, %p146
      %p148 = scmp.ne.s32.totalorder %s136, %s137
      %p149 = scmp.eq.s32.totalorder %s40, 1
      %p150 = por %p148, %p149
      %p152 = scmp.ne.s32.totalorder %s137, %s151
      %p153 = scmp.eq.s32.totalorder %s40, 0
      %p154 = por %p152, %p153
      %s156 = sadd.s32 %s155, 1
      %p159 = scmp.eq.s32.totalorder %s34, 1
      %p160 = scmp.ne.s32.totalorder %s155, %s157
      %p161 = scmp.eq.s32.totalorder %s34, 0
      %p162 = por %p160, %p161
      %p163 = scmp.ne.s32.totalorder %s155, %s157
      %p164 = scmp.eq.s32.totalorder %s39, 1
      %p165 = por %p163, %p164
      %p166 = scmp.ne.s32.totalorder %s157, %s158
      %p167 = scmp.eq.s32.totalorder %s39, 0
      %p168 = por %p166, %p167
      %p169 = scmp.ne.s32.totalorder %s157, %s158
      %p170 = scmp.eq.s32.totalorder %s40, 1
      %p171 = por %p169, %p170
      %p173 = scmp.ne.s32.totalorder %s158, %s172
      %p174 = scmp.eq.s32.totalorder %s40, 0
      %p175 = por %p173, %p174
      %s177 = sadd.s32 %s176, 1
      %p180 = scmp.eq.s32.totalorder %s34, 1
      %p181 = scmp.ne.s32.totalorder %s176, %s178
      %p182 = scmp.eq.s32.totalorder %s34, 0
      %p183 = por %p181, %p182
      %p184 = scmp.ne.s32.totalorder %s176, %s178
      %p185 = scmp.eq.s32.totalorder %s39, 1
      %p186 = por %p184, %p185
      %p187 = scmp.ne.s32.totalorder %s178, %s179
      %p188 = scmp.eq.s32.totalorder %s39, 0
      %p189 = por %p187, %p188
      %p190 = scmp.ne.s32.totalorder %s178, %s179
      %p191 = scmp.eq.s32.totalorder %s40, 1
      %p192 = por %p190, %p191
      %p194 = scmp.ne.s32.totalorder %s179, %s193
      %p195 = scmp.eq.s32.totalorder %s40, 0
      %p196 = por %p194, %p195
      %s198 = sadd.s32 %s197, 1
      %p201 = scmp.eq.s32.totalorder %s34, 1
      %p202 = scmp.ne.s32.totalorder %s197, %s199
      %p203 = scmp.eq.s32.totalorder %s34, 0
      %p204 = por %p202, %p203
      %p205 = scmp.ne.s32.totalorder %s197, %s199
      %p206 = scmp.eq.s32.totalorder %s39, 1
      %p207 = por %p205, %p206
      %p208 = scmp.ne.s32.totalorder %s199, %s200
      %p209 = scmp.eq.s32.totalorder %s39, 0
      %p210 = por %p208, %p209
      %p211 = scmp.ne.s32.totalorder %s199, %s200
      %p212 = scmp.eq.s32.totalorder %s40, 1
      %p213 = por %p211, %p212
      %p215 = scmp.ne.s32.totalorder %s200, %s214
      %p216 = scmp.eq.s32.totalorder %s40, 0
      %p217 = por %p215, %p216
      %s219 = sadd.s32 %s218, 1
      %p222 = scmp.eq.s32.totalorder %s34, 1
      %p223 = scmp.ne.s32.totalorder %s218, %s220
      %p224 = scmp.eq.s32.totalorder %s34, 0
      %p225 = por %p223, %p224
      %p226 = scmp.ne.s32.totalorder %s218, %s220
      %p227 = scmp.eq.s32.totalorder %s39, 1
      %p228 = por %p226, %p227
      %p229 = scmp.ne.s32.totalorder %s220, %s221
      %p230 = scmp.eq.s32.totalorder %s39, 0
      %p231 = por %p229, %p230
      %p232 = scmp.ne.s32.totalorder %s220, %s221
      %p233 = scmp.eq.s32.totalorder %s40, 1
      %p234 = por %p232, %p233
      %p236 = scmp.ne.s32.totalorder %s221, %s235
      %p237 = scmp.eq.s32.totalorder %s40, 0
      %p238 = por %p236, %p237
      %s240 = sadd.s32 %s239, 1
      %p243 = scmp.eq.s32.totalorder %s34, 1
      %p244 = scmp.ne.s32.totalorder %s239, %s241
      %p245 = scmp.eq.s32.totalorder %s34, 0
      %p246 = por %p244, %p245
      %p247 = scmp.ne.s32.totalorder %s239, %s241
      %p248 = scmp.eq.s32.totalorder %s39, 1
      %p249 = por %p247, %p248
      %p250 = scmp.ne.s32.totalorder %s241, %s242
      %p251 = scmp.eq.s32.totalorder %s39, 0
      %p252 = por %p250, %p251
      %p253 = scmp.ne.s32.totalorder %s241, %s242
      %p254 = scmp.eq.s32.totalorder %s40, 1
      %p255 = por %p253, %p254
      %p257 = scmp.ne.s32.totalorder %s242, %s256
      %p258 = scmp.eq.s32.totalorder %s40, 0
      %p259 = por %p257, %p258
      %s261 = sadd.s32 %s260, 1
      %p264 = scmp.eq.s32.totalorder %s34, 1
      %p265 = scmp.ne.s32.totalorder %s260, %s262
      %p266 = scmp.eq.s32.totalorder %s34, 0
      %p267 = por %p265, %p266
      %p268 = scmp.ne.s32.totalorder %s260, %s262
      %p269 = scmp.eq.s32.totalorder %s39, 1
      %p270 = por %p268, %p269
      %p271 = scmp.ne.s32.totalorder %s262, %s263
      %p272 = scmp.eq.s32.totalorder %s39, 0
      %p273 = por %p271, %p272
      %p274 = scmp.ne.s32.totalorder %s262, %s263
      %p275 = scmp.eq.s32.totalorder %s40, 1
      %p276 = por %p274, %p275
      %p278 = scmp.ne.s32.totalorder %s263, %s277
      %p279 = scmp.eq.s32.totalorder %s40, 0
      %p280 = por %p278, %p279
      %s282 = sadd.s32 %s281, 1
      %p285 = scmp.eq.s32.totalorder %s34, 1
      %p286 = scmp.ne.s32.totalorder %s281, %s283
      %p287 = scmp.eq.s32.totalorder %s34, 0
      %p288 = por %p286, %p287
      %p289 = scmp.ne.s32.totalorder %s281, %s283
      %p290 = scmp.eq.s32.totalorder %s39, 1
      %p291 = por %p289, %p290
      %p292 = scmp.ne.s32.totalorder %s283, %s284
      %p293 = scmp.eq.s32.totalorder %s39, 0
      %p294 = por %p292, %p293
      %p295 = scmp.ne.s32.totalorder %s283, %s284
      %p296 = scmp.eq.s32.totalorder %s40, 1
      %p297 = por %p295, %p296
      %p299 = scmp.ne.s32.totalorder %s284, %s298
      %p300 = scmp.eq.s32.totalorder %s40, 0
      %p301 = por %p299, %p300
      %s302 = ssub.s32 %s41, %s53
      %s303 = ssub.s32 %s42, %s49
      %s304 = sor.u32 %s302, %s303
      %p305 = scmp.eq.s32.totalorder %s304, 0
      %s307 = sadd.s32 %s306, 1
      %s308 = scalar_select %p305, %s306, %s307
      %p311 = pneg %p305
      %p312 = scmp.eq.s32.totalorder %s34, 1
      %p313 = por %p311, %p312
      %p314 = scmp.ne.s32.totalorder %s306, %s309
      %p315 = scmp.eq.s32.totalorder %s34, 0
      %p316 = por %p314, %p315
      %p317 = scmp.ne.s32.totalorder %s306, %s309
      %p318 = scmp.eq.s32.totalorder %s39, 1
      %p319 = por %p317, %p318
      %p320 = scmp.ne.s32.totalorder %s309, %s310
      %p321 = scmp.eq.s32.totalorder %s39, 0
      %p322 = por %p320, %p321
      %p323 = scmp.ne.s32.totalorder %s309, %s310
      %p324 = scmp.eq.s32.totalorder %s40, 1
      %p325 = por %p323, %p324
      %p327 = scmp.ne.s32.totalorder %s310, %s326
      %p328 = scmp.eq.s32.totalorder %s40, 0
      %p329 = por %p327, %p328
      %s330 = ssub.s32 %s41, %s53
      %s331 = ssub.s32 %s42, %s49
      %s332 = sor.u32 %s330, %s331
      %p333 = scmp.eq.s32.totalorder %s332, 0
      %s335 = sadd.s32 %s334, 1
      %s336 = scalar_select %p333, %s334, %s335
      %p339 = pneg %p333
      %p340 = scmp.eq.s32.totalorder %s34, 1
      %p341 = por %p339, %p340
      %p342 = scmp.ne.s32.totalorder %s334, %s337
      %p343 = scmp.eq.s32.totalorder %s34, 0
      %p344 = por %p342, %p343
      %p345 = scmp.ne.s32.totalorder %s334, %s337
      %p346 = scmp.eq.s32.totalorder %s39, 1
      %p347 = por %p345, %p346
      %p348 = scmp.ne.s32.totalorder %s337, %s338
      %p349 = scmp.eq.s32.totalorder %s39, 0
      %p350 = por %p348, %p349
      %p351 = scmp.ne.s32.totalorder %s337, %s338
      %p352 = scmp.eq.s32.totalorder %s40, 1
      %p353 = por %p351, %p352
      %p355 = scmp.ne.s32.totalorder %s338, %s354
      %p356 = scmp.eq.s32.totalorder %s40, 0
      %p357 = por %p355, %p356
      %p358 = scmp.le.s32.totalorder 1, %s34
      %p359 = scmp.lt.s32.totalorder %s34, 3
      %p360 = pnand %p358, %p359
      %p361 = pneg %p360
      // Predicated region
      $region9: #{tpu_custom_call.1} parent=5 // pred_check
        _
      $region10: #{tpu_custom_call.1} parent=5 // pred_check_branch
        %363 = sbr.rel (%p360) target = $region12
      $region11: #{tpu_custom_call.1} parent=5 // pred_region
        %s364 = ssub.s32 %s34, 1
        // Predicated region
        $region13: #{tpu_custom_call.1} parent=11 // pred_check
          %p365 = pneg %p147
        $region14: #{tpu_custom_call.1} parent=11 // pred_check_branch
          %367 = sbr.rel (%p365) target = $region16
        $region15: #{tpu_custom_call.1} parent=11 // pred_region
          %s369 = ssub.s32 256, 256
          %370 = vsyncadd [#allocation10], %s369
          %s371 = sshll.u32 [#allocation9], 4
          %s372 = int_to_ptr.vmem [resolvable:$true] %s371
          %377 = dma.hbm_to_vmem [thread:$0]  %s3, 256, %s372, [#allocation10], 64, 64, 4
        $region16: #{tpu_custom_call.1} parent=11 // pred_fallthru
          _
        // Predicated region
        $region17: #{tpu_custom_call.1} parent=11 // pred_check
          %p378 = pneg %p168
        $region18: #{tpu_custom_call.1} parent=11 // pred_check_branch
          %380 = sbr.rel (%p378) target = $region20
        $region19: #{tpu_custom_call.1} parent=11 // pred_region
          %s382 = ssub.s32 16, 16
          %383 = vsyncadd [#allocation10], %s382
          %s385 = sshll.u32 [#allocation11], 4
          %s386 = int_to_ptr.vmem [resolvable:$true] %s385
          %388 = dma.hbm_to_vmem [thread:$0]  %s4, 16, %s386, [#allocation10]
        $region20: #{tpu_custom_call.1} parent=11 // pred_fallthru
          _
        // Predicated region
        $region21: #{tpu_custom_call.1} parent=11 // pred_check
          %p389 = pneg %p189
        $region22: #{tpu_custom_call.1} parent=11 // pred_check_branch
          %391 = sbr.rel (%p389) target = $region24
        $region23: #{tpu_custom_call.1} parent=11 // pred_region
          %s393 = ssub.s32 256, 256
          %394 = vsyncadd [#allocation13], %s393
          %s395 = sshll.u32 [#allocation12], 4
          %s396 = int_to_ptr.vmem [resolvable:$true] %s395
          %401 = dma.hbm_to_vmem [thread:$0]  %s5, 256, %s396, [#allocation13], 64, 64, 4
        $region24: #{tpu_custom_call.1} parent=11 // pred_fallthru
          _
        // Predicated region
        $region25: #{tpu_custom_call.1} parent=11 // pred_check
          %p402 = pneg %p210
        $region26: #{tpu_custom_call.1} parent=11 // pred_check_branch
          %404 = sbr.rel (%p402) target = $region28
        $region27: #{tpu_custom_call.1} parent=11 // pred_region
          %s406 = ssub.s32 16, 16
          %407 = vsyncadd [#allocation13], %s406
          %s409 = sshll.u32 [#allocation14], 4
          %s410 = int_to_ptr.vmem [resolvable:$true] %s409
          %412 = dma.hbm_to_vmem [thread:$0]  %s6, 16, %s410, [#allocation13]
        $region28: #{tpu_custom_call.1} parent=11 // pred_fallthru
          _
        // Predicated region
        $region29: #{tpu_custom_call.1} parent=11 // pred_check
          %p413 = pneg %p231
        $region30: #{tpu_custom_call.1} parent=11 // pred_check_branch
          %415 = sbr.rel (%p413) target = $region32
        $region31: #{tpu_custom_call.1} parent=11 // pred_region
          %s417 = ssub.s32 256, 256
          %418 = vsyncadd [#allocation16], %s417
          %s419 = sshll.u32 [#allocation15], 4
          %s420 = int_to_ptr.vmem [resolvable:$true] %s419
          %425 = dma.hbm_to_vmem [thread:$0]  %s7, 256, %s420, [#allocation16], 64, 64, 4
        $region32: #{tpu_custom_call.1} parent=11 // pred_fallthru
          _
        // Predicated region
        $region33: #{tpu_custom_call.1} parent=11 // pred_check
          %p426 = pneg %p252
        $region34: #{tpu_custom_call.1} parent=11 // pred_check_branch
          %428 = sbr.rel (%p426) target = $region36
        $region35: #{tpu_custom_call.1} parent=11 // pred_region
          %s430 = ssub.s32 16, 16
          %431 = vsyncadd [#allocation16], %s430
          %s433 = sshll.u32 [#allocation17], 4
          %s434 = int_to_ptr.vmem [resolvable:$true] %s433
          %436 = dma.hbm_to_vmem [thread:$0]  %s8, 16, %s434, [#allocation16]
        $region36: #{tpu_custom_call.1} parent=11 // pred_fallthru
          _
        // Predicated region
        $region37: #{tpu_custom_call.1} parent=11 // pred_check
          %p437 = pneg %p273
        $region38: #{tpu_custom_call.1} parent=11 // pred_check_branch
          %439 = sbr.rel (%p437) target = $region40
        $region39: #{tpu_custom_call.1} parent=11 // pred_region
          _
        $region40: #{tpu_custom_call.1} parent=11 // pred_fallthru
          _
        // Predicated region
        $region41: #{tpu_custom_call.1} parent=11 // pred_check
          %p440 = pneg %p294
        $region42: #{tpu_custom_call.1} parent=11 // pred_check_branch
          %442 = sbr.rel (%p440) target = $region44
        $region43: #{tpu_custom_call.1} parent=11 // pred_region
          _
        $region44: #{tpu_custom_call.1} parent=11 // pred_fallthru
          _
      $region12: #{tpu_custom_call.1} parent=5 // pred_fallthru
        _
      %p443 = scmp.lt.s32.totalorder %s34, 2
      // Predicated region
      $region45: #{tpu_custom_call.1} parent=5 // pred_check
        %p444 = pneg %p443
      $region46: #{tpu_custom_call.1} parent=5 // pred_check_branch
        %446 = sbr.rel (%p444) target = $region48
      $region47: #{tpu_custom_call.1} parent=5 // pred_region
        // Predicated region
        $region49: #{tpu_custom_call.1} parent=47 // pred_check
          %p447 = pneg %p68
        $region50: #{tpu_custom_call.1} parent=47 // pred_check_branch
          %449 = sbr.rel (%p447) target = $region52
        $region51: #{tpu_custom_call.1} parent=47 // pred_region
          %s450 = sand.u32 %s58, 1
          %s451 = scalar_lea.sflag [#allocation4], %s450
          %s452 = sand.u32 %s58, 1
          %s453 = smul.addr %s452, 8
          %s454 = scalar_lea.vmem [#allocation3], %s453
          %s456 = ssub.s32 128, 128
          %457 = vsyncadd %s451, %s456
          %s458 = sadd.s32 %s42, %s41
          %s459 = smul.addr %s458, 128
          %s460 = scalar_lea.hbm %s0, %s459
          %s462 = sshll.u32 %s454, 4
          %s463 = int_to_ptr.vmem [resolvable:$true] %s462
          %465 = dma.hbm_to_vmem [thread:$0]  %s460, 128, %s463, %s451
        $region52: #{tpu_custom_call.1} parent=47 // pred_fallthru
          _
        // Predicated region
        $region53: #{tpu_custom_call.1} parent=47 // pred_check
          %p466 = pneg %p94
        $region54: #{tpu_custom_call.1} parent=47 // pred_check_branch
          %468 = sbr.rel (%p466) target = $region56
        $region55: #{tpu_custom_call.1} parent=47 // pred_region
          %s469 = sand.u32 %s34, 1
          %s470 = scalar_lea.sflag [#allocation7], %s469
          %s471 = sand.u32 %s84, 1
          %s472 = smul.addr %s471, 8
          %s473 = scalar_lea.vmem [#allocation6], %s472
          %s475 = ssub.s32 128, 128
          %476 = vsyncadd %s470, %s475
          %s477 = smul.addr %s41, 128
          %s478 = scalar_lea.hbm %s1, %s477
          %s480 = sshll.u32 %s473, 4
          %s481 = int_to_ptr.vmem [resolvable:$true] %s480
          %483 = dma.hbm_to_vmem [thread:$0]  %s478, 128, %s481, %s470
        $region56: #{tpu_custom_call.1} parent=47 // pred_fallthru
          _
        // Predicated region
        $region57: #{tpu_custom_call.1} parent=47 // pred_check
          %p484 = pneg %p120
        $region58: #{tpu_custom_call.1} parent=47 // pred_check_branch
          %486 = sbr.rel (%p484) target = $region60
        $region59: #{tpu_custom_call.1} parent=47 // pred_region
          %s487 = sand.u32 %s34, 1
          %s488 = scalar_lea.sflag [#allocation7], %s487
          %s489 = sand.u32 %s110, 1
          %s490 = smul.addr %s489, 8
          %s491 = scalar_lea.vmem [#allocation8], %s490
          %s493 = ssub.s32 128, 128
          %494 = vsyncadd %s488, %s493
          %s495 = smul.addr %s41, 128
          %s496 = scalar_lea.hbm %s2, %s495
          %s498 = sshll.u32 %s491, 4
          %s499 = int_to_ptr.vmem [resolvable:$true] %s498
          %501 = dma.hbm_to_vmem [thread:$0]  %s496, 128, %s499, %s488
        $region60: #{tpu_custom_call.1} parent=47 // pred_fallthru
          _
      $region48: #{tpu_custom_call.1} parent=5 // pred_fallthru
        _
      %p502 = scmp.le.s32.totalorder 1, %s34
      %p503 = scmp.lt.s32.totalorder %s34, 3
      %p504 = pnand %p502, %p503
      %p505 = pneg %p504
      // Predicated region
      $region61: #{tpu_custom_call.1} parent=5 // pred_check
        _
      $region62: #{tpu_custom_call.1} parent=5 // pred_check_branch
        %507 = sbr.rel (%p504) target = $region64
      $region63: #{tpu_custom_call.1} parent=5 // pred_region
        %s508 = ssub.s32 %s34, 1
        %s509 = sand.u32 %s61, 1
        %s510 = scalar_lea.sflag [#allocation4], %s509
        %s511 = sand.u32 %s61, 1
        %s512 = smul.addr %s511, 8
        %s513 = scalar_lea.vmem [#allocation3], %s512
        // Predicated region
        $region65: #{tpu_custom_call.1} parent=63 // pred_check
          %p514 = pneg %p74
        $region66: #{tpu_custom_call.1} parent=63 // pred_check_branch
          %516 = sbr.rel (%p514) target = $region68
        $region67: #{tpu_custom_call.1} parent=63 // pred_region
          %517 = dma.done %s510, 128
        $region68: #{tpu_custom_call.1} parent=63 // pred_fallthru
          _
        %s518 = sand.u32 %s39, 1
        %s519 = scalar_lea.sflag [#allocation7], %s518
        %s520 = sand.u32 %s87, 1
        %s521 = smul.addr %s520, 8
        %s522 = scalar_lea.vmem [#allocation6], %s521
        // Predicated region
        $region69: #{tpu_custom_call.1} parent=63 // pred_check
          %p523 = pneg %p100
        $region70: #{tpu_custom_call.1} parent=63 // pred_check_branch
          %525 = sbr.rel (%p523) target = $region72
        $region71: #{tpu_custom_call.1} parent=63 // pred_region
          %526 = dma.done %s519, 128
        $region72: #{tpu_custom_call.1} parent=63 // pred_fallthru
          _
        %s527 = sand.u32 %s39, 1
        %s528 = scalar_lea.sflag [#allocation7], %s527
        %s529 = sand.u32 %s113, 1
        %s530 = smul.addr %s529, 8
        %s531 = scalar_lea.vmem [#allocation8], %s530
        // Predicated region
        $region73: #{tpu_custom_call.1} parent=63 // pred_check
          %p532 = pneg %p126
        $region74: #{tpu_custom_call.1} parent=63 // pred_check_branch
          %534 = sbr.rel (%p532) target = $region76
        $region75: #{tpu_custom_call.1} parent=63 // pred_region
          %535 = dma.done %s528, 128
        $region76: #{tpu_custom_call.1} parent=63 // pred_fallthru
          _
        // Predicated region
        $region77: #{tpu_custom_call.1} parent=63 // pred_check
          %p536 = pneg %p147
        $region78: #{tpu_custom_call.1} parent=63 // pred_check_branch
          %538 = sbr.rel (%p536) target = $region80
        $region79: #{tpu_custom_call.1} parent=63 // pred_region
          %539 = dma.done [#allocation10], 256
        $region80: #{tpu_custom_call.1} parent=63 // pred_fallthru
          _
        // Predicated region
        $region81: #{tpu_custom_call.1} parent=63 // pred_check
          %p540 = pneg %p168
        $region82: #{tpu_custom_call.1} parent=63 // pred_check_branch
          %542 = sbr.rel (%p540) target = $region84
        $region83: #{tpu_custom_call.1} parent=63 // pred_region
          %543 = dma.done [#allocation10], 16
        $region84: #{tpu_custom_call.1} parent=63 // pred_fallthru
          _
        // Predicated region
        $region85: #{tpu_custom_call.1} parent=63 // pred_check
          %p544 = pneg %p189
        $region86: #{tpu_custom_call.1} parent=63 // pred_check_branch
          %546 = sbr.rel (%p544) target = $region88
        $region87: #{tpu_custom_call.1} parent=63 // pred_region
          %547 = dma.done [#allocation13], 256
        $region88: #{tpu_custom_call.1} parent=63 // pred_fallthru
          _
        // Predicated region
        $region89: #{tpu_custom_call.1} parent=63 // pred_check
          %p548 = pneg %p210
        $region90: #{tpu_custom_call.1} parent=63 // pred_check_branch
          %550 = sbr.rel (%p548) target = $region92
        $region91: #{tpu_custom_call.1} parent=63 // pred_region
          %551 = dma.done [#allocation13], 16
        $region92: #{tpu_custom_call.1} parent=63 // pred_fallthru
          _
        // Predicated region
        $region93: #{tpu_custom_call.1} parent=63 // pred_check
          %p552 = pneg %p231
        $region94: #{tpu_custom_call.1} parent=63 // pred_check_branch
          %554 = sbr.rel (%p552) target = $region96
        $region95: #{tpu_custom_call.1} parent=63 // pred_region
          %555 = dma.done [#allocation16], 256
        $region96: #{tpu_custom_call.1} parent=63 // pred_fallthru
          _
        // Predicated region
        $region97: #{tpu_custom_call.1} parent=63 // pred_check
          %p556 = pneg %p252
        $region98: #{tpu_custom_call.1} parent=63 // pred_check_branch
          %558 = sbr.rel (%p556) target = $region100
        $region99: #{tpu_custom_call.1} parent=63 // pred_region
          %559 = dma.done [#allocation16], 16
        $region100: #{tpu_custom_call.1} parent=63 // pred_fallthru
          _
        %s560 = sand.u32 %s61, 1
        %s561 = scalar_lea.sflag [#allocation4], %s560
        %s562 = sand.u32 %s61, 1
        %s563 = smul.addr %s562, 8
        %s564 = scalar_lea.vmem [#allocation3], %s563
        %p565 = pneg %p74
        %p566 = pneg %p71
        %s567 = sand.u32 %s39, 1
        %s568 = scalar_lea.sflag [#allocation7], %s567
        %s569 = sand.u32 %s87, 1
        %s570 = smul.addr %s569, 8
        %s571 = scalar_lea.vmem [#allocation6], %s570
        %p572 = pneg %p100
        %p573 = pneg %p97
        %s574 = sand.u32 %s39, 1
        %s575 = scalar_lea.sflag [#allocation7], %s574
        %s576 = sand.u32 %s113, 1
        %s577 = smul.addr %s576, 8
        %s578 = scalar_lea.vmem [#allocation8], %s577
        %p579 = pneg %p126
        %p580 = pneg %p123
        %p581 = pneg %p147
        %p582 = pneg %p144
        %p583 = pneg %p168
        %p584 = pneg %p165
        %p585 = pneg %p189
        %p586 = pneg %p186
        %p587 = pneg %p210
        %p588 = pneg %p207
        %p589 = pneg %p231
        %p590 = pneg %p228
        %p591 = pneg %p252
        %p592 = pneg %p249
        %p593 = pneg %p273
        %p594 = pneg %p270
        %p595 = pneg %p294
        %p596 = pneg %p291
        %p597 = pneg %p322
        %p598 = pneg %p319
        %s599 = sand.u32 %s309, 1
        %s600 = scalar_lea.sflag [#allocation5], %s599
        %s601 = sand.u32 %s309, 1
        %s602 = smul.addr %s601, 8
        %s603 = scalar_lea.vmem [#allocation18], %s602
        %p604 = pneg %p350
        %p605 = pneg %p347
        %s606 = sand.u32 %s337, 1
        %s607 = scalar_lea.sflag [#allocation20], %s606
        %s608 = sand.u32 %s337, 1
        %s609 = smul.addr %s608, 32
        %s610 = scalar_lea.vmem [#allocation19], %s609
        %p612 = scmp.eq.s32.totalorder %s44, 0
        // Predicated region
        $region101: #{tpu_custom_call.1} parent=63 // pred_check
          %p613 = pneg %p612
        $region102: #{tpu_custom_call.1} parent=63 // pred_check_branch
          %615 = sbr.rel (%p613) target = $region104
        $region103: #{tpu_custom_call.1} parent=63 // pred_region
          %v616 = vld [vmem:[%s522] sm:$0xff]
          %v617 = vpack.c.bf16 %v616, %v616
          %v618 = vld [vmem:[%s531] sm:$0xff]
          %v619 = vpack.c.bf16 %v618, %v618
          %v620 = vld [vmem:[#allocation12] sm:$0xf]
          %v621 = vld [vmem:[#allocation12 + $0x4] sm:$0xf]
          %v622 = vld [vmem:[#allocation12 + $0x8] sm:$0xf]
          %v623 = vld [vmem:[#allocation12 + $0xc] sm:$0xf]
          %v624 = vld [vmem:[#allocation14] sm:$0x1]
          %v626 = vlaneseq
          %v627 = vshrl.u32 %v626, 7
          %v628 = vsub.s32 0, %v627
          %v629 = vrot.slane %v624, %v628
          %v635 = vunpack.c.l.b16 %v620
          %v636 = vunpack.c.l.b16 %v621
          %v637 = vunpack.c.l.b16 %v622
          %v638 = vunpack.c.l.b16 %v623
          %v639 = vpack.c.b16 %v636, %v635
          %v640 = vpack.c.b16 %v638, %v637
          %vm643 = vcmask 261120
          %v645 = vsel %vm643, %v617, 0
          %647 = vmatprep.subr.bf16.mxu0 0
          %648 = vmatpush1.bf16.msra.mxu0 0
          %649 = vmatprep.subr.bf16.mxu0 0
          %650 = vmatpush1.bf16.msra.mxu0 0
          %651 = vmatprep.subr.bf16.mxu0 0
          %652 = vmatpush1.bf16.msra.mxu0 0
          %653 = vmatprep.subr.bf16.mxu0 0
          %654 = vmatpush1.bf16.msra.mxu0 0
          %655 = vmatprep.subr.bf16.mxu0 0
          %656 = vmatpush1.bf16.msra.mxu0 0
          %657 = vmatprep.subr.bf16.mxu0 0
          %658 = vmatpush1.bf16.msra.mxu0 0
          %659 = vmatprep.subr.bf16.mxu0 0
          %660 = vmatpush1.bf16.msra.mxu0 %v640
          %661 = vmatprep.subr.bf16.mxu0 0
          %662 = vmatpush1.bf16.msra.mxu0 %v639
          %663 = vmatprep.subr.bf16.mxu0 0
          %664 = vmatpush2.bf16.msra.mxu0 0
          %665 = vmatprep.subr.bf16.mxu0 0
          %666 = vmatpush2.bf16.msra.mxu0 0
          %667 = vmatprep.subr.bf16.mxu0 0
          %668 = vmatpush2.bf16.msra.mxu0 0
          %669 = vmatprep.subr.bf16.mxu0 0
          %670 = vmatpush2.bf16.msra.mxu0 0
          %671 = vmatprep.subr.bf16.mxu0 0
          %672 = vmatpush2.bf16.msra.mxu0 0
          %673 = vmatprep.subr.bf16.mxu0 0
          %674 = vmatpush2.bf16.msra.mxu0 0
          %675 = vmatprep.subr.bf16.mxu0 0
          %676 = vmatpush2.bf16.msra.mxu0 0
          %677 = vmatprep.subr.bf16.mxu0 0
          %678 = vmatpush2.bf16.msra.mxu0 0
          %679 = vmatprep.mubr.bf16.mxu0 0
          %680 = vmatmul.mubr.bf16.gmra.mxu0 %v645
          %v681 = vpop.f32.mrf.mxu0
          %v682 = vadd.f32 %v629, %v681
          %v683 = vpop.f32.mrf.mxu0
          %v684 = vpop.f32.mrf.mxu0
          %v685 = vpop.f32.mrf.mxu0
          %686 = vdwg.mxu0
          %v687 = vld [vmem:[#allocation15] sm:$0xf]
          %v688 = vld [vmem:[#allocation15 + $0x4] sm:$0xf]
          %v689 = vld [vmem:[#allocation15 + $0x8] sm:$0xf]
          %v690 = vld [vmem:[#allocation15 + $0xc] sm:$0xf]
          %v691 = vld [vmem:[#allocation17] sm:$0x1]
          %v693 = vlaneseq
          %v694 = vshrl.u32 %v693, 7
          %v695 = vsub.s32 0, %v694
          %v696 = vrot.slane %v691, %v695
          %v702 = vunpack.c.l.b16 %v687
          %v703 = vunpack.c.l.b16 %v688
          %v704 = vunpack.c.l.b16 %v689
          %v705 = vunpack.c.l.b16 %v690
          %v706 = vpack.c.b16 %v703, %v702
          %v707 = vpack.c.b16 %v705, %v704
          %v711 = vsel %vm643, %v619, 0
          %713 = vmatprep.subr.bf16.mxu0 0
          %714 = vmatpush1.bf16.msra.mxu0 0
          %715 = vmatprep.subr.bf16.mxu0 0
          %716 = vmatpush1.bf16.msra.mxu0 0
          %717 = vmatprep.subr.bf16.mxu0 0
          %718 = vmatpush1.bf16.msra.mxu0 0
          %719 = vmatprep.subr.bf16.mxu0 0
          %720 = vmatpush1.bf16.msra.mxu0 0
          %721 = vmatprep.subr.bf16.mxu0 0
          %722 = vmatpush1.bf16.msra.mxu0 0
          %723 = vmatprep.subr.bf16.mxu0 0
          %724 = vmatpush1.bf16.msra.mxu0 0
          %725 = vmatprep.subr.bf16.mxu0 0
          %726 = vmatpush1.bf16.msra.mxu0 %v707
          %727 = vmatprep.subr.bf16.mxu0 0
          %728 = vmatpush1.bf16.msra.mxu0 %v706
          %729 = vmatprep.subr.bf16.mxu0 0
          %730 = vmatpush2.bf16.msra.mxu0 0
          %731 = vmatprep.subr.bf16.mxu0 0
          %732 = vmatpush2.bf16.msra.mxu0 0
          %733 = vmatprep.subr.bf16.mxu0 0
          %734 = vmatpush2.bf16.msra.mxu0 0
          %735 = vmatprep.subr.bf16.mxu0 0
          %736 = vmatpush2.bf16.msra.mxu0 0
          %737 = vmatprep.subr.bf16.mxu0 0
          %738 = vmatpush2.bf16.msra.mxu0 0
          %739 = vmatprep.subr.bf16.mxu0 0
          %740 = vmatpush2.bf16.msra.mxu0 0
          %741 = vmatprep.subr.bf16.mxu0 0
          %742 = vmatpush2.bf16.msra.mxu0 0
          %743 = vmatprep.subr.bf16.mxu0 0
          %744 = vmatpush2.bf16.msra.mxu0 0
          %745 = vmatprep.mubr.bf16.mxu0 0
          %746 = vmatmul.mubr.bf16.gmra.mxu0 %v711
          %v747 = vpop.f32.mrf.mxu0
          %v748 = vadd.f32 %v696, %v747
          %v749 = vpop.f32.mrf.mxu0
          %v750 = vpop.f32.mrf.mxu0
          %v751 = vpop.f32.mrf.mxu0
          %752 = vdwg.mxu0
          %754 = vrot.lane.b32.xlu0 %v682, 120
          %v755 = vpop.permute.xlu0 %754
          %757 = vrot.lane.b32.xlu0 %v682, 112
          %v758 = vpop.permute.xlu0 %757
          %760 = vrot.lane.b32.xlu0 %v682, 104
          %v761 = vpop.permute.xlu0 %760
          %v763 = vcombine.low %v682, %v758
          %v764 = vcombine.high %v682, %v758
          %v766 = vunpack.c.l.s4 1983009808
          %v767 = vunpack.c.0.s8 %v766
          %v768 = vlaneseq
          %v769 = vshrl.u32 %v768, 7
          %v770 = vsub.s32 %v767, %v769
          %v771 = vrot.slane %v763, %v770
          %v773 = vunpack.c.l.s4 1983009808
          %v774 = vunpack.c.0.s8 %v773
          %v775 = vlaneseq
          %v776 = vshrl.u32 %v775, 7
          %v777 = vsub.s32 %v774, %v776
          %v778 = vrot.slane %v764, %v777
          %v779 = vcombine.low %v755, %v761
          %v780 = vcombine.high %v755, %v761
          %v782 = vunpack.c.l.s4 1983009808
          %v783 = vunpack.c.0.s8 %v782
          %v784 = vlaneseq
          %v785 = vshrl.u32 %v784, 7
          %v786 = vsub.s32 %v783, %v785
          %v787 = vrot.slane %v779, %v786
          %v789 = vunpack.c.l.s4 1983009808
          %v790 = vunpack.c.0.s8 %v789
          %v791 = vlaneseq
          %v792 = vshrl.u32 %v791, 7
          %v793 = vsub.s32 %v790, %v792
          %v794 = vrot.slane %v780, %v793
          %v795 = vcombine.low %v771, %v787
          %v796 = vcombine.high %v771, %v787
          %v798 = vunpack.c.l.s4 1934713408
          %v799 = vunpack.c.0.s8 %v798
          %v800 = vlaneseq
          %v801 = vshrl.u32 %v800, 7
          %v802 = vsub.s32 %v799, %v801
          %v803 = vrot.slane %v795, %v802
          %v805 = vunpack.c.l.s4 1934713408
          %v806 = vunpack.c.0.s8 %v805
          %v807 = vlaneseq
          %v808 = vshrl.u32 %v807, 7
          %v809 = vsub.s32 %v806, %v808
          %v810 = vrot.slane %v796, %v809
          %v811 = vcombine.low %v778, %v794
          %v812 = vcombine.high %v778, %v794
          %v814 = vunpack.c.l.s4 1934713408
          %v815 = vunpack.c.0.s8 %v814
          %v816 = vlaneseq
          %v817 = vshrl.u32 %v816, 7
          %v818 = vsub.s32 %v815, %v817
          %v819 = vrot.slane %v811, %v818
          %v821 = vunpack.c.l.s4 1934713408
          %v822 = vunpack.c.0.s8 %v821
          %v823 = vlaneseq
          %v824 = vshrl.u32 %v823, 7
          %v825 = vsub.s32 %v822, %v824
          %v826 = vrot.slane %v812, %v825
          %v827 = vcombine.high %v803, 0.0
          %v828 = vcombine.high %v810, 0.0
          %v829 = vcombine.high %v819, 0.0
          %v830 = vcombine.high %v826, 0.0
          %v831 = vcombine.low %v803, %v810
          %v833 = vunpack.c.l.s4 1983009808
          %v834 = vunpack.c.0.s8 %v833
          %v835 = vlaneseq
          %v836 = vshrl.u32 %v835, 7
          %v837 = vsub.s32 %v834, %v836
          %v838 = vrot.slane %v831, %v837
          %v839 = vcombine.low %v827, %v828
          %v841 = vunpack.c.l.s4 1983009808
          %v842 = vunpack.c.0.s8 %v841
          %v843 = vlaneseq
          %v844 = vshrl.u32 %v843, 7
          %v845 = vsub.s32 %v842, %v844
          %v846 = vrot.slane %v839, %v845
          %v847 = vcombine.low %v819, %v826
          %v849 = vunpack.c.l.s4 1983009808
          %v850 = vunpack.c.0.s8 %v849
          %v851 = vlaneseq
          %v852 = vshrl.u32 %v851, 7
          %v853 = vsub.s32 %v850, %v852
          %v854 = vrot.slane %v847, %v853
          %v855 = vcombine.low %v829, %v830
          %v857 = vunpack.c.l.s4 1983009808
          %v858 = vunpack.c.0.s8 %v857
          %v859 = vlaneseq
          %v860 = vshrl.u32 %v859, 7
          %v861 = vsub.s32 %v858, %v860
          %v862 = vrot.slane %v855, %v861
          %v863 = vcombine.low %v838, %v846
          %v864 = vcombine.high %v838, %v846
          %v866 = vunpack.c.l.s4 1934713408
          %v867 = vunpack.c.0.s8 %v866
          %v868 = vlaneseq
          %v869 = vshrl.u32 %v868, 7
          %v870 = vsub.s32 %v867, %v869
          %v871 = vrot.slane %v863, %v870
          %v873 = vunpack.c.l.s4 1934713408
          %v874 = vunpack.c.0.s8 %v873
          %v875 = vlaneseq
          %v876 = vshrl.u32 %v875, 7
          %v877 = vsub.s32 %v874, %v876
          %v878 = vrot.slane %v864, %v877
          %v879 = vcombine.low %v854, %v862
          %v880 = vcombine.high %v854, %v862
          %v882 = vunpack.c.l.s4 1934713408
          %v883 = vunpack.c.0.s8 %v882
          %v884 = vlaneseq
          %v885 = vshrl.u32 %v884, 7
          %v886 = vsub.s32 %v883, %v885
          %v887 = vrot.slane %v879, %v886
          %v889 = vunpack.c.l.s4 1934713408
          %v890 = vunpack.c.0.s8 %v889
          %v891 = vlaneseq
          %v892 = vshrl.u32 %v891, 7
          %v893 = vsub.s32 %v890, %v892
          %v894 = vrot.slane %v880, %v893
          %v895 = vcombine.low %v871, %v887
          %v896 = vcombine.high %v871, %v887
          %v897 = vcombine.low %v878, %v894
          %v898 = vcombine.high %v878, %v894
          %v899 = vpack.c.bf16 %v895, %v895
          %v900 = vpack.c.bf16 %v896, %v896
          %v901 = vpack.c.bf16 %v897, %v897
          %v902 = vpack.c.bf16 %v898, %v898
          %vm903 = vcmask 60416
          %904 = vst.msk [vmem:[#allocation2] sm:$0xf] %vm903, %v899
          %905 = vst.msk [vmem:[#allocation2 + $0x4] sm:$0xf] %vm903, %v900
          %906 = vst.msk [vmem:[#allocation2 + $0x8] sm:$0xf] %vm903, %v901
          %907 = vst.msk [vmem:[#allocation2 + $0xc] sm:$0xf] %vm903, %v902
          %909 = vrot.lane.b32.xlu0 %v748, 120
          %v910 = vpop.permute.xlu0 %909
          %912 = vrot.lane.b32.xlu0 %v748, 112
          %v913 = vpop.permute.xlu0 %912
          %915 = vrot.lane.b32.xlu0 %v748, 104
          %v916 = vpop.permute.xlu0 %915
          %v918 = vcombine.low %v748, %v913
          %v919 = vcombine.high %v748, %v913
          %v921 = vunpack.c.l.s4 1983009808
          %v922 = vunpack.c.0.s8 %v921
          %v923 = vlaneseq
          %v924 = vshrl.u32 %v923, 7
          %v925 = vsub.s32 %v922, %v924
          %v926 = vrot.slane %v918, %v925
          %v928 = vunpack.c.l.s4 1983009808
          %v929 = vunpack.c.0.s8 %v928
          %v930 = vlaneseq
          %v931 = vshrl.u32 %v930, 7
          %v932 = vsub.s32 %v929, %v931
          %v933 = vrot.slane %v919, %v932
          %v934 = vcombine.low %v910, %v916
          %v935 = vcombine.high %v910, %v916
          %v937 = vunpack.c.l.s4 1983009808
          %v938 = vunpack.c.0.s8 %v937
          %v939 = vlaneseq
          %v940 = vshrl.u32 %v939, 7
          %v941 = vsub.s32 %v938, %v940
          %v942 = vrot.slane %v934, %v941
          %v944 = vunpack.c.l.s4 1983009808
          %v945 = vunpack.c.0.s8 %v944
          %v946 = vlaneseq
          %v947 = vshrl.u32 %v946, 7
          %v948 = vsub.s32 %v945, %v947
          %v949 = vrot.slane %v935, %v948
          %v950 = vcombine.low %v926, %v942
          %v951 = vcombine.high %v926, %v942
          %v953 = vunpack.c.l.s4 1934713408
          %v954 = vunpack.c.0.s8 %v953
          %v955 = vlaneseq
          %v956 = vshrl.u32 %v955, 7
          %v957 = vsub.s32 %v954, %v956
          %v958 = vrot.slane %v950, %v957
          %v960 = vunpack.c.l.s4 1934713408
          %v961 = vunpack.c.0.s8 %v960
          %v962 = vlaneseq
          %v963 = vshrl.u32 %v962, 7
          %v964 = vsub.s32 %v961, %v963
          %v965 = vrot.slane %v951, %v964
          %v966 = vcombine.low %v933, %v949
          %v967 = vcombine.high %v933, %v949
          %v969 = vunpack.c.l.s4 1934713408
          %v970 = vunpack.c.0.s8 %v969
          %v971 = vlaneseq
          %v972 = vshrl.u32 %v971, 7
          %v973 = vsub.s32 %v970, %v972
          %v974 = vrot.slane %v966, %v973
          %v976 = vunpack.c.l.s4 1934713408
          %v977 = vunpack.c.0.s8 %v976
          %v978 = vlaneseq
          %v979 = vshrl.u32 %v978, 7
          %v980 = vsub.s32 %v977, %v979
          %v981 = vrot.slane %v967, %v980
          %v982 = vcombine.high %v958, 0.0
          %v983 = vcombine.high %v965, 0.0
          %v984 = vcombine.high %v974, 0.0
          %v985 = vcombine.high %v981, 0.0
          %v986 = vcombine.low %v958, %v965
          %v988 = vunpack.c.l.s4 1983009808
          %v989 = vunpack.c.0.s8 %v988
          %v990 = vlaneseq
          %v991 = vshrl.u32 %v990, 7
          %v992 = vsub.s32 %v989, %v991
          %v993 = vrot.slane %v986, %v992
          %v994 = vcombine.low %v982, %v983
          %v996 = vunpack.c.l.s4 1983009808
          %v997 = vunpack.c.0.s8 %v996
          %v998 = vlaneseq
          %v999 = vshrl.u32 %v998, 7
          %v1000 = vsub.s32 %v997, %v999
          %v1001 = vrot.slane %v994, %v1000
          %v1002 = vcombine.low %v974, %v981
          %v1004 = vunpack.c.l.s4 1983009808
          %v1005 = vunpack.c.0.s8 %v1004
          %v1006 = vlaneseq
          %v1007 = vshrl.u32 %v1006, 7
          %v1008 = vsub.s32 %v1005, %v1007
          %v1009 = vrot.slane %v1002, %v1008
          %v1010 = vcombine.low %v984, %v985
          %v1012 = vunpack.c.l.s4 1983009808
          %v1013 = vunpack.c.0.s8 %v1012
          %v1014 = vlaneseq
          %v1015 = vshrl.u32 %v1014, 7
          %v1016 = vsub.s32 %v1013, %v1015
          %v1017 = vrot.slane %v1010, %v1016
          %v1018 = vcombine.low %v993, %v1001
          %v1019 = vcombine.high %v993, %v1001
          %v1021 = vunpack.c.l.s4 1934713408
          %v1022 = vunpack.c.0.s8 %v1021
          %v1023 = vlaneseq
          %v1024 = vshrl.u32 %v1023, 7
          %v1025 = vsub.s32 %v1022, %v1024
          %v1026 = vrot.slane %v1018, %v1025
          %v1028 = vunpack.c.l.s4 1934713408
          %v1029 = vunpack.c.0.s8 %v1028
          %v1030 = vlaneseq
          %v1031 = vshrl.u32 %v1030, 7
          %v1032 = vsub.s32 %v1029, %v1031
          %v1033 = vrot.slane %v1019, %v1032
          %v1034 = vcombine.low %v1009, %v1017
          %v1035 = vcombine.high %v1009, %v1017
          %v1037 = vunpack.c.l.s4 1934713408
          %v1038 = vunpack.c.0.s8 %v1037
          %v1039 = vlaneseq
          %v1040 = vshrl.u32 %v1039, 7
          %v1041 = vsub.s32 %v1038, %v1040
          %v1042 = vrot.slane %v1034, %v1041
          %v1044 = vunpack.c.l.s4 1934713408
          %v1045 = vunpack.c.0.s8 %v1044
          %v1046 = vlaneseq
          %v1047 = vshrl.u32 %v1046, 7
          %v1048 = vsub.s32 %v1045, %v1047
          %v1049 = vrot.slane %v1035, %v1048
          %v1050 = vcombine.low %v1026, %v1042
          %v1051 = vcombine.high %v1026, %v1042
          %v1052 = vcombine.low %v1033, %v1049
          %v1053 = vcombine.high %v1033, %v1049
          %v1054 = vpack.c.bf16 %v1050, %v1050
          %v1055 = vpack.c.bf16 %v1051, %v1051
          %v1056 = vpack.c.bf16 %v1052, %v1052
          %v1057 = vpack.c.bf16 %v1053, %v1053
          %s1058 = scalar_lea.vmem [#allocation2], 16
          %1059 = vst.msk [vmem:[%s1058] sm:$0xf] %vm903, %v1054
          %1060 = vst.msk [vmem:[%s1058 + $0x4] sm:$0xf] %vm903, %v1055
          %1061 = vst.msk [vmem:[%s1058 + $0x8] sm:$0xf] %vm903, %v1056
          %1062 = vst.msk [vmem:[%s1058 + $0xc] sm:$0xf] %vm903, %v1057
        $region104: #{tpu_custom_call.1} parent=63 // pred_fallthru
          _
        %v1063 = vld [vmem:[%s513] sm:$0xff]
        %v1064 = vpack.c.bf16 %v1063, %v1063
        %v1065 = vld [vmem:[#allocation9] sm:$0xf]
        %v1066 = vld [vmem:[#allocation9 + $0x4] sm:$0xf]
        %v1067 = vld [vmem:[#allocation9 + $0x8] sm:$0xf]
        %v1068 = vld [vmem:[#allocation9 + $0xc] sm:$0xf]
        %v1069 = vld [vmem:[#allocation11] sm:$0x1]
        %v1071 = vlaneseq
        %v1072 = vshrl.u32 %v1071, 7
        %v1073 = vsub.s32 0, %v1072
        %v1074 = vrot.slane %v1069, %v1073
        %v1080 = vunpack.c.l.b16 %v1065
        %v1081 = vunpack.c.l.b16 %v1066
        %v1082 = vunpack.c.l.b16 %v1067
        %v1083 = vunpack.c.l.b16 %v1068
        %v1084 = vpack.c.b16 %v1081, %v1080
        %v1085 = vpack.c.b16 %v1083, %v1082
        %vm1088 = vcmask 261120
        %v1090 = vsel %vm1088, %v1064, 0
        %1092 = vmatprep.subr.bf16.mxu0 0
        %1093 = vmatpush1.bf16.msra.mxu0 0
        %1094 = vmatprep.subr.bf16.mxu0 0
        %1095 = vmatpush1.bf16.msra.mxu0 0
        %1096 = vmatprep.subr.bf16.mxu0 0
        %1097 = vmatpush1.bf16.msra.mxu0 0
        %1098 = vmatprep.subr.bf16.mxu0 0
        %1099 = vmatpush1.bf16.msra.mxu0 0
        %1100 = vmatprep.subr.bf16.mxu0 0
        %1101 = vmatpush1.bf16.msra.mxu0 0
        %1102 = vmatprep.subr.bf16.mxu0 0
        %1103 = vmatpush1.bf16.msra.mxu0 0
        %1104 = vmatprep.subr.bf16.mxu0 0
        %1105 = vmatpush1.bf16.msra.mxu0 %v1085
        %1106 = vmatprep.subr.bf16.mxu0 0
        %1107 = vmatpush1.bf16.msra.mxu0 %v1084
        %1108 = vmatprep.subr.bf16.mxu0 0
        %1109 = vmatpush2.bf16.msra.mxu0 0
        %1110 = vmatprep.subr.bf16.mxu0 0
        %1111 = vmatpush2.bf16.msra.mxu0 0
        %1112 = vmatprep.subr.bf16.mxu0 0
        %1113 = vmatpush2.bf16.msra.mxu0 0
        %1114 = vmatprep.subr.bf16.mxu0 0
        %1115 = vmatpush2.bf16.msra.mxu0 0
        %1116 = vmatprep.subr.bf16.mxu0 0
        %1117 = vmatpush2.bf16.msra.mxu0 0
        %1118 = vmatprep.subr.bf16.mxu0 0
        %1119 = vmatpush2.bf16.msra.mxu0 0
        %1120 = vmatprep.subr.bf16.mxu0 0
        %1121 = vmatpush2.bf16.msra.mxu0 0
        %1122 = vmatprep.subr.bf16.mxu0 0
        %1123 = vmatpush2.bf16.msra.mxu0 0
        %1124 = vmatprep.mubr.bf16.mxu0 0
        %1125 = vmatmul.mubr.bf16.gmra.mxu0 %v1090
        %v1126 = vpop.f32.mrf.mxu0
        %v1127 = vadd.f32 %v1074, %v1126
        %v1128 = vpop.f32.mrf.mxu0
        %v1129 = vpop.f32.mrf.mxu0
        %v1130 = vpop.f32.mrf.mxu0
        %1131 = vdwg.mxu0
        %1133 = vrot.lane.b32.xlu0 %v1127, 120
        %v1134 = vpop.permute.xlu0 %1133
        %1136 = vrot.lane.b32.xlu0 %v1127, 112
        %v1137 = vpop.permute.xlu0 %1136
        %1139 = vrot.lane.b32.xlu0 %v1127, 104
        %v1140 = vpop.permute.xlu0 %1139
        %v1142 = vcombine.low %v1127, %v1137
        %v1143 = vcombine.high %v1127, %v1137
        %v1145 = vunpack.c.l.s4 1983009808
        %v1146 = vunpack.c.0.s8 %v1145
        %v1147 = vlaneseq
        %v1148 = vshrl.u32 %v1147, 7
        %v1149 = vsub.s32 %v1146, %v1148
        %v1150 = vrot.slane %v1142, %v1149
        %v1152 = vunpack.c.l.s4 1983009808
        %v1153 = vunpack.c.0.s8 %v1152
        %v1154 = vlaneseq
        %v1155 = vshrl.u32 %v1154, 7
        %v1156 = vsub.s32 %v1153, %v1155
        %v1157 = vrot.slane %v1143, %v1156
        %v1158 = vcombine.low %v1134, %v1140
        %v1159 = vcombine.high %v1134, %v1140
        %v1161 = vunpack.c.l.s4 1983009808
        %v1162 = vunpack.c.0.s8 %v1161
        %v1163 = vlaneseq
        %v1164 = vshrl.u32 %v1163, 7
        %v1165 = vsub.s32 %v1162, %v1164
        %v1166 = vrot.slane %v1158, %v1165
        %v1168 = vunpack.c.l.s4 1983009808
        %v1169 = vunpack.c.0.s8 %v1168
        %v1170 = vlaneseq
        %v1171 = vshrl.u32 %v1170, 7
        %v1172 = vsub.s32 %v1169, %v1171
        %v1173 = vrot.slane %v1159, %v1172
        %v1174 = vcombine.low %v1150, %v1166
        %v1175 = vcombine.high %v1150, %v1166
        %v1177 = vunpack.c.l.s4 1934713408
        %v1178 = vunpack.c.0.s8 %v1177
        %v1179 = vlaneseq
        %v1180 = vshrl.u32 %v1179, 7
        %v1181 = vsub.s32 %v1178, %v1180
        %v1182 = vrot.slane %v1174, %v1181
        %v1184 = vunpack.c.l.s4 1934713408
        %v1185 = vunpack.c.0.s8 %v1184
        %v1186 = vlaneseq
        %v1187 = vshrl.u32 %v1186, 7
        %v1188 = vsub.s32 %v1185, %v1187
        %v1189 = vrot.slane %v1175, %v1188
        %v1190 = vcombine.low %v1157, %v1173
        %v1191 = vcombine.high %v1157, %v1173
        %v1193 = vunpack.c.l.s4 1934713408
        %v1194 = vunpack.c.0.s8 %v1193
        %v1195 = vlaneseq
        %v1196 = vshrl.u32 %v1195, 7
        %v1197 = vsub.s32 %v1194, %v1196
        %v1198 = vrot.slane %v1190, %v1197
        %v1200 = vunpack.c.l.s4 1934713408
        %v1201 = vunpack.c.0.s8 %v1200
        %v1202 = vlaneseq
        %v1203 = vshrl.u32 %v1202, 7
        %v1204 = vsub.s32 %v1201, %v1203
        %v1205 = vrot.slane %v1191, %v1204
        %v1206 = vcombine.high %v1182, 0.0
        %v1207 = vcombine.high %v1189, 0.0
        %v1208 = vcombine.high %v1198, 0.0
        %v1209 = vcombine.high %v1205, 0.0
        %v1210 = vcombine.low %v1182, %v1189
        %v1212 = vunpack.c.l.s4 1983009808
        %v1213 = vunpack.c.0.s8 %v1212
        %v1214 = vlaneseq
        %v1215 = vshrl.u32 %v1214, 7
        %v1216 = vsub.s32 %v1213, %v1215
        %v1217 = vrot.slane %v1210, %v1216
        %v1218 = vcombine.low %v1206, %v1207
        %v1220 = vunpack.c.l.s4 1983009808
        %v1221 = vunpack.c.0.s8 %v1220
        %v1222 = vlaneseq
        %v1223 = vshrl.u32 %v1222, 7
        %v1224 = vsub.s32 %v1221, %v1223
        %v1225 = vrot.slane %v1218, %v1224
        %v1226 = vcombine.low %v1198, %v1205
        %v1228 = vunpack.c.l.s4 1983009808
        %v1229 = vunpack.c.0.s8 %v1228
        %v1230 = vlaneseq
        %v1231 = vshrl.u32 %v1230, 7
        %v1232 = vsub.s32 %v1229, %v1231
        %v1233 = vrot.slane %v1226, %v1232
        %v1234 = vcombine.low %v1208, %v1209
        %v1236 = vunpack.c.l.s4 1983009808
        %v1237 = vunpack.c.0.s8 %v1236
        %v1238 = vlaneseq
        %v1239 = vshrl.u32 %v1238, 7
        %v1240 = vsub.s32 %v1237, %v1239
        %v1241 = vrot.slane %v1234, %v1240
        %v1242 = vcombine.low %v1217, %v1225
        %v1243 = vcombine.high %v1217, %v1225
        %v1245 = vunpack.c.l.s4 1934713408
        %v1246 = vunpack.c.0.s8 %v1245
        %v1247 = vlaneseq
        %v1248 = vshrl.u32 %v1247, 7
        %v1249 = vsub.s32 %v1246, %v1248
        %v1250 = vrot.slane %v1242, %v1249
        %v1252 = vunpack.c.l.s4 1934713408
        %v1253 = vunpack.c.0.s8 %v1252
        %v1254 = vlaneseq
        %v1255 = vshrl.u32 %v1254, 7
        %v1256 = vsub.s32 %v1253, %v1255
        %v1257 = vrot.slane %v1243, %v1256
        %v1258 = vcombine.low %v1233, %v1241
        %v1259 = vcombine.high %v1233, %v1241
        %v1261 = vunpack.c.l.s4 1934713408
        %v1262 = vunpack.c.0.s8 %v1261
        %v1263 = vlaneseq
        %v1264 = vshrl.u32 %v1263, 7
        %v1265 = vsub.s32 %v1262, %v1264
        %v1266 = vrot.slane %v1258, %v1265
        %v1268 = vunpack.c.l.s4 1934713408
        %v1269 = vunpack.c.0.s8 %v1268
        %v1270 = vlaneseq
        %v1271 = vshrl.u32 %v1270, 7
        %v1272 = vsub.s32 %v1269, %v1271
        %v1273 = vrot.slane %v1259, %v1272
        %v1274 = vcombine.low %v1250, %v1266
        %v1275 = vcombine.high %v1250, %v1266
        %v1276 = vcombine.low %v1257, %v1273
        %v1277 = vcombine.high %v1257, %v1273
        %v1278 = vpack.c.bf16 %v1274, %v1274
        %v1279 = vpack.c.bf16 %v1275, %v1275
        %v1280 = vpack.c.bf16 %v1276, %v1276
        %v1281 = vpack.c.bf16 %v1277, %v1277
        %v1282 = vld [vmem:[#allocation2] sm:$0xf]
        %v1283 = vld [vmem:[#allocation2 + $0x4] sm:$0xf]
        %v1284 = vld [vmem:[#allocation2 + $0x8] sm:$0xf]
        %v1285 = vld [vmem:[#allocation2 + $0xc] sm:$0xf]
        %s1286 = scalar_lea.vmem [#allocation2], 16
        %v1287 = vld [vmem:[%s1286] sm:$0xf]
        %v1288 = vld [vmem:[%s1286 + $0x4] sm:$0xf]
        %v1289 = vld [vmem:[%s1286 + $0x8] sm:$0xf]
        %v1290 = vld [vmem:[%s1286 + $0xc] sm:$0xf]
        %vm1291 = vcmask 64512
        %v1293 = vsel %vm1291, %v1278, 0
        %v1296 = vsel %vm1291, %v1282, 0
        %1298 = vmatprep.subr.bf16.mxu0 0
        %1299 = vmatpush1.bf16.xpose.msra.mxu0 0
        %1300 = vmatprep.subr.bf16.mxu0 0
        %1301 = vmatpush1.bf16.xpose.msra.mxu0 0
        %1302 = vmatprep.subr.bf16.mxu0 0
        %1303 = vmatpush1.bf16.xpose.msra.mxu0 0
        %1304 = vmatprep.subr.bf16.mxu0 0
        %1305 = vmatpush1.bf16.xpose.msra.mxu0 0
        %1306 = vmatprep.subr.bf16.mxu0 0
        %1307 = vmatpush1.bf16.xpose.msra.mxu0 0
        %1308 = vmatprep.subr.bf16.mxu0 0
        %1309 = vmatpush1.bf16.xpose.msra.mxu0 0
        %1310 = vmatprep.subr.bf16.mxu0 0
        %1311 = vmatpush1.bf16.xpose.msra.mxu0 0
        %1312 = vmatprep.subr.bf16.mxu0 0
        %1313 = vmatpush1.bf16.xpose.msra.mxu0 %v1296
        %1314 = vmatprep.subr.bf16.mxu0 0
        %1315 = vmatpush2.bf16.xpose.msra.mxu0 0
        %1316 = vmatprep.subr.bf16.mxu0 0
        %1317 = vmatpush2.bf16.xpose.msra.mxu0 0
        %1318 = vmatprep.subr.bf16.mxu0 0
        %1319 = vmatpush2.bf16.xpose.msra.mxu0 0
        %1320 = vmatprep.subr.bf16.mxu0 0
        %1321 = vmatpush2.bf16.xpose.msra.mxu0 0
        %1322 = vmatprep.subr.bf16.mxu0 0
        %1323 = vmatpush2.bf16.xpose.msra.mxu0 0
        %1324 = vmatprep.subr.bf16.mxu0 0
        %1325 = vmatpush2.bf16.xpose.msra.mxu0 0
        %1326 = vmatprep.subr.bf16.mxu0 0
        %1327 = vmatpush2.bf16.xpose.msra.mxu0 0
        %1328 = vmatprep.subr.bf16.mxu0 0
        %1329 = vmatpush2.bf16.xpose.msra.mxu0 0
        %1330 = vmatprep.mubr.bf16.mxu0 0
        %1331 = vmatmul.mubr.bf16.gmra.mxu0 %v1293
        %v1332 = vpop.f32.mrf.mxu0
        %v1333 = vadd.f32 0.0, %v1332
        %v1334 = vpop.f32.mrf.mxu0
        %v1335 = vpop.f32.mrf.mxu0
        %v1336 = vpop.f32.mrf.mxu0
        %1337 = vdwg.mxu0
        %v1339 = vsel %vm1291, %v1279, 0
        %v1342 = vsel %vm1291, %v1283, 0
        %1344 = vmatprep.subr.bf16.mxu0 0
        %1345 = vmatpush1.bf16.xpose.msra.mxu0 0
        %1346 = vmatprep.subr.bf16.mxu0 0
        %1347 = vmatpush1.bf16.xpose.msra.mxu0 0
        %1348 = vmatprep.subr.bf16.mxu0 0
        %1349 = vmatpush1.bf16.xpose.msra.mxu0 0
        %1350 = vmatprep.subr.bf16.mxu0 0
        %1351 = vmatpush1.bf16.xpose.msra.mxu0 0
        %1352 = vmatprep.subr.bf16.mxu0 0
        %1353 = vmatpush1.bf16.xpose.msra.mxu0 0
        %1354 = vmatprep.subr.bf16.mxu0 0
        %1355 = vmatpush1.bf16.xpose.msra.mxu0 0
        %1356 = vmatprep.subr.bf16.mxu0 0
        %1357 = vmatpush1.bf16.xpose.msra.mxu0 0
        %1358 = vmatprep.subr.bf16.mxu0 0
        %1359 = vmatpush1.bf16.xpose.msra.mxu0 %v1342
        %1360 = vmatprep.subr.bf16.mxu0 0
        %1361 = vmatpush2.bf16.xpose.msra.mxu0 0
        %1362 = vmatprep.subr.bf16.mxu0 0
        %1363 = vmatpush2.bf16.xpose.msra.mxu0 0
        %1364 = vmatprep.subr.bf16.mxu0 0
        %1365 = vmatpush2.bf16.xpose.msra.mxu0 0
        %1366 = vmatprep.subr.bf16.mxu0 0
        %1367 = vmatpush2.bf16.xpose.msra.mxu0 0
        %1368 = vmatprep.subr.bf16.mxu0 0
        %1369 = vmatpush2.bf16.xpose.msra.mxu0 0
        %1370 = vmatprep.subr.bf16.mxu0 0
        %1371 = vmatpush2.bf16.xpose.msra.mxu0 0
        %1372 = vmatprep.subr.bf16.mxu0 0
        %1373 = vmatpush2.bf16.xpose.msra.mxu0 0
        %1374 = vmatprep.subr.bf16.mxu0 0
        %1375 = vmatpush2.bf16.xpose.msra.mxu0 0
        %1376 = vmatprep.mubr.bf16.mxu0 0
        %1377 = vmatmul.mubr.bf16.gmra.mxu0 %v1339
        %v1378 = vpop.f32.mrf.mxu0
        %v1379 = vadd.f32 0.0, %v1378
        %v1380 = vpop.f32.mrf.mxu0
        %v1381 = vpop.f32.mrf.mxu0
        %v1382 = vpop.f32.mrf.mxu0
        %1383 = vdwg.mxu0
        %v1385 = vsel %vm1291, %v1280, 0
        %v1388 = vsel %vm1291, %v1284, 0
        %1390 = vmatprep.subr.bf16.mxu0 0
        %1391 = vmatpush1.bf16.xpose.msra.mxu0 0
        %1392 = vmatprep.subr.bf16.mxu0 0
        %1393 = vmatpush1.bf16.xpose.msra.mxu0 0
        %1394 = vmatprep.subr.bf16.mxu0 0
        %1395 = vmatpush1.bf16.xpose.msra.mxu0 0
        %1396 = vmatprep.subr.bf16.mxu0 0
        %1397 = vmatpush1.bf16.xpose.msra.mxu0 0
        %1398 = vmatprep.subr.bf16.mxu0 0
        %1399 = vmatpush1.bf16.xpose.msra.mxu0 0
        %1400 = vmatprep.subr.bf16.mxu0 0
        %1401 = vmatpush1.bf16.xpose.msra.mxu0 0
        %1402 = vmatprep.subr.bf16.mxu0 0
        %1403 = vmatpush1.bf16.xpose.msra.mxu0 0
        %1404 = vmatprep.subr.bf16.mxu0 0
        %1405 = vmatpush1.bf16.xpose.msra.mxu0 %v1388
        %1406 = vmatprep.subr.bf16.mxu0 0
        %1407 = vmatpush2.bf16.xpose.msra.mxu0 0
        %1408 = vmatprep.subr.bf16.mxu0 0
        %1409 = vmatpush2.bf16.xpose.msra.mxu0 0
        %1410 = vmatprep.subr.bf16.mxu0 0
        %1411 = vmatpush2.bf16.xpose.msra.mxu0 0
        %1412 = vmatprep.subr.bf16.mxu0 0
        %1413 = vmatpush2.bf16.xpose.msra.mxu0 0
        %1414 = vmatprep.subr.bf16.mxu0 0
        %1415 = vmatpush2.bf16.xpose.msra.mxu0 0
        %1416 = vmatprep.subr.bf16.mxu0 0
        %1417 = vmatpush2.bf16.xpose.msra.mxu0 0
        %1418 = vmatprep.subr.bf16.mxu0 0
        %1419 = vmatpush2.bf16.xpose.msra.mxu0 0
        %1420 = vmatprep.subr.bf16.mxu0 0
        %1421 = vmatpush2.bf16.xpose.msra.mxu0 0
        %1422 = vmatprep.mubr.bf16.mxu0 0
        %1423 = vmatmul.mubr.bf16.gmra.mxu0 %v1385
        %v1424 = vpop.f32.mrf.mxu0
        %v1425 = vadd.f32 0.0, %v1424
        %v1426 = vpop.f32.mrf.mxu0
        %v1427 = vpop.f32.mrf.mxu0
        %v1428 = vpop.f32.mrf.mxu0
        %1429 = vdwg.mxu0
        %v1431 = vsel %vm1291, %v1281, 0
        %v1434 = vsel %vm1291, %v1285, 0
        %1436 = vmatprep.subr.bf16.mxu0 0
        %1437 = vmatpush1.bf16.xpose.msra.mxu0 0
        %1438 = vmatprep.subr.bf16.mxu0 0
        %1439 = vmatpush1.bf16.xpose.msra.mxu0 0
        %1440 = vmatprep.subr.bf16.mxu0 0
        %1441 = vmatpush1.bf16.xpose.msra.mxu0 0
        %1442 = vmatprep.subr.bf16.mxu0 0
        %1443 = vmatpush1.bf16.xpose.msra.mxu0 0
        %1444 = vmatprep.subr.bf16.mxu0 0
        %1445 = vmatpush1.bf16.xpose.msra.mxu0 0
        %1446 = vmatprep.subr.bf16.mxu0 0
        %1447 = vmatpush1.bf16.xpose.msra.mxu0 0
        %1448 = vmatprep.subr.bf16.mxu0 0
        %1449 = vmatpush1.bf16.xpose.msra.mxu0 0
        %1450 = vmatprep.subr.bf16.mxu0 0
        %1451 = vmatpush1.bf16.xpose.msra.mxu0 %v1434
        %1452 = vmatprep.subr.bf16.mxu0 0
        %1453 = vmatpush2.bf16.xpose.msra.mxu0 0
        %1454 = vmatprep.subr.bf16.mxu0 0
        %1455 = vmatpush2.bf16.xpose.msra.mxu0 0
        %1456 = vmatprep.subr.bf16.mxu0 0
        %1457 = vmatpush2.bf16.xpose.msra.mxu0 0
        %1458 = vmatprep.subr.bf16.mxu0 0
        %1459 = vmatpush2.bf16.xpose.msra.mxu0 0
        %1460 = vmatprep.subr.bf16.mxu0 0
        %1461 = vmatpush2.bf16.xpose.msra.mxu0 0
        %1462 = vmatprep.subr.bf16.mxu0 0
        %1463 = vmatpush2.bf16.xpose.msra.mxu0 0
        %1464 = vmatprep.subr.bf16.mxu0 0
        %1465 = vmatpush2.bf16.xpose.msra.mxu0 0
        %1466 = vmatprep.subr.bf16.mxu0 0
        %1467 = vmatpush2.bf16.xpose.msra.mxu0 0
        %1468 = vmatprep.mubr.bf16.mxu0 0
        %1469 = vmatmul.mubr.bf16.gmra.mxu0 %v1431
        %v1470 = vpop.f32.mrf.mxu0
        %v1471 = vadd.f32 0.0, %v1470
        %v1472 = vpop.f32.mrf.mxu0
        %v1473 = vpop.f32.mrf.mxu0
        %v1474 = vpop.f32.mrf.mxu0
        %1475 = vdwg.mxu0
        %v1476 = vsel %vm1291, %v1333, -inf
        %1477 = vmax.xlane.f32.xlu0 %v1476
        %v1478 = vpop.xlane.xlu0 %1477
        %v1479 = vsel %vm1291, %v1379, -inf
        %1480 = vmax.xlane.f32.xlu0 %v1479
        %v1481 = vpop.xlane.xlu0 %1480
        %v1482 = vsel %vm1291, %v1425, -inf
        %1483 = vmax.xlane.f32.xlu0 %v1482
        %v1484 = vpop.xlane.xlu0 %1483
        %v1485 = vsel %vm1291, %v1471, -inf
        %1486 = vmax.xlane.f32.xlu0 %v1485
        %v1487 = vpop.xlane.xlu0 %1486
        %v1488 = vsub.f32 %v1333, %v1478
        %v1489 = vsub.f32 %v1379, %v1481
        %v1490 = vsub.f32 %v1425, %v1484
        %v1491 = vsub.f32 %v1471, %v1487
        %v1492 = vmul.f32 %v1488, 1.442695
        %v1493 = vpow.pop %v1492
        %v1494 = vmul.f32 %v1489, 1.442695
        %v1495 = vpow.pop %v1494
        %v1496 = vmul.f32 %v1490, 1.442695
        %v1497 = vpow.pop %v1496
        %v1498 = vmul.f32 %v1491, 1.442695
        %v1499 = vpow.pop %v1498
        %v1500 = vsel %vm1291, %v1493, 0.0
        %1501 = vadd.xlane.f32.xlu0 %v1500
        %v1502 = vpop.xlane.xlu0 %1501
        %v1503 = vsel %vm1291, %v1495, 0.0
        %1504 = vadd.xlane.f32.xlu0 %v1503
        %v1505 = vpop.xlane.xlu0 %1504
        %v1506 = vsel %vm1291, %v1497, 0.0
        %1507 = vadd.xlane.f32.xlu0 %v1506
        %v1508 = vpop.xlane.xlu0 %1507
        %v1509 = vsel %vm1291, %v1499, 0.0
        %1510 = vadd.xlane.f32.xlu0 %v1509
        %v1511 = vpop.xlane.xlu0 %1510
        %v1512 = vrcp.pop %v1502
        %v1513 = vmul.f32 1.0, %v1512
        %v1514 = vrcp.pop %v1505
        %v1515 = vmul.f32 1.0, %v1514
        %v1516 = vrcp.pop %v1508
        %v1517 = vmul.f32 1.0, %v1516
        %v1518 = vrcp.pop %v1511
        %v1519 = vmul.f32 1.0, %v1518
        %v1520 = vmul.f32 %v1493, %v1513
        %v1521 = vmul.f32 %v1495, %v1515
        %v1522 = vmul.f32 %v1497, %v1517
        %v1523 = vmul.f32 %v1499, %v1519
        %1524 = vst.msk [vmem:[%s610] sm:$0xff] %vm1291, %v1520
        %1525 = vst.msk [vmem:[%s610 + $0x8] sm:$0xff] %vm1291, %v1521
        %1526 = vst.msk [vmem:[%s610 + $0x10] sm:$0xff] %vm1291, %v1522
        %1527 = vst.msk [vmem:[%s610 + $0x18] sm:$0xff] %vm1291, %v1523
        %v1528 = vpack.c.bf16 %v1520, %v1520
        %v1529 = vpack.c.bf16 %v1521, %v1521
        %v1530 = vpack.c.bf16 %v1522, %v1522
        %v1531 = vpack.c.bf16 %v1523, %v1523
        %v1533 = vsel %vm1291, %v1528, 0
        %vm1535 = vcmask 1043456
        %v1537 = vsel %vm1535, %v1287, 0
        %1539 = vmatprep.subr.bf16.mxu0 0
        %1540 = vmatpush1.bf16.msra.mxu0 0
        %1541 = vmatprep.subr.bf16.mxu0 0
        %1542 = vmatpush1.bf16.msra.mxu0 0
        %1543 = vmatprep.subr.bf16.mxu0 0
        %1544 = vmatpush1.bf16.msra.mxu0 0
        %1545 = vmatprep.subr.bf16.mxu0 0
        %1546 = vmatpush1.bf16.msra.mxu0 0
        %1547 = vmatprep.subr.bf16.mxu0 0
        %1548 = vmatpush1.bf16.msra.mxu0 0
        %1549 = vmatprep.subr.bf16.mxu0 0
        %1550 = vmatpush1.bf16.msra.mxu0 0
        %1551 = vmatprep.subr.bf16.mxu0 0
        %1552 = vmatpush1.bf16.msra.mxu0 0
        %1553 = vmatprep.subr.bf16.mxu0 0
        %1554 = vmatpush1.bf16.msra.mxu0 %v1537
        %1555 = vmatprep.subr.bf16.mxu0 0
        %1556 = vmatpush2.bf16.msra.mxu0 0
        %1557 = vmatprep.subr.bf16.mxu0 0
        %1558 = vmatpush2.bf16.msra.mxu0 0
        %1559 = vmatprep.subr.bf16.mxu0 0
        %1560 = vmatpush2.bf16.msra.mxu0 0
        %1561 = vmatprep.subr.bf16.mxu0 0
        %1562 = vmatpush2.bf16.msra.mxu0 0
        %1563 = vmatprep.subr.bf16.mxu0 0
        %1564 = vmatpush2.bf16.msra.mxu0 0
        %1565 = vmatprep.subr.bf16.mxu0 0
        %1566 = vmatpush2.bf16.msra.mxu0 0
        %1567 = vmatprep.subr.bf16.mxu0 0
        %1568 = vmatpush2.bf16.msra.mxu0 0
        %1569 = vmatprep.subr.bf16.mxu0 0
        %1570 = vmatpush2.bf16.msra.mxu0 0
        %1571 = vmatprep.mubr.bf16.mxu0 0
        %1572 = vmatmul.mubr.bf16.gmra.mxu0 %v1533
        %v1573 = vpop.f32.mrf.mxu0
        %v1574 = vadd.f32 0.0, %v1573
        %v1575 = vpop.f32.mrf.mxu0
        %v1576 = vpop.f32.mrf.mxu0
        %v1577 = vpop.f32.mrf.mxu0
        %1578 = vdwg.mxu0
        %v1580 = vsel %vm1291, %v1529, 0
        %v1583 = vsel %vm1535, %v1288, 0
        %1585 = vmatprep.subr.bf16.mxu0 0
        %1586 = vmatpush1.bf16.msra.mxu0 0
        %1587 = vmatprep.subr.bf16.mxu0 0
        %1588 = vmatpush1.bf16.msra.mxu0 0
        %1589 = vmatprep.subr.bf16.mxu0 0
        %1590 = vmatpush1.bf16.msra.mxu0 0
        %1591 = vmatprep.subr.bf16.mxu0 0
        %1592 = vmatpush1.bf16.msra.mxu0 0
        %1593 = vmatprep.subr.bf16.mxu0 0
        %1594 = vmatpush1.bf16.msra.mxu0 0
        %1595 = vmatprep.subr.bf16.mxu0 0
        %1596 = vmatpush1.bf16.msra.mxu0 0
        %1597 = vmatprep.subr.bf16.mxu0 0
        %1598 = vmatpush1.bf16.msra.mxu0 0
        %1599 = vmatprep.subr.bf16.mxu0 0
        %1600 = vmatpush1.bf16.msra.mxu0 %v1583
        %1601 = vmatprep.subr.bf16.mxu0 0
        %1602 = vmatpush2.bf16.msra.mxu0 0
        %1603 = vmatprep.subr.bf16.mxu0 0
        %1604 = vmatpush2.bf16.msra.mxu0 0
        %1605 = vmatprep.subr.bf16.mxu0 0
        %1606 = vmatpush2.bf16.msra.mxu0 0
        %1607 = vmatprep.subr.bf16.mxu0 0
        %1608 = vmatpush2.bf16.msra.mxu0 0
        %1609 = vmatprep.subr.bf16.mxu0 0
        %1610 = vmatpush2.bf16.msra.mxu0 0
        %1611 = vmatprep.subr.bf16.mxu0 0
        %1612 = vmatpush2.bf16.msra.mxu0 0
        %1613 = vmatprep.subr.bf16.mxu0 0
        %1614 = vmatpush2.bf16.msra.mxu0 0
        %1615 = vmatprep.subr.bf16.mxu0 0
        %1616 = vmatpush2.bf16.msra.mxu0 0
        %1617 = vmatprep.mubr.bf16.mxu0 0
        %1618 = vmatmul.mubr.bf16.gmra.mxu0 %v1580
        %v1619 = vpop.f32.mrf.mxu0
        %v1620 = vadd.f32 0.0, %v1619
        %v1621 = vpop.f32.mrf.mxu0
        %v1622 = vpop.f32.mrf.mxu0
        %v1623 = vpop.f32.mrf.mxu0
        %1624 = vdwg.mxu0
        %v1626 = vsel %vm1291, %v1530, 0
        %v1629 = vsel %vm1535, %v1289, 0
        %1631 = vmatprep.subr.bf16.mxu0 0
        %1632 = vmatpush1.bf16.msra.mxu0 0
        %1633 = vmatprep.subr.bf16.mxu0 0
        %1634 = vmatpush1.bf16.msra.mxu0 0
        %1635 = vmatprep.subr.bf16.mxu0 0
        %1636 = vmatpush1.bf16.msra.mxu0 0
        %1637 = vmatprep.subr.bf16.mxu0 0
        %1638 = vmatpush1.bf16.msra.mxu0 0
        %1639 = vmatprep.subr.bf16.mxu0 0
        %1640 = vmatpush1.bf16.msra.mxu0 0
        %1641 = vmatprep.subr.bf16.mxu0 0
        %1642 = vmatpush1.bf16.msra.mxu0 0
        %1643 = vmatprep.subr.bf16.mxu0 0
        %1644 = vmatpush1.bf16.msra.mxu0 0
        %1645 = vmatprep.subr.bf16.mxu0 0
        %1646 = vmatpush1.bf16.msra.mxu0 %v1629
        %1647 = vmatprep.subr.bf16.mxu0 0
        %1648 = vmatpush2.bf16.msra.mxu0 0
        %1649 = vmatprep.subr.bf16.mxu0 0
        %1650 = vmatpush2.bf16.msra.mxu0 0
        %1651 = vmatprep.subr.bf16.mxu0 0
        %1652 = vmatpush2.bf16.msra.mxu0 0
        %1653 = vmatprep.subr.bf16.mxu0 0
        %1654 = vmatpush2.bf16.msra.mxu0 0
        %1655 = vmatprep.subr.bf16.mxu0 0
        %1656 = vmatpush2.bf16.msra.mxu0 0
        %1657 = vmatprep.subr.bf16.mxu0 0
        %1658 = vmatpush2.bf16.msra.mxu0 0
        %1659 = vmatprep.subr.bf16.mxu0 0
        %1660 = vmatpush2.bf16.msra.mxu0 0
        %1661 = vmatprep.subr.bf16.mxu0 0
        %1662 = vmatpush2.bf16.msra.mxu0 0
        %1663 = vmatprep.mubr.bf16.mxu0 0
        %1664 = vmatmul.mubr.bf16.gmra.mxu0 %v1626
        %v1665 = vpop.f32.mrf.mxu0
        %v1666 = vadd.f32 0.0, %v1665
        %v1667 = vpop.f32.mrf.mxu0
        %v1668 = vpop.f32.mrf.mxu0
        %v1669 = vpop.f32.mrf.mxu0
        %1670 = vdwg.mxu0
        %v1672 = vsel %vm1291, %v1531, 0
        %v1675 = vsel %vm1535, %v1290, 0
        %1677 = vmatprep.subr.bf16.mxu0 0
        %1678 = vmatpush1.bf16.msra.mxu0 0
        %1679 = vmatprep.subr.bf16.mxu0 0
        %1680 = vmatpush1.bf16.msra.mxu0 0
        %1681 = vmatprep.subr.bf16.mxu0 0
        %1682 = vmatpush1.bf16.msra.mxu0 0
        %1683 = vmatprep.subr.bf16.mxu0 0
        %1684 = vmatpush1.bf16.msra.mxu0 0
        %1685 = vmatprep.subr.bf16.mxu0 0
        %1686 = vmatpush1.bf16.msra.mxu0 0
        %1687 = vmatprep.subr.bf16.mxu0 0
        %1688 = vmatpush1.bf16.msra.mxu0 0
        %1689 = vmatprep.subr.bf16.mxu0 0
        %1690 = vmatpush1.bf16.msra.mxu0 0
        %1691 = vmatprep.subr.bf16.mxu0 0
        %1692 = vmatpush1.bf16.msra.mxu0 %v1675
        %1693 = vmatprep.subr.bf16.mxu0 0
        %1694 = vmatpush2.bf16.msra.mxu0 0
        %1695 = vmatprep.subr.bf16.mxu0 0
        %1696 = vmatpush2.bf16.msra.mxu0 0
        %1697 = vmatprep.subr.bf16.mxu0 0
        %1698 = vmatpush2.bf16.msra.mxu0 0
        %1699 = vmatprep.subr.bf16.mxu0 0
        %1700 = vmatpush2.bf16.msra.mxu0 0
        %1701 = vmatprep.subr.bf16.mxu0 0
        %1702 = vmatpush2.bf16.msra.mxu0 0
        %1703 = vmatprep.subr.bf16.mxu0 0
        %1704 = vmatpush2.bf16.msra.mxu0 0
        %1705 = vmatprep.subr.bf16.mxu0 0
        %1706 = vmatpush2.bf16.msra.mxu0 0
        %1707 = vmatprep.subr.bf16.mxu0 0
        %1708 = vmatpush2.bf16.msra.mxu0 0
        %1709 = vmatprep.mubr.bf16.mxu0 0
        %1710 = vmatmul.mubr.bf16.gmra.mxu0 %v1672
        %v1711 = vpop.f32.mrf.mxu0
        %v1712 = vadd.f32 0.0, %v1711
        %v1713 = vpop.f32.mrf.mxu0
        %v1714 = vpop.f32.mrf.mxu0
        %v1715 = vpop.f32.mrf.mxu0
        %1716 = vdwg.mxu0
        %v1717 = vcombine.low %v1574, %v1666
        %v1718 = vcombine.high %v1574, %v1666
        %v1720 = vunpack.c.l.s4 1983009808
        %v1721 = vunpack.c.0.s8 %v1720
        %v1722 = vlaneseq
        %v1723 = vshrl.u32 %v1722, 7
        %v1724 = vsub.s32 %v1721, %v1723
        %v1725 = vrot.slane %v1717, %v1724
        %v1727 = vunpack.c.l.s4 1983009808
        %v1728 = vunpack.c.0.s8 %v1727
        %v1729 = vlaneseq
        %v1730 = vshrl.u32 %v1729, 7
        %v1731 = vsub.s32 %v1728, %v1730
        %v1732 = vrot.slane %v1718, %v1731
        %v1733 = vcombine.low %v1620, %v1712
        %v1734 = vcombine.high %v1620, %v1712
        %v1736 = vunpack.c.l.s4 1983009808
        %v1737 = vunpack.c.0.s8 %v1736
        %v1738 = vlaneseq
        %v1739 = vshrl.u32 %v1738, 7
        %v1740 = vsub.s32 %v1737, %v1739
        %v1741 = vrot.slane %v1733, %v1740
        %v1743 = vunpack.c.l.s4 1983009808
        %v1744 = vunpack.c.0.s8 %v1743
        %v1745 = vlaneseq
        %v1746 = vshrl.u32 %v1745, 7
        %v1747 = vsub.s32 %v1744, %v1746
        %v1748 = vrot.slane %v1734, %v1747
        %v1749 = vcombine.low %v1725, %v1741
        %v1750 = vcombine.high %v1725, %v1741
        %v1752 = vunpack.c.l.s4 1934713408
        %v1753 = vunpack.c.0.s8 %v1752
        %v1754 = vlaneseq
        %v1755 = vshrl.u32 %v1754, 7
        %v1756 = vsub.s32 %v1753, %v1755
        %v1757 = vrot.slane %v1749, %v1756
        %v1759 = vunpack.c.l.s4 1934713408
        %v1760 = vunpack.c.0.s8 %v1759
        %v1761 = vlaneseq
        %v1762 = vshrl.u32 %v1761, 7
        %v1763 = vsub.s32 %v1760, %v1762
        %v1764 = vrot.slane %v1750, %v1763
        %v1765 = vcombine.low %v1732, %v1748
        %v1766 = vcombine.high %v1732, %v1748
        %v1768 = vunpack.c.l.s4 1934713408
        %v1769 = vunpack.c.0.s8 %v1768
        %v1770 = vlaneseq
        %v1771 = vshrl.u32 %v1770, 7
        %v1772 = vsub.s32 %v1769, %v1771
        %v1773 = vrot.slane %v1765, %v1772
        %v1775 = vunpack.c.l.s4 1934713408
        %v1776 = vunpack.c.0.s8 %v1775
        %v1777 = vlaneseq
        %v1778 = vshrl.u32 %v1777, 7
        %v1779 = vsub.s32 %v1776, %v1778
        %v1780 = vrot.slane %v1766, %v1779
        %v1781 = vcombine.high %v1757, 0.0
        %v1782 = vcombine.high %v1764, 0.0
        %v1783 = vcombine.high %v1773, 0.0
        %v1784 = vcombine.high %v1780, 0.0
        %v1785 = vcombine.low %v1757, %v1764
        %v1787 = vunpack.c.l.s4 1983009808
        %v1788 = vunpack.c.0.s8 %v1787
        %v1789 = vlaneseq
        %v1790 = vshrl.u32 %v1789, 7
        %v1791 = vsub.s32 %v1788, %v1790
        %v1792 = vrot.slane %v1785, %v1791
        %v1793 = vcombine.low %v1781, %v1782
        %v1795 = vunpack.c.l.s4 1983009808
        %v1796 = vunpack.c.0.s8 %v1795
        %v1797 = vlaneseq
        %v1798 = vshrl.u32 %v1797, 7
        %v1799 = vsub.s32 %v1796, %v1798
        %v1800 = vrot.slane %v1793, %v1799
        %v1801 = vcombine.low %v1773, %v1780
        %v1803 = vunpack.c.l.s4 1983009808
        %v1804 = vunpack.c.0.s8 %v1803
        %v1805 = vlaneseq
        %v1806 = vshrl.u32 %v1805, 7
        %v1807 = vsub.s32 %v1804, %v1806
        %v1808 = vrot.slane %v1801, %v1807
        %v1809 = vcombine.low %v1783, %v1784
        %v1811 = vunpack.c.l.s4 1983009808
        %v1812 = vunpack.c.0.s8 %v1811
        %v1813 = vlaneseq
        %v1814 = vshrl.u32 %v1813, 7
        %v1815 = vsub.s32 %v1812, %v1814
        %v1816 = vrot.slane %v1809, %v1815
        %v1817 = vcombine.low %v1792, %v1800
        %v1818 = vcombine.high %v1792, %v1800
        %v1820 = vunpack.c.l.s4 1934713408
        %v1821 = vunpack.c.0.s8 %v1820
        %v1822 = vlaneseq
        %v1823 = vshrl.u32 %v1822, 7
        %v1824 = vsub.s32 %v1821, %v1823
        %v1825 = vrot.slane %v1817, %v1824
        %v1827 = vunpack.c.l.s4 1934713408
        %v1828 = vunpack.c.0.s8 %v1827
        %v1829 = vlaneseq
        %v1830 = vshrl.u32 %v1829, 7
        %v1831 = vsub.s32 %v1828, %v1830
        %v1832 = vrot.slane %v1818, %v1831
        %v1833 = vcombine.low %v1808, %v1816
        %v1834 = vcombine.high %v1808, %v1816
        %v1836 = vunpack.c.l.s4 1934713408
        %v1837 = vunpack.c.0.s8 %v1836
        %v1838 = vlaneseq
        %v1839 = vshrl.u32 %v1838, 7
        %v1840 = vsub.s32 %v1837, %v1839
        %v1841 = vrot.slane %v1833, %v1840
        %v1843 = vunpack.c.l.s4 1934713408
        %v1844 = vunpack.c.0.s8 %v1843
        %v1845 = vlaneseq
        %v1846 = vshrl.u32 %v1845, 7
        %v1847 = vsub.s32 %v1844, %v1846
        %v1848 = vrot.slane %v1834, %v1847
        %v1849 = vcombine.low %v1825, %v1841
        %v1850 = vcombine.high %v1825, %v1841
        %v1851 = vcombine.low %v1832, %v1848
        %v1852 = vcombine.high %v1832, %v1848
        %1854 = vrot.lane.b32.xlu0 %v1850, 8
        %v1855 = vpop.permute.xlu0 %1854
        %1858 = vrot.lane.b32.xlu0 %v1851, 16
        %v1859 = vpop.permute.xlu0 %1858
        %1862 = vrot.lane.b32.xlu0 %v1852, 24
        %v1863 = vpop.permute.xlu0 %1862
        %v1865 = vsel %vm1291, %v1849, %v1855
        %vm1866 = vcmask 130048
        %v1867 = vsel %vm1866, %v1865, %v1859
        %vm1868 = vcmask 195584
        %v1869 = vsel %vm1868, %v1867, %v1863
        %v1870 = vpack.c.bf16 %v1869, %v1869
        %v1871 = vld [vmem:[%s9] sm:$0xf]
        %v1872 = vld [vmem:[%s9 + $0x4] sm:$0xf]
        %v1873 = vld [vmem:[%s9 + $0x8] sm:$0xf]
        %v1874 = vld [vmem:[%s9 + $0xc] sm:$0xf]
        %v1875 = vld [vmem:[%s10] sm:$0x1]
        %v1877 = vlaneseq
        %v1878 = vshrl.u32 %v1877, 7
        %v1879 = vsub.s32 0, %v1878
        %v1880 = vrot.slane %v1875, %v1879
        %v1886 = vunpack.c.l.b16 %v1871
        %v1887 = vunpack.c.l.b16 %v1872
        %v1888 = vunpack.c.l.b16 %v1873
        %v1889 = vunpack.c.l.b16 %v1874
        %v1890 = vpack.c.b16 %v1887, %v1886
        %v1891 = vpack.c.b16 %v1889, %v1888
        %v1895 = vsel %vm1088, %v1870, 0
        %1897 = vmatprep.subr.bf16.mxu0 0
        %1898 = vmatpush1.bf16.msra.mxu0 0
        %1899 = vmatprep.subr.bf16.mxu0 0
        %1900 = vmatpush1.bf16.msra.mxu0 0
        %1901 = vmatprep.subr.bf16.mxu0 0
        %1902 = vmatpush1.bf16.msra.mxu0 0
        %1903 = vmatprep.subr.bf16.mxu0 0
        %1904 = vmatpush1.bf16.msra.mxu0 0
        %1905 = vmatprep.subr.bf16.mxu0 0
        %1906 = vmatpush1.bf16.msra.mxu0 0
        %1907 = vmatprep.subr.bf16.mxu0 0
        %1908 = vmatpush1.bf16.msra.mxu0 0
        %1909 = vmatprep.subr.bf16.mxu0 0
        %1910 = vmatpush1.bf16.msra.mxu0 %v1891
        %1911 = vmatprep.subr.bf16.mxu0 0
        %1912 = vmatpush1.bf16.msra.mxu0 %v1890
        %1913 = vmatprep.subr.bf16.mxu0 0
        %1914 = vmatpush2.bf16.msra.mxu0 0
        %1915 = vmatprep.subr.bf16.mxu0 0
        %1916 = vmatpush2.bf16.msra.mxu0 0
        %1917 = vmatprep.subr.bf16.mxu0 0
        %1918 = vmatpush2.bf16.msra.mxu0 0
        %1919 = vmatprep.subr.bf16.mxu0 0
        %1920 = vmatpush2.bf16.msra.mxu0 0
        %1921 = vmatprep.subr.bf16.mxu0 0
        %1922 = vmatpush2.bf16.msra.mxu0 0
        %1923 = vmatprep.subr.bf16.mxu0 0
        %1924 = vmatpush2.bf16.msra.mxu0 0
        %1925 = vmatprep.subr.bf16.mxu0 0
        %1926 = vmatpush2.bf16.msra.mxu0 0
        %1927 = vmatprep.subr.bf16.mxu0 0
        %1928 = vmatpush2.bf16.msra.mxu0 0
        %1929 = vmatprep.mubr.bf16.mxu0 0
        %1930 = vmatmul.mubr.bf16.gmra.mxu0 %v1895
        %v1931 = vpop.f32.mrf.mxu0
        %v1932 = vadd.f32 %v1880, %v1931
        %v1933 = vpop.f32.mrf.mxu0
        %v1934 = vpop.f32.mrf.mxu0
        %v1935 = vpop.f32.mrf.mxu0
        %1936 = vdwg.mxu0
        %1937 = vst.msk [vmem:[%s603] sm:$0xff] %vm1088, %v1932
        %s1938 = sand.u32 %s309, 1
        %s1939 = scalar_lea.sflag [#allocation5], %s1938
        %s1940 = sand.u32 %s309, 1
        %s1941 = smul.addr %s1940, 8
        %s1942 = scalar_lea.vmem [#allocation18], %s1941
        %s1943 = sand.u32 %s337, 1
        %s1944 = scalar_lea.sflag [#allocation20], %s1943
        %s1945 = sand.u32 %s337, 1
        %s1946 = smul.addr %s1945, 32
        %s1947 = scalar_lea.vmem [#allocation19], %s1946
        // Predicated region
        $region105: #{tpu_custom_call.1} parent=63 // pred_check
          %p1948 = pneg %p319
        $region106: #{tpu_custom_call.1} parent=63 // pred_check_branch
          %1950 = sbr.rel (%p1948) target = $region108
        $region107: #{tpu_custom_call.1} parent=63 // pred_region
          %s1952 = ssub.s32 128, 128
          %1953 = vsyncadd %s1939, %s1952
          %s1954 = sadd.s32 %s44, %s43
          %s1955 = smul.addr %s1954, 128
          %s1956 = scalar_lea.hbm %s11, %s1955
          %s1958 = sshll.u32 %s1942, 4
          %s1959 = int_to_ptr.vmem [resolvable:$true] %s1958
          %1961 = dma.vmem_to_hbm [thread:$0]  %s1959, 128, %s1956, %s1939
        $region108: #{tpu_custom_call.1} parent=63 // pred_fallthru
          _
        // Predicated region
        $region109: #{tpu_custom_call.1} parent=63 // pred_check
          %p1962 = pneg %p347
        $region110: #{tpu_custom_call.1} parent=63 // pred_check_branch
          %1964 = sbr.rel (%p1962) target = $region112
        $region111: #{tpu_custom_call.1} parent=63 // pred_region
          %s1966 = ssub.s32 512, 512
          %1967 = vsyncadd %s1944, %s1966
          %s1968 = smul.addr %s43, 4
          %s1969 = sadd.s32 %s44, %s1968
          %s1970 = smul.addr %s1969, 128
          %s1971 = scalar_lea.hbm %s12, %s1970
          %s1972 = sshll.u32 %s1947, 4
          %s1973 = int_to_ptr.vmem [resolvable:$true] %s1972
          %1978 = dma.vmem_to_hbm [thread:$0]  %s1973, 512, %s1971, %s1944, 128, 128, 8
        $region112: #{tpu_custom_call.1} parent=63 // pred_fallthru
          _
      $region64: #{tpu_custom_call.1} parent=5 // pred_fallthru
        _
      %p1979 = scmp.le.s32.totalorder 2, %s34
      // Predicated region
      $region113: #{tpu_custom_call.1} parent=5 // pred_check
        %p1980 = pneg %p1979
      $region114: #{tpu_custom_call.1} parent=5 // pred_check_branch
        %1982 = sbr.rel (%p1980) target = $region116
      $region115: #{tpu_custom_call.1} parent=5 // pred_region
        %s1983 = ssub.s32 %s34, 2
        // Predicated region
        $region117: #{tpu_custom_call.1} parent=115 // pred_check
          %p1984 = pneg %p325
        $region118: #{tpu_custom_call.1} parent=115 // pred_check_branch
          %1986 = sbr.rel (%p1984) target = $region120
        $region119: #{tpu_custom_call.1} parent=115 // pred_region
          %s1987 = sand.u32 %s310, 1
          %s1988 = scalar_lea.sflag [#allocation5], %s1987
          %s1989 = sand.u32 %s310, 1
          %s1990 = smul.addr %s1989, 8
          %s1991 = scalar_lea.vmem [#allocation18], %s1990
          %1992 = dma.done %s1988, 128
        $region120: #{tpu_custom_call.1} parent=115 // pred_fallthru
          _
        // Predicated region
        $region121: #{tpu_custom_call.1} parent=115 // pred_check
          %p1993 = pneg %p353
        $region122: #{tpu_custom_call.1} parent=115 // pred_check_branch
          %1995 = sbr.rel (%p1993) target = $region124
        $region123: #{tpu_custom_call.1} parent=115 // pred_region
          %s1996 = sand.u32 %s338, 1
          %s1997 = scalar_lea.sflag [#allocation20], %s1996
          %s1998 = sand.u32 %s338, 1
          %s1999 = smul.addr %s1998, 32
          %s2000 = scalar_lea.vmem [#allocation19], %s1999
          %2001 = dma.done %s1997, 512
        $region124: #{tpu_custom_call.1} parent=115 // pred_fallthru
          _
      $region116: #{tpu_custom_call.1} parent=5 // pred_fallthru
        _
    $region6: #{tpu_custom_call.1} parent=1 // loop_footer
      %s38 = sadd.s32 1, %s34
    $region7: #{tpu_custom_call.1} parent=1 // loop_footer_branch
      %33 = sbr.rel target = $region3
    $region8: #{tpu_custom_call.1} parent=1 // loop_exit
      _
    %2002 = vsyncpa [#allocation4], 1
    %s2003 = scalar_lea.sflag [#allocation4], 1
    %2004 = vsyncpa %s2003, 1
    %2005 = vsyncpa [#allocation7], 1
    %s2006 = scalar_lea.sflag [#allocation7], 1
    %2007 = vsyncpa %s2006, 1
    %2008 = vsyncpa [#allocation10], 1
    %2009 = vsyncpa [#allocation13], 1
    %2010 = vsyncpa [#allocation16], 1
    %2011 = vsyncpa [#allocation5], 1
    %s2012 = scalar_lea.sflag [#allocation5], 1
    %2013 = vsyncpa %s2012, 1
    %2014 = vsyncpa [#allocation20], 1
    %s2015 = scalar_lea.sflag [#allocation20], 1
    %2016 = vsyncpa %s2015, 1

// kernel: tpu_custom_call.1
$region0: #{tpu_custom_call.1}
  #allocation0 [shape = 'u32[]', space=smem, size = 0x4, offset = 0x4, fixed_abs, tag = 'smem constant byte address 0x4 - core index']
  #allocation1 [shape = 'u32[144,128]{1,0:T(1,128)}', space=vmem, size = 0x12000, scoped, tag = 'internal scratch']
  #allocation2 [shape = 'bf16[2,4,8,8]{3,2,1,0:T(8,128)(2,1)}', space=vmem, size = 0x4000, scoped, tag = 'scratch operand']
  %s0 = inlined_call_operand.hbm [shape: f32[2,8,32], index: 0, kind: input, shape index: {}]
  %s1 = inlined_call_operand.hbm [shape: f32[2,8,32], index: 1, kind: input, shape index: {}]
  %s2 = inlined_call_operand.hbm [shape: f32[2,8,32], index: 2, kind: input, shape index: {}]
  %s3 = inlined_call_operand.hbm [shape: bf16[32,32], index: 3, kind: input, shape index: {}]
  %s4 = inlined_call_operand.hbm [shape: f32[1,32], index: 4, kind: input, shape index: {}]
  %s5 = inlined_call_operand.hbm [shape: bf16[32,32], index: 5, kind: input, shape index: {}]
  %s6 = inlined_call_operand.hbm [shape: f32[1,32], index: 6, kind: input, shape index: {}]
  %s7 = inlined_call_operand.hbm [shape: bf16[32,32], index: 7, kind: input, shape index: {}]
  %s8 = inlined_call_operand.hbm [shape: f32[1,32], index: 8, kind: input, shape index: {}]
  %s9 = inlined_call_operand.vmem [shape: bf16[32,32], index: 9, kind: input, shape index: {}]
  %s10 = inlined_call_operand.vmem [shape: f32[1,32], index: 10, kind: input, shape index: {}]
  %s11 = inlined_call_operand.hbm [shape: f32[2,8,32], index: 11, kind: output, shape index: {0}]
  %s12 = inlined_call_operand.hbm [shape: f32[2,4,8,8], index: 12, kind: output, shape index: {1}]
  %13 = xla_tuple %s11, %s12
  %s14 = sld [smem:[#allocation0]]
  $region125: #{tpu_custom_call.1} parent=0
    _
  %s16 = ssub.s32 1, %s14
  %s17 = scalar_select 0, %s16, %s14
  $region1: #{tpu_custom_call.1} parent=0
    #allocation3 [shape = 'u8[8192]{0}', space=vmem, size = 0x2000, scoped, tag = 'input window, operand 0']
    #allocation4 [shape = 's32[2]{0}', space=sflag, size = 0x8, scoped, tag = 'scoped memory for tpu_custom_call.1']
    #allocation5 [shape = 's32[2]{0}', space=sflag, size = 0x8, scoped, tag = 'scoped memory for tpu_custom_call.1']
    #allocation6 [shape = 'u8[8192]{0}', space=vmem, size = 0x2000, scoped, tag = 'input window, operand 1']
    #allocation7 [shape = 's32[2]{0}', space=sflag, size = 0x8, scoped, tag = 'scoped memory for tpu_custom_call.1']
    #allocation8 [shape = 'u8[8192]{0}', space=vmem, size = 0x2000, scoped, tag = 'input window, operand 2']
    #allocation9 [shape = 'u8[8192]{0}', space=vmem, size = 0x2000, scoped, tag = 'input window, operand 3, single buffered']
    #allocation10 [shape = 's32[1]{0}', space=sflag, size = 0x4, scoped, tag = 'scoped memory for tpu_custom_call.1']
    #allocation11 [shape = 'u8[512]{0}', space=vmem, size = 0x400, scoped, tag = 'input window, operand 4, single buffered']
    #allocation12 [shape = 'u8[8192]{0}', space=vmem, size = 0x2000, scoped, tag = 'input window, operand 5, single buffered']
    #allocation13 [shape = 's32[1]{0}', space=sflag, size = 0x4, scoped, tag = 'scoped memory for tpu_custom_call.1']
    #allocation14 [shape = 'u8[512]{0}', space=vmem, size = 0x400, scoped, tag = 'input window, operand 6, single buffered']
    #allocation15 [shape = 'u8[8192]{0}', space=vmem, size = 0x2000, scoped, tag = 'input window, operand 7, single buffered']
    #allocation16 [shape = 's32[1]{0}', space=sflag, size = 0x4, scoped, tag = 'scoped memory for tpu_custom_call.1']
    #allocation17 [shape = 'u8[512]{0}', space=vmem, size = 0x400, scoped, tag = 'input window, operand 8, single buffered']
    #allocation18 [shape = 'u8[8192]{0}', space=vmem, size = 0x2000, scoped, tag = 'output window, operand 0']
    #allocation19 [shape = 'u8[32768]{0}', space=vmem, size = 0x8000, scoped, tag = 'output window, operand 1']
    #allocation20 [shape = 's32[2]{0}', space=sflag, size = 0x8, scoped, tag = 'scoped memory for tpu_custom_call.1']
    %18 = vsyncpa [#allocation4], 0
    %s19 = scalar_lea.sflag [#allocation4], 1
    %20 = vsyncpa %s19, 0
    %21 = vsyncpa [#allocation7], 0
    %s22 = scalar_lea.sflag [#allocation7], 1
    %23 = vsyncpa %s22, 0
    %24 = vsyncpa [#allocation10], 0
    %25 = vsyncpa [#allocation13], 0
    %26 = vsyncpa [#allocation16], 0
    %27 = vsyncpa [#allocation5], 0
    %s28 = scalar_lea.sflag [#allocation5], 1
    %29 = vsyncpa %s28, 0
    %30 = vsyncpa [#allocation20], 0
    %s31 = scalar_lea.sflag [#allocation20], 1
    %32 = vsyncpa %s31, 0
    loop: start=0, step=1, limit=4
    $region2: #{tpu_custom_call.1} parent=1 // loop_pre_header
      _
    $region3: #{tpu_custom_call.1} parent=1 // loop_header
      %s34 = sphi 0, %s38
      %p35 = scmp.ge.s32.totalorder %s34, 4
      %s41 = sphi 0, %s53
      %s42 = sphi 0, %s49
      %s43 = sphi 0, %s41
      %s44 = sphi 0, %s42
      %s45 = sphi 0, %s43
      %s46 = sphi 0, %s44
      %s58 = sphi 0, %s60
      %s61 = sphi 0, %s58
      %s62 = sphi 0, %s61
      %s78 = sphi 0, %s62
      %s84 = sphi 0, %s86
      %s87 = sphi 0, %s84
      %s88 = sphi 0, %s87
      %s104 = sphi 0, %s88
      %s110 = sphi 0, %s112
      %s113 = sphi 0, %s110
      %s114 = sphi 0, %s113
      %s130 = sphi 0, %s114
      %s134 = sphi 0, %s134
      %s136 = sphi 0, %s134
      %s137 = sphi 0, %s136
      %s151 = sphi 0, %s137
      %s155 = sphi 0, %s155
      %s157 = sphi 0, %s155
      %s158 = sphi 0, %s157
      %s172 = sphi 0, %s158
      %s176 = sphi 0, %s176
      %s178 = sphi 0, %s176
      %s179 = sphi 0, %s178
      %s193 = sphi 0, %s179
      %s197 = sphi 0, %s197
      %s199 = sphi 0, %s197
      %s200 = sphi 0, %s199
      %s214 = sphi 0, %s200
      %s218 = sphi 0, %s218
      %s220 = sphi 0, %s218
      %s221 = sphi 0, %s220
      %s235 = sphi 0, %s221
      %s239 = sphi 0, %s239
      %s241 = sphi 0, %s239
      %s242 = sphi 0, %s241
      %s256 = sphi 0, %s242
      %s260 = sphi 0, %s260
      %s262 = sphi 0, %s260
      %s263 = sphi 0, %s262
      %s277 = sphi 0, %s263
      %s281 = sphi 0, %s281
      %s283 = sphi 0, %s281
      %s284 = sphi 0, %s283
      %s298 = sphi 0, %s284
      %s306 = sphi 0, %s308
      %s309 = sphi 0, %s306
      %s310 = sphi 0, %s309
      %s326 = sphi 0, %s310
      %s334 = sphi 0, %s336
      %s337 = sphi 0, %s334
      %s338 = sphi 0, %s337
      %s354 = sphi 0, %s338
    $region4: #{tpu_custom_call.1} parent=1 // loop_header_branch
      %37 = sbr.rel (%p35) target = $region8
    $region5: #{tpu_custom_call.1} parent=1 // loop_body
      %s39 = ssub.s32 %s34, 1
      %s40 = ssub.s32 %s34, 2
      %s47 = sadd.s32 1, %s42
      %p48 = scmp.ge.s32.totalorder %s47, 1
      %s49 = scalar_select %p48, 0, %s47
      %s50 = sadd.s32 1, %s41
      %s51 = scalar_select %p48, %s50, %s41
      %p52 = scmp.ge.s32.totalorder %s51, 2
      %s53 = scalar_select %p52, 0, %s51
      %s54 = ssub.s32 %s41, %s53
      %s55 = ssub.s32 %s42, %s49
      %s56 = sor.u32 %s54, %s55
      %p57 = scmp.eq.s32.totalorder %s56, 0
      %s59 = sadd.s32 %s58, 1
      %s60 = scalar_select %p57, %s58, %s59
      %p63 = pneg %p57
      %p64 = scmp.eq.s32.totalorder %s34, 1
      %p65 = por %p63, %p64
      %p66 = scmp.ne.s32.totalorder %s58, %s61
      %p67 = scmp.eq.s32.totalorder %s34, 0
      %p68 = por %p66, %p67
      %p69 = scmp.ne.s32.totalorder %s58, %s61
      %p70 = scmp.eq.s32.totalorder %s39, 1
      %p71 = por %p69, %p70
      %p72 = scmp.ne.s32.totalorder %s61, %s62
      %p73 = scmp.eq.s32.totalorder %s39, 0
      %p74 = por %p72, %p73
      %p75 = scmp.ne.s32.totalorder %s61, %s62
      %p76 = scmp.eq.s32.totalorder %s40, 1
      %p77 = por %p75, %p76
      %p79 = scmp.ne.s32.totalorder %s62, %s78
      %p80 = scmp.eq.s32.totalorder %s40, 0
      %p81 = por %p79, %p80
      %s82 = ssub.s32 %s41, %s53
      %p83 = scmp.eq.s32.totalorder %s82, 0
      %s85 = sadd.s32 %s84, 1
      %s86 = scalar_select %p83, %s84, %s85
      %p89 = pneg %p83
      %p90 = scmp.eq.s32.totalorder %s34, 1
      %p91 = por %p89, %p90
      %p92 = scmp.ne.s32.totalorder %s84, %s87
      %p93 = scmp.eq.s32.totalorder %s34, 0
      %p94 = por %p92, %p93
      %p95 = scmp.ne.s32.totalorder %s84, %s87
      %p96 = scmp.eq.s32.totalorder %s39, 1
      %p97 = por %p95, %p96
      %p98 = scmp.ne.s32.totalorder %s87, %s88
      %p99 = scmp.eq.s32.totalorder %s39, 0
      %p100 = por %p98, %p99
      %p101 = scmp.ne.s32.totalorder %s87, %s88
      %p102 = scmp.eq.s32.totalorder %s40, 1
      %p103 = por %p101, %p102
      %p105 = scmp.ne.s32.totalorder %s88, %s104
      %p106 = scmp.eq.s32.totalorder %s40, 0
      %p107 = por %p105, %p106
      %s108 = ssub.s32 %s41, %s53
      %p109 = scmp.eq.s32.totalorder %s108, 0
      %s111 = sadd.s32 %s110, 1
      %s112 = scalar_select %p109, %s110, %s111
      %p115 = pneg %p109
      %p116 = scmp.eq.s32.totalorder %s34, 1
      %p117 = por %p115, %p116
      %p118 = scmp.ne.s32.totalorder %s110, %s113
      %p119 = scmp.eq.s32.totalorder %s34, 0
      %p120 = por %p118, %p119
      %p121 = scmp.ne.s32.totalorder %s110, %s113
      %p122 = scmp.eq.s32.totalorder %s39, 1
      %p123 = por %p121, %p122
      %p124 = scmp.ne.s32.totalorder %s113, %s114
      %p125 = scmp.eq.s32.totalorder %s39, 0
      %p126 = por %p124, %p125
      %p127 = scmp.ne.s32.totalorder %s113, %s114
      %p128 = scmp.eq.s32.totalorder %s40, 1
      %p129 = por %p127, %p128
      %p131 = scmp.ne.s32.totalorder %s114, %s130
      %p132 = scmp.eq.s32.totalorder %s40, 0
      %p133 = por %p131, %p132
      %s135 = sadd.s32 %s134, 1
      %p138 = scmp.eq.s32.totalorder %s34, 1
      %p139 = scmp.ne.s32.totalorder %s134, %s136
      %p140 = scmp.eq.s32.totalorder %s34, 0
      %p141 = por %p139, %p140
      %p142 = scmp.ne.s32.totalorder %s134, %s136
      %p143 = scmp.eq.s32.totalorder %s39, 1
      %p144 = por %p142, %p143
      %p145 = scmp.ne.s32.totalorder %s136, %s137
      %p146 = scmp.eq.s32.totalorder %s39, 0
      %p147 = por %p145, %p146
      %p148 = scmp.ne.s32.totalorder %s136, %s137
      %p149 = scmp.eq.s32.totalorder %s40, 1
      %p150 = por %p148, %p149
      %p152 = scmp.ne.s32.totalorder %s137, %s151
      %p153 = scmp.eq.s32.totalorder %s40, 0
      %p154 = por %p152, %p153
      %s156 = sadd.s32 %s155, 1
      %p159 = scmp.eq.s32.totalorder %s34, 1
      %p160 = scmp.ne.s32.totalorder %s155, %s157
      %p161 = scmp.eq.s32.totalorder %s34, 0
      %p162 = por %p160, %p161
      %p163 = scmp.ne.s32.totalorder %s155, %s157
      %p164 = scmp.eq.s32.totalorder %s39, 1
      %p165 = por %p163, %p164
      %p166 = scmp.ne.s32.totalorder %s157, %s158
      %p167 = scmp.eq.s32.totalorder %s39, 0
      %p168 = por %p166, %p167
      %p169 = scmp.ne.s32.totalorder %s157, %s158
      %p170 = scmp.eq.s32.totalorder %s40, 1
      %p171 = por %p169, %p170
      %p173 = scmp.ne.s32.totalorder %s158, %s172
      %p174 = scmp.eq.s32.totalorder %s40, 0
      %p175 = por %p173, %p174
      %s177 = sadd.s32 %s176, 1
      %p180 = scmp.eq.s32.totalorder %s34, 1
      %p181 = scmp.ne.s32.totalorder %s176, %s178
      %p182 = scmp.eq.s32.totalorder %s34, 0
      %p183 = por %p181, %p182
      %p184 = scmp.ne.s32.totalorder %s176, %s178
      %p185 = scmp.eq.s32.totalorder %s39, 1
      %p186 = por %p184, %p185
      %p187 = scmp.ne.s32.totalorder %s178, %s179
      %p188 = scmp.eq.s32.totalorder %s39, 0
      %p189 = por %p187, %p188
      %p190 = scmp.ne.s32.totalorder %s178, %s179
      %p191 = scmp.eq.s32.totalorder %s40, 1
      %p192 = por %p190, %p191
      %p194 = scmp.ne.s32.totalorder %s179, %s193
      %p195 = scmp.eq.s32.totalorder %s40, 0
      %p196 = por %p194, %p195
      %s198 = sadd.s32 %s197, 1
      %p201 = scmp.eq.s32.totalorder %s34, 1
      %p202 = scmp.ne.s32.totalorder %s197, %s199
      %p203 = scmp.eq.s32.totalorder %s34, 0
      %p204 = por %p202, %p203
      %p205 = scmp.ne.s32.totalorder %s197, %s199
      %p206 = scmp.eq.s32.totalorder %s39, 1
      %p207 = por %p205, %p206
      %p208 = scmp.ne.s32.totalorder %s199, %s200
      %p209 = scmp.eq.s32.totalorder %s39, 0
      %p210 = por %p208, %p209
      %p211 = scmp.ne.s32.totalorder %s199, %s200
      %p212 = scmp.eq.s32.totalorder %s40, 1
      %p213 = por %p211, %p212
      %p215 = scmp.ne.s32.totalorder %s200, %s214
      %p216 = scmp.eq.s32.totalorder %s40, 0
      %p217 = por %p215, %p216
      %s219 = sadd.s32 %s218, 1
      %p222 = scmp.eq.s32.totalorder %s34, 1
      %p223 = scmp.ne.s32.totalorder %s218, %s220
      %p224 = scmp.eq.s32.totalorder %s34, 0
      %p225 = por %p223, %p224
      %p226 = scmp.ne.s32.totalorder %s218, %s220
      %p227 = scmp.eq.s32.totalorder %s39, 1
      %p228 = por %p226, %p227
      %p229 = scmp.ne.s32.totalorder %s220, %s221
      %p230 = scmp.eq.s32.totalorder %s39, 0
      %p231 = por %p229, %p230
      %p232 = scmp.ne.s32.totalorder %s220, %s221
      %p233 = scmp.eq.s32.totalorder %s40, 1
      %p234 = por %p232, %p233
      %p236 = scmp.ne.s32.totalorder %s221, %s235
      %p237 = scmp.eq.s32.totalorder %s40, 0
      %p238 = por %p236, %p237
      %s240 = sadd.s32 %s239, 1
      %p243 = scmp.eq.s32.totalorder %s34, 1
      %p244 = scmp.ne.s32.totalorder %s239, %s241
      %p245 = scmp.eq.s32.totalorder %s34, 0
      %p246 = por %p244, %p245
      %p247 = scmp.ne.s32.totalorder %s239, %s241
      %p248 = scmp.eq.s32.totalorder %s39, 1
      %p249 = por %p247, %p248
      %p250 = scmp.ne.s32.totalorder %s241, %s242
      %p251 = scmp.eq.s32.totalorder %s39, 0
      %p252 = por %p250, %p251
      %p253 = scmp.ne.s32.totalorder %s241, %s242
      %p254 = scmp.eq.s32.totalorder %s40, 1
      %p255 = por %p253, %p254
      %p257 = scmp.ne.s32.totalorder %s242, %s256
      %p258 = scmp.eq.s32.totalorder %s40, 0
      %p259 = por %p257, %p258
      %s261 = sadd.s32 %s260, 1
      %p264 = scmp.eq.s32.totalorder %s34, 1
      %p265 = scmp.ne.s32.totalorder %s260, %s262
      %p266 = scmp.eq.s32.totalorder %s34, 0
      %p267 = por %p265, %p266
      %p268 = scmp.ne.s32.totalorder %s260, %s262
      %p269 = scmp.eq.s32.totalorder %s39, 1
      %p270 = por %p268, %p269
      %p271 = scmp.ne.s32.totalorder %s262, %s263
      %p272 = scmp.eq.s32.totalorder %s39, 0
      %p273 = por %p271, %p272
      %p274 = scmp.ne.s32.totalorder %s262, %s263
      %p275 = scmp.eq.s32.totalorder %s40, 1
      %p276 = por %p274, %p275
      %p278 = scmp.ne.s32.totalorder %s263, %s277
      %p279 = scmp.eq.s32.totalorder %s40, 0
      %p280 = por %p278, %p279
      %s282 = sadd.s32 %s281, 1
      %p285 = scmp.eq.s32.totalorder %s34, 1
      %p286 = scmp.ne.s32.totalorder %s281, %s283
      %p287 = scmp.eq.s32.totalorder %s34, 0
      %p288 = por %p286, %p287
      %p289 = scmp.ne.s32.totalorder %s281, %s283
      %p290 = scmp.eq.s32.totalorder %s39, 1
      %p291 = por %p289, %p290
      %p292 = scmp.ne.s32.totalorder %s283, %s284
      %p293 = scmp.eq.s32.totalorder %s39, 0
      %p294 = por %p292, %p293
      %p295 = scmp.ne.s32.totalorder %s283, %s284
      %p296 = scmp.eq.s32.totalorder %s40, 1
      %p297 = por %p295, %p296
      %p299 = scmp.ne.s32.totalorder %s284, %s298
      %p300 = scmp.eq.s32.totalorder %s40, 0
      %p301 = por %p299, %p300
      %s302 = ssub.s32 %s41, %s53
      %s303 = ssub.s32 %s42, %s49
      %s304 = sor.u32 %s302, %s303
      %p305 = scmp.eq.s32.totalorder %s304, 0
      %s307 = sadd.s32 %s306, 1
      %s308 = scalar_select %p305, %s306, %s307
      %p311 = pneg %p305
      %p312 = scmp.eq.s32.totalorder %s34, 1
      %p313 = por %p311, %p312
      %p314 = scmp.ne.s32.totalorder %s306, %s309
      %p315 = scmp.eq.s32.totalorder %s34, 0
      %p316 = por %p314, %p315
      %p317 = scmp.ne.s32.totalorder %s306, %s309
      %p318 = scmp.eq.s32.totalorder %s39, 1
      %p319 = por %p317, %p318
      %p320 = scmp.ne.s32.totalorder %s309, %s310
      %p321 = scmp.eq.s32.totalorder %s39, 0
      %p322 = por %p320, %p321
      %p323 = scmp.ne.s32.totalorder %s309, %s310
      %p324 = scmp.eq.s32.totalorder %s40, 1
      %p325 = por %p323, %p324
      %p327 = scmp.ne.s32.totalorder %s310, %s326
      %p328 = scmp.eq.s32.totalorder %s40, 0
      %p329 = por %p327, %p328
      %s330 = ssub.s32 %s41, %s53
      %s331 = ssub.s32 %s42, %s49
      %s332 = sor.u32 %s330, %s331
      %p333 = scmp.eq.s32.totalorder %s332, 0
      %s335 = sadd.s32 %s334, 1
      %s336 = scalar_select %p333, %s334, %s335
      %p339 = pneg %p333
      %p340 = scmp.eq.s32.totalorder %s34, 1
      %p341 = por %p339, %p340
      %p342 = scmp.ne.s32.totalorder %s334, %s337
      %p343 = scmp.eq.s32.totalorder %s34, 0
      %p344 = por %p342, %p343
      %p345 = scmp.ne.s32.totalorder %s334, %s337
      %p346 = scmp.eq.s32.totalorder %s39, 1
      %p347 = por %p345, %p346
      %p348 = scmp.ne.s32.totalorder %s337, %s338
      %p349 = scmp.eq.s32.totalorder %s39, 0
      %p350 = por %p348, %p349
      %p351 = scmp.ne.s32.totalorder %s337, %s338
      %p352 = scmp.eq.s32.totalorder %s40, 1
      %p353 = por %p351, %p352
      %p355 = scmp.ne.s32.totalorder %s338, %s354
      %p356 = scmp.eq.s32.totalorder %s40, 0
      %p357 = por %p355, %p356
      %p358 = scmp.le.s32.totalorder 1, %s34
      %p359 = scmp.lt.s32.totalorder %s34, 3
      %p360 = pnand %p358, %p359
      %p361 = pneg %p360
      // Predicated region
      $region9: #{tpu_custom_call.1} parent=5 // pred_check
        _
      $region10: #{tpu_custom_call.1} parent=5 // pred_check_branch
        %363 = sbr.rel (%p360) target = $region12
      $region11: #{tpu_custom_call.1} parent=5 // pred_region
        %s364 = ssub.s32 %s34, 1
        // Predicated region
        $region13: #{tpu_custom_call.1} parent=11 // pred_check
          %p365 = pneg %p147
        $region14: #{tpu_custom_call.1} parent=11 // pred_check_branch
          %367 = sbr.rel (%p365) target = $region16
        $region15: #{tpu_custom_call.1} parent=11 // pred_region
          %s369 = ssub.s32 256, 256
          %370 = vsyncadd [#allocation10], %s369
          %s371 = sshll.u32 [#allocation9], 4
          %s372 = int_to_ptr.vmem [resolvable:$true] %s371
          %377 = dma.hbm_to_vmem [thread:$0]  %s3, 256, %s372, [#allocation10], 64, 64, 4
        $region16: #{tpu_custom_call.1} parent=11 // pred_fallthru
          _
        // Predicated region
        $region17: #{tpu_custom_call.1} parent=11 // pred_check
          %p378 = pneg %p168
        $region18: #{tpu_custom_call.1} parent=11 // pred_check_branch
          %380 = sbr.rel (%p378) target = $region20
        $region19: #{tpu_custom_call.1} parent=11 // pred_region
          %s382 = ssub.s32 16, 16
          %383 = vsyncadd [#allocation10], %s382
          %s385 = sshll.u32 [#allocation11], 4
          %s386 = int_to_ptr.vmem [resolvable:$true] %s385
          %388 = dma.hbm_to_vmem [thread:$0]  %s4, 16, %s386, [#allocation10]
        $region20: #{tpu_custom_call.1} parent=11 // pred_fallthru
          _
        // Predicated region
        $region21: #{tpu_custom_call.1} parent=11 // pred_check
          %p389 = pneg %p189
        $region22: #{tpu_custom_call.1} parent=11 // pred_check_branch
          %391 = sbr.rel (%p389) target = $region24
        $region23: #{tpu_custom_call.1} parent=11 // pred_region
          %s393 = ssub.s32 256, 256
          %394 = vsyncadd [#allocation13], %s393
          %s395 = sshll.u32 [#allocation12], 4
          %s396 = int_to_ptr.vmem [resolvable:$true] %s395
          %401 = dma.hbm_to_vmem [thread:$0]  %s5, 256, %s396, [#allocation13], 64, 64, 4
        $region24: #{tpu_custom_call.1} parent=11 // pred_fallthru
          _
        // Predicated region
        $region25: #{tpu_custom_call.1} parent=11 // pred_check
          %p402 = pneg %p210
        $region26: #{tpu_custom_call.1} parent=11 // pred_check_branch
          %404 = sbr.rel (%p402) target = $region28
        $region27: #{tpu_custom_call.1} parent=11 // pred_region
          %s406 = ssub.s32 16, 16
          %407 = vsyncadd [#allocation13], %s406
          %s409 = sshll.u32 [#allocation14], 4
          %s410 = int_to_ptr.vmem [resolvable:$true] %s409
          %412 = dma.hbm_to_vmem [thread:$0]  %s6, 16, %s410, [#allocation13]
        $region28: #{tpu_custom_call.1} parent=11 // pred_fallthru
          _
        // Predicated region
        $region29: #{tpu_custom_call.1} parent=11 // pred_check
          %p413 = pneg %p231
        $region30: #{tpu_custom_call.1} parent=11 // pred_check_branch
          %415 = sbr.rel (%p413) target = $region32
        $region31: #{tpu_custom_call.1} parent=11 // pred_region
          %s417 = ssub.s32 256, 256
          %418 = vsyncadd [#allocation16], %s417
          %s419 = sshll.u32 [#allocation15], 4
          %s420 = int_to_ptr.vmem [resolvable:$true] %s419
          %425 = dma.hbm_to_vmem [thread:$0]  %s7, 256, %s420, [#allocation16], 64, 64, 4
        $region32: #{tpu_custom_call.1} parent=11 // pred_fallthru
          _
        // Predicated region
        $region33: #{tpu_custom_call.1} parent=11 // pred_check
          %p426 = pneg %p252
        $region34: #{tpu_custom_call.1} parent=11 // pred_check_branch
          %428 = sbr.rel (%p426) target = $region36
        $region35: #{tpu_custom_call.1} parent=11 // pred_region
          %s430 = ssub.s32 16, 16
          %431 = vsyncadd [#allocation16], %s430
          %s433 = sshll.u32 [#allocation17], 4
          %s434 = int_to_ptr.vmem [resolvable:$true] %s433
          %436 = dma.hbm_to_vmem [thread:$0]  %s8, 16, %s434, [#allocation16]
        $region36: #{tpu_custom_call.1} parent=11 // pred_fallthru
          _
        // Predicated region
        $region37: #{tpu_custom_call.1} parent=11 // pred_check
          %p437 = pneg %p273
        $region38: #{tpu_custom_call.1} parent=11 // pred_check_branch
          %439 = sbr.rel (%p437) target = $region40
        $region39: #{tpu_custom_call.1} parent=11 // pred_region
          _
        $region40: #{tpu_custom_call.1} parent=11 // pred_fallthru
          _
        // Predicated region
        $region41: #{tpu_custom_call.1} parent=11 // pred_check
          %p440 = pneg %p294
        $region42: #{tpu_custom_call.1} parent=11 // pred_check_branch
          %442 = sbr.rel (%p440) target = $region44
        $region43: #{tpu_custom_call.1} parent=11 // pred_region
          _
        $region44: #{tpu_custom_call.1} parent=11 // pred_fallthru
          _
      $region12: #{tpu_custom_call.1} parent=5 // pred_fallthru
        _
      %p443 = scmp.lt.s32.totalorder %s34, 2
      // Predicated region
      $region45: #{tpu_custom_call.1} parent=5 // pred_check
        %p444 = pneg %p443
      $region46: #{tpu_custom_call.1} parent=5 // pred_check_branch
        %446 = sbr.rel (%p444) target = $region48
      $region47: #{tpu_custom_call.1} parent=5 // pred_region
        // Predicated region
        $region49: #{tpu_custom_call.1} parent=47 // pred_check
          %p447 = pneg %p68
        $region50: #{tpu_custom_call.1} parent=47 // pred_check_branch
          %449 = sbr.rel (%p447) target = $region52
        $region51: #{tpu_custom_call.1} parent=47 // pred_region
          %s450 = sand.u32 %s58, 1
          %s451 = scalar_lea.sflag [#allocation4], %s450
          %s452 = sand.u32 %s58, 1
          %s453 = smul.addr %s452, 8
          %s454 = scalar_lea.vmem [#allocation3], %s453
          %s456 = ssub.s32 128, 128
          %457 = vsyncadd %s451, %s456
          %s458 = sadd.s32 %s42, %s41
          %s459 = smul.addr %s458, 128
          %s460 = scalar_lea.hbm %s0, %s459
          %s462 = sshll.u32 %s454, 4
          %s463 = int_to_ptr.vmem [resolvable:$true] %s462
          %465 = dma.hbm_to_vmem [thread:$0]  %s460, 128, %s463, %s451
        $region52: #{tpu_custom_call.1} parent=47 // pred_fallthru
          _
        // Predicated region
        $region53: #{tpu_custom_call.1} parent=47 // pred_check
          %p466 = pneg %p94
        $region54: #{tpu_custom_call.1} parent=47 // pred_check_branch
          %468 = sbr.rel (%p466) target = $region56
        $region55: #{tpu_custom_call.1} parent=47 // pred_region
          %s469 = sand.u32 %s34, 1
          %s470 = scalar_lea.sflag [#allocation7], %s469
          %s471 = sand.u32 %s84, 1
          %s472 = smul.addr %s471, 8
          %s473 = scalar_lea.vmem [#allocation6], %s472
          %s475 = ssub.s32 128, 128
          %476 = vsyncadd %s470, %s475
          %s477 = smul.addr %s41, 128
          %s478 = scalar_lea.hbm %s1, %s477
          %s480 = sshll.u32 %s473, 4
          %s481 = int_to_ptr.vmem [resolvable:$true] %s480
          %483 = dma.hbm_to_vmem [thread:$0]  %s478, 128, %s481, %s470
        $region56: #{tpu_custom_call.1} parent=47 // pred_fallthru
          _
        // Predicated region
        $region57: #{tpu_custom_call.1} parent=47 // pred_check
          %p484 = pneg %p120
        $region58: #{tpu_custom_call.1} parent=47 // pred_check_branch
          %486 = sbr.rel (%p484) target = $region60
        $region59: #{tpu_custom_call.1} parent=47 // pred_region
          %s487 = sand.u32 %s34, 1
          %s488 = scalar_lea.sflag [#allocation7], %s487
          %s489 = sand.u32 %s110, 1
          %s490 = smul.addr %s489, 8
          %s491 = scalar_lea.vmem [#allocation8], %s490
          %s493 = ssub.s32 128, 128
          %494 = vsyncadd %s488, %s493
          %s495 = smul.addr %s41, 128
          %s496 = scalar_lea.hbm %s2, %s495
          %s498 = sshll.u32 %s491, 4
          %s499 = int_to_ptr.vmem [resolvable:$true] %s498
          %501 = dma.hbm_to_vmem [thread:$0]  %s496, 128, %s499, %s488
        $region60: #{tpu_custom_call.1} parent=47 // pred_fallthru
          _
      $region48: #{tpu_custom_call.1} parent=5 // pred_fallthru
        _
      %p502 = scmp.le.s32.totalorder 1, %s34
      %p503 = scmp.lt.s32.totalorder %s34, 3
      %p504 = pnand %p502, %p503
      %p505 = pneg %p504
      // Predicated region
      $region61: #{tpu_custom_call.1} parent=5 // pred_check
        _
      $region62: #{tpu_custom_call.1} parent=5 // pred_check_branch
        %507 = sbr.rel (%p504) target = $region64
      $region63: #{tpu_custom_call.1} parent=5 // pred_region
        %s508 = ssub.s32 %s34, 1
        %s509 = sand.u32 %s61, 1
        %s510 = scalar_lea.sflag [#allocation4], %s509
        %s511 = sand.u32 %s61, 1
        %s512 = smul.addr %s511, 8
        %s513 = scalar_lea.vmem [#allocation3], %s512
        // Predicated region
        $region65: #{tpu_custom_call.1} parent=63 // pred_check
          %p514 = pneg %p74
        $region66: #{tpu_custom_call.1} parent=63 // pred_check_branch
          %516 = sbr.rel (%p514) target = $region68
        $region67: #{tpu_custom_call.1} parent=63 // pred_region
          %517 = dma.done %s510, 128
        $region68: #{tpu_custom_call.1} parent=63 // pred_fallthru
          _
        %s518 = sand.u32 %s39, 1
        %s519 = scalar_lea.sflag [#allocation7], %s518
        %s520 = sand.u32 %s87, 1
        %s521 = smul.addr %s520, 8
        %s522 = scalar_lea.vmem [#allocation6], %s521
        // Predicated region
        $region69: #{tpu_custom_call.1} parent=63 // pred_check
          %p523 = pneg %p100
        $region70: #{tpu_custom_call.1} parent=63 // pred_check_branch
          %525 = sbr.rel (%p523) target = $region72
        $region71: #{tpu_custom_call.1} parent=63 // pred_region
          %526 = dma.done %s519, 128
        $region72: #{tpu_custom_call.1} parent=63 // pred_fallthru
          _
        %s527 = sand.u32 %s39, 1
        %s528 = scalar_lea.sflag [#allocation7], %s527
        %s529 = sand.u32 %s113, 1
        %s530 = smul.addr %s529, 8
        %s531 = scalar_lea.vmem [#allocation8], %s530
        // Predicated region
        $region73: #{tpu_custom_call.1} parent=63 // pred_check
          %p532 = pneg %p126
        $region74: #{tpu_custom_call.1} parent=63 // pred_check_branch
          %534 = sbr.rel (%p532) target = $region76
        $region75: #{tpu_custom_call.1} parent=63 // pred_region
          %535 = dma.done %s528, 128
        $region76: #{tpu_custom_call.1} parent=63 // pred_fallthru
          _
        // Predicated region
        $region77: #{tpu_custom_call.1} parent=63 // pred_check
          %p536 = pneg %p147
        $region78: #{tpu_custom_call.1} parent=63 // pred_check_branch
          %538 = sbr.rel (%p536) target = $region80
        $region79: #{tpu_custom_call.1} parent=63 // pred_region
          %539 = dma.done [#allocation10], 256
        $region80: #{tpu_custom_call.1} parent=63 // pred_fallthru
          _
        // Predicated region
        $region81: #{tpu_custom_call.1} parent=63 // pred_check
          %p540 = pneg %p168
        $region82: #{tpu_custom_call.1} parent=63 // pred_check_branch
          %542 = sbr.rel (%p540) target = $region84
        $region83: #{tpu_custom_call.1} parent=63 // pred_region
          %543 = dma.done [#allocation10], 16
        $region84: #{tpu_custom_call.1} parent=63 // pred_fallthru
          _
        // Predicated region
        $region85: #{tpu_custom_call.1} parent=63 // pred_check
          %p544 = pneg %p189
        $region86: #{tpu_custom_call.1} parent=63 // pred_check_branch
          %546 = sbr.rel (%p544) target = $region88
        $region87: #{tpu_custom_call.1} parent=63 // pred_region
          %547 = dma.done [#allocation13], 256
        $region88: #{tpu_custom_call.1} parent=63 // pred_fallthru
          _
        // Predicated region
        $region89: #{tpu_custom_call.1} parent=63 // pred_check
          %p548 = pneg %p210
        $region90: #{tpu_custom_call.1} parent=63 // pred_check_branch
          %550 = sbr.rel (%p548) target = $region92
        $region91: #{tpu_custom_call.1} parent=63 // pred_region
          %551 = dma.done [#allocation13], 16
        $region92: #{tpu_custom_call.1} parent=63 // pred_fallthru
          _
        // Predicated region
        $region93: #{tpu_custom_call.1} parent=63 // pred_check
          %p552 = pneg %p231
        $region94: #{tpu_custom_call.1} parent=63 // pred_check_branch
          %554 = sbr.rel (%p552) target = $region96
        $region95: #{tpu_custom_call.1} parent=63 // pred_region
          %555 = dma.done [#allocation16], 256
        $region96: #{tpu_custom_call.1} parent=63 // pred_fallthru
          _
        // Predicated region
        $region97: #{tpu_custom_call.1} parent=63 // pred_check
          %p556 = pneg %p252
        $region98: #{tpu_custom_call.1} parent=63 // pred_check_branch
          %558 = sbr.rel (%p556) target = $region100
        $region99: #{tpu_custom_call.1} parent=63 // pred_region
          %559 = dma.done [#allocation16], 16
        $region100: #{tpu_custom_call.1} parent=63 // pred_fallthru
          _
        %s560 = sand.u32 %s61, 1
        %s561 = scalar_lea.sflag [#allocation4], %s560
        %s562 = sand.u32 %s61, 1
        %s563 = smul.addr %s562, 8
        %s564 = scalar_lea.vmem [#allocation3], %s563
        %p565 = pneg %p74
        %p566 = pneg %p71
        %s567 = sand.u32 %s39, 1
        %s568 = scalar_lea.sflag [#allocation7], %s567
        %s569 = sand.u32 %s87, 1
        %s570 = smul.addr %s569, 8
        %s571 = scalar_lea.vmem [#allocation6], %s570
        %p572 = pneg %p100
        %p573 = pneg %p97
        %s574 = sand.u32 %s39, 1
        %s575 = scalar_lea.sflag [#allocation7], %s574
        %s576 = sand.u32 %s113, 1
        %s577 = smul.addr %s576, 8
        %s578 = scalar_lea.vmem [#allocation8], %s577
        %p579 = pneg %p126
        %p580 = pneg %p123
        %p581 = pneg %p147
        %p582 = pneg %p144
        %p583 = pneg %p168
        %p584 = pneg %p165
        %p585 = pneg %p189
        %p586 = pneg %p186
        %p587 = pneg %p210
        %p588 = pneg %p207
        %p589 = pneg %p231
        %p590 = pneg %p228
        %p591 = pneg %p252
        %p592 = pneg %p249
        %p593 = pneg %p273
        %p594 = pneg %p270
        %p595 = pneg %p294
        %p596 = pneg %p291
        %p597 = pneg %p322
        %p598 = pneg %p319
        %s599 = sand.u32 %s309, 1
        %s600 = scalar_lea.sflag [#allocation5], %s599
        %s601 = sand.u32 %s309, 1
        %s602 = smul.addr %s601, 8
        %s603 = scalar_lea.vmem [#allocation18], %s602
        %p604 = pneg %p350
        %p605 = pneg %p347
        %s606 = sand.u32 %s337, 1
        %s607 = scalar_lea.sflag [#allocation20], %s606
        %s608 = sand.u32 %s337, 1
        %s609 = smul.addr %s608, 32
        %s610 = scalar_lea.vmem [#allocation19], %s609
        %p612 = scmp.eq.s32.totalorder %s44, 0
        // Predicated region
        $region101: #{tpu_custom_call.1} parent=63 // pred_check
          %p613 = pneg %p612
        $region102: #{tpu_custom_call.1} parent=63 // pred_check_branch
          %615 = sbr.rel (%p613) target = $region104
        $region103: #{tpu_custom_call.1} parent=63 // pred_region
          %v616 = vld [vmem:[%s522] sm:$0xff]
          %v617 = vpack.c.bf16 %v616, %v616
          %v618 = vld [vmem:[%s531] sm:$0xff]
          %v619 = vpack.c.bf16 %v618, %v618
          %v620 = vld [vmem:[#allocation12] sm:$0xf]
          %v621 = vld [vmem:[#allocation12 + $0x4] sm:$0xf]
          %v622 = vld [vmem:[#allocation12 + $0x8] sm:$0xf]
          %v623 = vld [vmem:[#allocation12 + $0xc] sm:$0xf]
          %v624 = vld [vmem:[#allocation14] sm:$0x1]
          %v626 = vlaneseq
          %v627 = vshrl.u32 %v626, 7
          %v628 = vsub.s32 0, %v627
          %v629 = vrot.slane %v624, %v628
          %v635 = vunpack.c.l.b16 %v620
          %v636 = vunpack.c.l.b16 %v621
          %v637 = vunpack.c.l.b16 %v622
          %v638 = vunpack.c.l.b16 %v623
          %v639 = vpack.c.b16 %v636, %v635
          %v640 = vpack.c.b16 %v638, %v637
          %vm643 = vcmask 261120
          %v645 = vsel %vm643, %v617, 0
          %647 = vmatprep.subr.bf16.mxu0 0
          %648 = vmatpush1.bf16.msra.mxu0 0
          %649 = vmatprep.subr.bf16.mxu0 0
          %650 = vmatpush1.bf16.msra.mxu0 0
          %651 = vmatprep.subr.bf16.mxu0 0
          %652 = vmatpush1.bf16.msra.mxu0 0
          %653 = vmatprep.subr.bf16.mxu0 0
          %654 = vmatpush1.bf16.msra.mxu0 0
          %655 = vmatprep.subr.bf16.mxu0 0
          %656 = vmatpush1.bf16.msra.mxu0 0
          %657 = vmatprep.subr.bf16.mxu0 0
          %658 = vmatpush1.bf16.msra.mxu0 0
          %659 = vmatprep.subr.bf16.mxu0 0
          %660 = vmatpush1.bf16.msra.mxu0 %v640
          %661 = vmatprep.subr.bf16.mxu0 0
          %662 = vmatpush1.bf16.msra.mxu0 %v639
          %663 = vmatprep.subr.bf16.mxu0 0
          %664 = vmatpush2.bf16.msra.mxu0 0
          %665 = vmatprep.subr.bf16.mxu0 0
          %666 = vmatpush2.bf16.msra.mxu0 0
          %667 = vmatprep.subr.bf16.mxu0 0
          %668 = vmatpush2.bf16.msra.mxu0 0
          %669 = vmatprep.subr.bf16.mxu0 0
          %670 = vmatpush2.bf16.msra.mxu0 0
          %671 = vmatprep.subr.bf16.mxu0 0
          %672 = vmatpush2.bf16.msra.mxu0 0
          %673 = vmatprep.subr.bf16.mxu0 0
          %674 = vmatpush2.bf16.msra.mxu0 0
          %675 = vmatprep.subr.bf16.mxu0 0
          %676 = vmatpush2.bf16.msra.mxu0 0
          %677 = vmatprep.subr.bf16.mxu0 0
          %678 = vmatpush2.bf16.msra.mxu0 0
          %679 = vmatprep.mubr.bf16.mxu0 0
          %680 = vmatmul.mubr.bf16.gmra.mxu0 %v645
          %v681 = vpop.f32.mrf.mxu0
          %v682 = vadd.f32 %v629, %v681
          %v683 = vpop.f32.mrf.mxu0
          %v684 = vpop.f32.mrf.mxu0
          %v685 = vpop.f32.mrf.mxu0
          %686 = vdwg.mxu0
          %v687 = vld [vmem:[#allocation15] sm:$0xf]
          %v688 = vld [vmem:[#allocation15 + $0x4] sm:$0xf]
          %v689 = vld [vmem:[#allocation15 + $0x8] sm:$0xf]
          %v690 = vld [vmem:[#allocation15 + $0xc] sm:$0xf]
          %v691 = vld [vmem:[#allocation17] sm:$0x1]
          %v693 = vlaneseq
          %v694 = vshrl.u32 %v693, 7
          %v695 = vsub.s32 0, %v694
          %v696 = vrot.slane %v691, %v695
          %v702 = vunpack.c.l.b16 %v687
          %v703 = vunpack.c.l.b16 %v688
          %v704 = vunpack.c.l.b16 %v689
          %v705 = vunpack.c.l.b16 %v690
          %v706 = vpack.c.b16 %v703, %v702
          %v707 = vpack.c.b16 %v705, %v704
          %v711 = vsel %vm643, %v619, 0
          %713 = vmatprep.subr.bf16.mxu0 0
          %714 = vmatpush1.bf16.msra.mxu0 0
          %715 = vmatprep.subr.bf16.mxu0 0
          %716 = vmatpush1.bf16.msra.mxu0 0
          %717 = vmatprep.subr.bf16.mxu0 0
          %718 = vmatpush1.bf16.msra.mxu0 0
          %719 = vmatprep.subr.bf16.mxu0 0
          %720 = vmatpush1.bf16.msra.mxu0 0
          %721 = vmatprep.subr.bf16.mxu0 0
          %722 = vmatpush1.bf16.msra.mxu0 0
          %723 = vmatprep.subr.bf16.mxu0 0
          %724 = vmatpush1.bf16.msra.mxu0 0
          %725 = vmatprep.subr.bf16.mxu0 0
          %726 = vmatpush1.bf16.msra.mxu0 %v707
          %727 = vmatprep.subr.bf16.mxu0 0
          %728 = vmatpush1.bf16.msra.mxu0 %v706
          %729 = vmatprep.subr.bf16.mxu0 0
          %730 = vmatpush2.bf16.msra.mxu0 0
          %731 = vmatprep.subr.bf16.mxu0 0
          %732 = vmatpush2.bf16.msra.mxu0 0
          %733 = vmatprep.subr.bf16.mxu0 0
          %734 = vmatpush2.bf16.msra.mxu0 0
          %735 = vmatprep.subr.bf16.mxu0 0
          %736 = vmatpush2.bf16.msra.mxu0 0
          %737 = vmatprep.subr.bf16.mxu0 0
          %738 = vmatpush2.bf16.msra.mxu0 0
          %739 = vmatprep.subr.bf16.mxu0 0
          %740 = vmatpush2.bf16.msra.mxu0 0
          %741 = vmatprep.subr.bf16.mxu0 0
          %742 = vmatpush2.bf16.msra.mxu0 0
          %743 = vmatprep.subr.bf16.mxu0 0
          %744 = vmatpush2.bf16.msra.mxu0 0
          %745 = vmatprep.mubr.bf16.mxu0 0
          %746 = vmatmul.mubr.bf16.gmra.mxu0 %v711
          %v747 = vpop.f32.mrf.mxu0
          %v748 = vadd.f32 %v696, %v747
          %v749 = vpop.f32.mrf.mxu0
          %v750 = vpop.f32.mrf.mxu0
          %v751 = vpop.f32.mrf.mxu0
          %752 = vdwg.mxu0
          %754 = vrot.lane.b32.xlu0 %v682, 120
          %v755 = vpop.permute.xlu0 %754
          %757 = vrot.lane.b32.xlu0 %v682, 112
          %v758 = vpop.permute.xlu0 %757
          %760 = vrot.lane.b32.xlu0 %v682, 104
          %v761 = vpop.permute.xlu0 %760
          %v763 = vcombine.low %v682, %v758
          %v764 = vcombine.high %v682, %v758
          %v766 = vunpack.c.l.s4 1983009808
          %v767 = vunpack.c.0.s8 %v766
          %v768 = vlaneseq
          %v769 = vshrl.u32 %v768, 7
          %v770 = vsub.s32 %v767, %v769
          %v771 = vrot.slane %v763, %v770
          %v773 = vunpack.c.l.s4 1983009808
          %v774 = vunpack.c.0.s8 %v773
          %v775 = vlaneseq
          %v776 = vshrl.u32 %v775, 7
          %v777 = vsub.s32 %v774, %v776
          %v778 = vrot.slane %v764, %v777
          %v779 = vcombine.low %v755, %v761
          %v780 = vcombine.high %v755, %v761
          %v782 = vunpack.c.l.s4 1983009808
          %v783 = vunpack.c.0.s8 %v782
          %v784 = vlaneseq
          %v785 = vshrl.u32 %v784, 7
          %v786 = vsub.s32 %v783, %v785
          %v787 = vrot.slane %v779, %v786
          %v789 = vunpack.c.l.s4 1983009808
          %v790 = vunpack.c.0.s8 %v789
          %v791 = vlaneseq
          %v792 = vshrl.u32 %v791, 7
          %v793 = vsub.s32 %v790, %v792
          %v794 = vrot.slane %v780, %v793
          %v795 = vcombine.low %v771, %v787
          %v796 = vcombine.high %v771, %v787
          %v798 = vunpack.c.l.s4 1934713408
          %v799 = vunpack.c.0.s8 %v798
          %v800 = vlaneseq
          %v801 = vshrl.u32 %v800, 7
          %v802 = vsub.s32 %v799, %v801
          %v803 = vrot.slane %v795, %v802
          %v805 = vunpack.c.l.s4 1934713408
          %v806 = vunpack.c.0.s8 %v805
          %v807 = vlaneseq
          %v808 = vshrl.u32 %v807, 7
          %v809 = vsub.s32 %v806, %v808
          %v810 = vrot.slane %v796, %v809
          %v811 = vcombine.low %v778, %v794
          %v812 = vcombine.high %v778, %v794
          %v814 = vunpack.c.l.s4 1934713408
          %v815 = vunpack.c.0.s8 %v814
          %v816 = vlaneseq
          %v817 = vshrl.u32 %v816, 7
          %v818 = vsub.s32 %v815, %v817
          %v819 = vrot.slane %v811, %v818
          %v821 = vunpack.c.l.s4 1934713408
          %v822 = vunpack.c.0.s8 %v821
          %v823 = vlaneseq
          %v824 = vshrl.u32 %v823, 7
          %v825 = vsub.s32 %v822, %v824
          %v826 = vrot.slane %v812, %v825
          %v827 = vcombine.high %v803, 0.0
          %v828 = vcombine.high %v810, 0.0
          %v829 = vcombine.high %v819, 0.0
          %v830 = vcombine.high %v826, 0.0
          %v831 = vcombine.low %v803, %v810
          %v833 = vunpack.c.l.s4 1983009808
          %v834 = vunpack.c.0.s8 %v833
          %v835 = vlaneseq
          %v836 = vshrl.u32 %v835, 7
          %v837 = vsub.s32 %v834, %v836
          %v838 = vrot.slane %v831, %v837
          %v839 = vcombine.low %v827, %v828
          %v841 = vunpack.c.l.s4 1983009808
          %v842 = vunpack.c.0.s8 %v841
          %v843 = vlaneseq
          %v844 = vshrl.u32 %v843, 7
          %v845 = vsub.s32 %v842, %v844
          %v846 = vrot.slane %v839, %v845
          %v847 = vcombine.low %v819, %v826
          %v849 = vunpack.c.l.s4 1983009808
          %v850 = vunpack.c.0.s8 %v849
          %v851 = vlaneseq
          %v852 = vshrl.u32 %v851, 7
          %v853 = vsub.s32 %v850, %v852
          %v854 = vrot.slane %v847, %v853
          %v855 = vcombine.low %v829, %v830
          %v857 = vunpack.c.l.s4 1983009808
          %v858 = vunpack.c.0.s8 %v857
          %v859 = vlaneseq
          %v860 = vshrl.u32 %v859, 7
          %v861 = vsub.s32 %v858, %v860
          %v862 = vrot.slane %v855, %v861
          %v863 = vcombine.low %v838, %v846
          %v864 = vcombine.high %v838, %v846
          %v866 = vunpack.c.l.s4 1934713408
          %v867 = vunpack.c.0.s8 %v866
          %v868 = vlaneseq
          %v869 = vshrl.u32 %v868, 7
          %v870 = vsub.s32 %v867, %v869
          %v871 = vrot.slane %v863, %v870
          %v873 = vunpack.c.l.s4 1934713408
          %v874 = vunpack.c.0.s8 %v873
          %v875 = vlaneseq
          %v876 = vshrl.u32 %v875, 7
          %v877 = vsub.s32 %v874, %v876
          %v878 = vrot.slane %v864, %v877
          %v879 = vcombine.low %v854, %v862
          %v880 = vcombine.high %v854, %v862
          %v882 = vunpack.c.l.s4 1934713408
          %v883 = vunpack.c.0.s8 %v882
          %v884 = vlaneseq
          %v885 = vshrl.u32 %v884, 7
          %v886 = vsub.s32 %v883, %v885
          %v887 = vrot.slane %v879, %v886
          %v889 = vunpack.c.l.s4 1934713408
          %v890 = vunpack.c.0.s8 %v889
          %v891 = vlaneseq
          %v892 = vshrl.u32 %v891, 7
          %v893 = vsub.s32 %v890, %v892
          %v894 = vrot.slane %v880, %v893
          %v895 = vcombine.low %v871, %v887
          %v896 = vcombine.high %v871, %v887
          %v897 = vcombine.low %v878, %v894
          %v898 = vcombine.high %v878, %v894
          %v899 = vpack.c.bf16 %v895, %v895
          %v900 = vpack.c.bf16 %v896, %v896
          %v901 = vpack.c.bf16 %v897, %v897
          %v902 = vpack.c.bf16 %v898, %v898
          %vm903 = vcmask 60416
          %904 = vst.msk [vmem:[#allocation2] sm:$0xf] %vm903, %v899
          %905 = vst.msk [vmem:[#allocation2 + $0x4] sm:$0xf] %vm903, %v900
          %906 = vst.msk [vmem:[#allocation2 + $0x8] sm:$0xf] %vm903, %v901
          %907 = vst.msk [vmem:[#allocation2 + $0xc] sm:$0xf] %vm903, %v902
          %909 = vrot.lane.b32.xlu0 %v748, 120
          %v910 = vpop.permute.xlu0 %909
          %912 = vrot.lane.b32.xlu0 %v748, 112
          %v913 = vpop.permute.xlu0 %912
          %915 = vrot.lane.b32.xlu0 %v748, 104
          %v916 = vpop.permute.xlu0 %915
          %v918 = vcombine.low %v748, %v913
          %v919 = vcombine.high %v748, %v913
          %v921 = vunpack.c.l.s4 1983009808
          %v922 = vunpack.c.0.s8 %v921
          %v923 = vlaneseq
          %v924 = vshrl.u32 %v923, 7
          %v925 = vsub.s32 %v922, %v924
          %v926 = vrot.slane %v918, %v925
          %v928 = vunpack.c.l.s4 1983009808
          %v929 = vunpack.c.0.s8 %v928
          %v930 = vlaneseq
          %v931 = vshrl.u32 %v930, 7
          %v932 = vsub.s32 %v929, %v931
          %v933 = vrot.slane %v919, %v932
          %v934 = vcombine.low %v910, %v916
          %v935 = vcombine.high %v910, %v916
          %v937 = vunpack.c.l.s4 1983009808
          %v938 = vunpack.c.0.s8 %v937
          %v939 = vlaneseq
          %v940 = vshrl.u32 %v939, 7
          %v941 = vsub.s32 %v938, %v940
          %v942 = vrot.slane %v934, %v941
          %v944 = vunpack.c.l.s4 1983009808
          %v945 = vunpack.c.0.s8 %v944
          %v946 = vlaneseq
          %v947 = vshrl.u32 %v946, 7
          %v948 = vsub.s32 %v945, %v947
          %v949 = vrot.slane %v935, %v948
          %v950 = vcombine.low %v926, %v942
          %v951 = vcombine.high %v926, %v942
          %v953 = vunpack.c.l.s4 1934713408
          %v954 = vunpack.c.0.s8 %v953
          %v955 = vlaneseq
          %v956 = vshrl.u32 %v955, 7
          %v957 = vsub.s32 %v954, %v956
          %v958 = vrot.slane %v950, %v957
          %v960 = vunpack.c.l.s4 1934713408
          %v961 = vunpack.c.0.s8 %v960
          %v962 = vlaneseq
          %v963 = vshrl.u32 %v962, 7
          %v964 = vsub.s32 %v961, %v963
          %v965 = vrot.slane %v951, %v964
          %v966 = vcombine.low %v933, %v949
          %v967 = vcombine.high %v933, %v949
          %v969 = vunpack.c.l.s4 1934713408
          %v970 = vunpack.c.0.s8 %v969
          %v971 = vlaneseq
          %v972 = vshrl.u32 %v971, 7
          %v973 = vsub.s32 %v970, %v972
          %v974 = vrot.slane %v966, %v973
          %v976 = vunpack.c.l.s4 1934713408
          %v977 = vunpack.c.0.s8 %v976
          %v978 = vlaneseq
          %v979 = vshrl.u32 %v978, 7
          %v980 = vsub.s32 %v977, %v979
          %v981 = vrot.slane %v967, %v980
          %v982 = vcombine.high %v958, 0.0
          %v983 = vcombine.high %v965, 0.0
          %v984 = vcombine.high %v974, 0.0
          %v985 = vcombine.high %v981, 0.0
          %v986 = vcombine.low %v958, %v965
          %v988 = vunpack.c.l.s4 1983009808
          %v989 = vunpack.c.0.s8 %v988
          %v990 = vlaneseq
          %v991 = vshrl.u32 %v990, 7
          %v992 = vsub.s32 %v989, %v991
          %v993 = vrot.slane %v986, %v992
          %v994 = vcombine.low %v982, %v983
          %v996 = vunpack.c.l.s4 1983009808
          %v997 = vunpack.c.0.s8 %v996
          %v998 = vlaneseq
          %v999 = vshrl.u32 %v998, 7
          %v1000 = vsub.s32 %v997, %v999
          %v1001 = vrot.slane %v994, %v1000
          %v1002 = vcombine.low %v974, %v981
          %v1004 = vunpack.c.l.s4 1983009808
          %v1005 = vunpack.c.0.s8 %v1004
          %v1006 = vlaneseq
          %v1007 = vshrl.u32 %v1006, 7
          %v1008 = vsub.s32 %v1005, %v1007
          %v1009 = vrot.slane %v1002, %v1008
          %v1010 = vcombine.low %v984, %v985
          %v1012 = vunpack.c.l.s4 1983009808
          %v1013 = vunpack.c.0.s8 %v1012
          %v1014 = vlaneseq
          %v1015 = vshrl.u32 %v1014, 7
          %v1016 = vsub.s32 %v1013, %v1015
          %v1017 = vrot.slane %v1010, %v1016
          %v1018 = vcombine.low %v993, %v1001
          %v1019 = vcombine.high %v993, %v1001
          %v1021 = vunpack.c.l.s4 1934713408
          %v1022 = vunpack.c.0.s8 %v1021
          %v1023 = vlaneseq
          %v1024 = vshrl.u32 %v1023, 7
          %v1025 = vsub.s32 %v1022, %v1024
          %v1026 = vrot.slane %v1018, %v1025
          %v1028 = vunpack.c.l.s4 1934713408
          %v1029 = vunpack.c.0.s8 %v1028
          %v1030 = vlaneseq
          %v1031 = vshrl.u32 %v1030, 7
          %v1032 = vsub.s32 %v1029, %v1031
          %v1033 = vrot.slane %v1019, %v1032
          %v1034 = vcombine.low %v1009, %v1017
          %v1035 = vcombine.high %v1009, %v1017
          %v1037 = vunpack.c.l.s4 1934713408
          %v1038 = vunpack.c.0.s8 %v1037
          %v1039 = vlaneseq
          %v1040 = vshrl.u32 %v1039, 7
          %v1041 = vsub.s32 %v1038, %v1040
          %v1042 = vrot.slane %v1034, %v1041
          %v1044 = vunpack.c.l.s4 1934713408
          %v1045 = vunpack.c.0.s8 %v1044
          %v1046 = vlaneseq
          %v1047 = vshrl.u32 %v1046, 7
          %v1048 = vsub.s32 %v1045, %v1047
          %v1049 = vrot.slane %v1035, %v1048
          %v1050 = vcombine.low %v1026, %v1042
          %v1051 = vcombine.high %v1026, %v1042
          %v1052 = vcombine.low %v1033, %v1049
          %v1053 = vcombine.high %v1033, %v1049
          %v1054 = vpack.c.bf16 %v1050, %v1050
          %v1055 = vpack.c.bf16 %v1051, %v1051
          %v1056 = vpack.c.bf16 %v1052, %v1052
          %v1057 = vpack.c.bf16 %v1053, %v1053
          %s1058 = scalar_lea.vmem [#allocation2], 16
          %1059 = vst.msk [vmem:[%s1058] sm:$0xf] %vm903, %v1054
          %1060 = vst.msk [vmem:[%s1058 + $0x4] sm:$0xf] %vm903, %v1055
          %1061 = vst.msk [vmem:[%s1058 + $0x8] sm:$0xf] %vm903, %v1056
          %1062 = vst.msk [vmem:[%s1058 + $0xc] sm:$0xf] %vm903, %v1057
        $region104: #{tpu_custom_call.1} parent=63 // pred_fallthru
          _
        %v1063 = vld [vmem:[%s513] sm:$0xff]
        %v1064 = vpack.c.bf16 %v1063, %v1063
        %v1065 = vld [vmem:[#allocation9] sm:$0xf]
        %v1066 = vld [vmem:[#allocation9 + $0x4] sm:$0xf]
        %v1067 = vld [vmem:[#allocation9 + $0x8] sm:$0xf]
        %v1068 = vld [vmem:[#allocation9 + $0xc] sm:$0xf]
        %v1069 = vld [vmem:[#allocation11] sm:$0x1]
        %v1071 = vlaneseq
        %v1072 = vshrl.u32 %v1071, 7
        %v1073 = vsub.s32 0, %v1072
        %v1074 = vrot.slane %v1069, %v1073
        %v1080 = vunpack.c.l.b16 %v1065
        %v1081 = vunpack.c.l.b16 %v1066
        %v1082 = vunpack.c.l.b16 %v1067
        %v1083 = vunpack.c.l.b16 %v1068
        %v1084 = vpack.c.b16 %v1081, %v1080
        %v1085 = vpack.c.b16 %v1083, %v1082
        %vm1088 = vcmask 261120
        %v1090 = vsel %vm1088, %v1064, 0
        %1092 = vmatprep.subr.bf16.mxu0 0
        %1093 = vmatpush1.bf16.msra.mxu0 0
        %1094 = vmatprep.subr.bf16.mxu0 0
        %1095 = vmatpush1.bf16.msra.mxu0 0
        %1096 = vmatprep.subr.bf16.mxu0 0
        %1097 = vmatpush1.bf16.msra.mxu0 0
        %1098 = vmatprep.subr.bf16.mxu0 0
        %1099 = vmatpush1.bf16.msra.mxu0 0
        %1100 = vmatprep.subr.bf16.mxu0 0
        %1101 = vmatpush1.bf16.msra.mxu0 0
        %1102 = vmatprep.subr.bf16.mxu0 0
        %1103 = vmatpush1.bf16.msra.mxu0 0
        %1104 = vmatprep.subr.bf16.mxu0 0
        %1105 = vmatpush1.bf16.msra.mxu0 %v1085
        %1106 = vmatprep.subr.bf16.mxu0 0
        %1107 = vmatpush1.bf16.msra.mxu0 %v1084
        %1108 = vmatprep.subr.bf16.mxu0 0
        %1109 = vmatpush2.bf16.msra.mxu0 0
        %1110 = vmatprep.subr.bf16.mxu0 0
        %1111 = vmatpush2.bf16.msra.mxu0 0
        %1112 = vmatprep.subr.bf16.mxu0 0
        %1113 = vmatpush2.bf16.msra.mxu0 0
        %1114 = vmatprep.subr.bf16.mxu0 0
        %1115 = vmatpush2.bf16.msra.mxu0 0
        %1116 = vmatprep.subr.bf16.mxu0 0
        %1117 = vmatpush2.bf16.msra.mxu0 0
        %1118 = vmatprep.subr.bf16.mxu0 0
        %1119 = vmatpush2.bf16.msra.mxu0 0
        %1120 = vmatprep.subr.bf16.mxu0 0
        %1121 = vmatpush2.bf16.msra.mxu0 0
        %1122 = vmatprep.subr.bf16.mxu0 0
        %1123 = vmatpush2.bf16.msra.mxu0 0
        %1124 = vmatprep.mubr.bf16.mxu0 0
        %1125 = vmatmul.mubr.bf16.gmra.mxu0 %v1090
        %v1126 = vpop.f32.mrf.mxu0
        %v1127 = vadd.f32 %v1074, %v1126
        %v1128 = vpop.f32.mrf.mxu0
        %v1129 = vpop.f32.mrf.mxu0
        %v1130 = vpop.f32.mrf.mxu0
        %1131 = vdwg.mxu0
        %1133 = vrot.lane.b32.xlu0 %v1127, 120
        %v1134 = vpop.permute.xlu0 %1133
        %1136 = vrot.lane.b32.xlu0 %v1127, 112
        %v1137 = vpop.permute.xlu0 %1136
        %1139 = vrot.lane.b32.xlu0 %v1127, 104
        %v1140 = vpop.permute.xlu0 %1139
        %v1142 = vcombine.low %v1127, %v1137
        %v1143 = vcombine.high %v1127, %v1137
        %v1145 = vunpack.c.l.s4 1983009808
        %v1146 = vunpack.c.0.s8 %v1145
        %v1147 = vlaneseq
        %v1148 = vshrl.u32 %v1147, 7
        %v1149 = vsub.s32 %v1146, %v1148
        %v1150 = vrot.slane %v1142, %v1149
        %v1152 = vunpack.c.l.s4 1983009808
        %v1153 = vunpack.c.0.s8 %v1152
        %v1154 = vlaneseq
        %v1155 = vshrl.u32 %v1154, 7
        %v1156 = vsub.s32 %v1153, %v1155
        %v1157 = vrot.slane %v1143, %v1156
        %v1158 = vcombine.low %v1134, %v1140
        %v1159 = vcombine.high %v1134, %v1140
        %v1161 = vunpack.c.l.s4 1983009808
        %v1162 = vunpack.c.0.s8 %v1161
        %v1163 = vlaneseq
        %v1164 = vshrl.u32 %v1163, 7
        %v1165 = vsub.s32 %v1162, %v1164
        %v1166 = vrot.slane %v1158, %v1165
        %v1168 = vunpack.c.l.s4 1983009808
        %v1169 = vunpack.c.0.s8 %v1168
        %v1170 = vlaneseq
        %v1171 = vshrl.u32 %v1170, 7
        %v1172 = vsub.s32 %v1169, %v1171
        %v1173 = vrot.slane %v1159, %v1172
        %v1174 = vcombine.low %v1150, %v1166
        %v1175 = vcombine.high %v1150, %v1166
        %v1177 = vunpack.c.l.s4 1934713408
        %v1178 = vunpack.c.0.s8 %v1177
        %v1179 = vlaneseq
        %v1180 = vshrl.u32 %v1179, 7
        %v1181 = vsub.s32 %v1178, %v1180
        %v1182 = vrot.slane %v1174, %v1181
        %v1184 = vunpack.c.l.s4 1934713408
        %v1185 = vunpack.c.0.s8 %v1184
        %v1186 = vlaneseq
        %v1187 = vshrl.u32 %v1186, 7
        %v1188 = vsub.s32 %v1185, %v1187
        %v1189 = vrot.slane %v1175, %v1188
        %v1190 = vcombine.low %v1157, %v1173
        %v1191 = vcombine.high %v1157, %v1173
        %v1193 = vunpack.c.l.s4 1934713408
        %v1194 = vunpack.c.0.s8 %v1193
        %v1195 = vlaneseq
        %v1196 = vshrl.u32 %v1195, 7
        %v1197 = vsub.s32 %v1194, %v1196
        %v1198 = vrot.slane %v1190, %v1197
        %v1200 = vunpack.c.l.s4 1934713408
        %v1201 = vunpack.c.0.s8 %v1200
        %v1202 = vlaneseq
        %v1203 = vshrl.u32 %v1202, 7
        %v1204 = vsub.s32 %v1201, %v1203
        %v1205 = vrot.slane %v1191, %v1204
        %v1206 = vcombine.high %v1182, 0.0
        %v1207 = vcombine.high %v1189, 0.0
        %v1208 = vcombine.high %v1198, 0.0
        %v1209 = vcombine.high %v1205, 0.0
        %v1210 = vcombine.low %v1182, %v1189
        %v1212 = vunpack.c.l.s4 1983009808
        %v1213 = vunpack.c.0.s8 %v1212
        %v1214 = vlaneseq
        %v1215 = vshrl.u32 %v1214, 7
        %v1216 = vsub.s32 %v1213, %v1215
        %v1217 = vrot.slane %v1210, %v1216
        %v1218 = vcombine.low %v1206, %v1207
        %v1220 = vunpack.c.l.s4 1983009808
        %v1221 = vunpack.c.0.s8 %v1220
        %v1222 = vlaneseq
        %v1223 = vshrl.u32 %v1222, 7
        %v1224 = vsub.s32 %v1221, %v1223
        %v1225 = vrot.slane %v1218, %v1224
        %v1226 = vcombine.low %v1198, %v1205
        %v1228 = vunpack.c.l.s4 1983009808
        %v1229 = vunpack.c.0.s8 %v1228
        %v1230 = vlaneseq
        %v1231 = vshrl.u32 %v1230, 7
        %v1232 = vsub.s32 %v1229, %v1231
        %v1233 = vrot.slane %v1226, %v1232
        %v1234 = vcombine.low %v1208, %v1209
        %v1236 = vunpack.c.l.s4 1983009808
        %v1237 = vunpack.c.0.s8 %v1236
        %v1238 = vlaneseq
        %v1239 = vshrl.u32 %v1238, 7
        %v1240 = vsub.s32 %v1237, %v1239
        %v1241 = vrot.slane %v1234, %v1240
        %v1242 = vcombine.low %v1217, %v1225
        %v1243 = vcombine.high %v1217, %v1225
        %v1245 = vunpack.c.l.s4 1934713408
        %v1246 = vunpack.c.0.s8 %v1245
        %v1247 = vlaneseq
        %v1248 = vshrl.u32 %v1247, 7
        %v1249 = vsub.s32 %v1246, %v1248
        %v1250 = vrot.slane %v1242, %v1249
        %v1252 = vunpack.c.l.s4 1934713408
        %v1253 = vunpack.c.0.s8 %v1252
        %v1254 = vlaneseq
        %v1255 = vshrl.u32 %v1254, 7
        %v1256 = vsub.s32 %v1253, %v1255
        %v1257 = vrot.slane %v1243, %v1256
        %v1258 = vcombine.low %v1233, %v1241
        %v1259 = vcombine.high %v1233, %v1241
        %v1261 = vunpack.c.l.s4 1934713408
        %v1262 = vunpack.c.0.s8 %v1261
        %v1263 = vlaneseq
        %v1264 = vshrl.u32 %v1263, 7
        %v1265 = vsub.s32 %v1262, %v1264
        %v1266 = vrot.slane %v1258, %v1265
        %v1268 = vunpack.c.l.s4 1934713408
        %v1269 = vunpack.c.0.s8 %v1268
        %v1270 = vlaneseq
        %v1271 = vshrl.u32 %v1270, 7
        %v1272 = vsub.s32 %v1269, %v1271
        %v1273 = vrot.slane %v1259, %v1272
        %v1274 = vcombine.low %v1250, %v1266
        %v1275 = vcombine.high %v1250, %v1266
        %v1276 = vcombine.low %v1257, %v1273
        %v1277 = vcombine.high %v1257, %v1273
        %v1278 = vpack.c.bf16 %v1274, %v1274
        %v1279 = vpack.c.bf16 %v1275, %v1275
        %v1280 = vpack.c.bf16 %v1276, %v1276
        %v1281 = vpack.c.bf16 %v1277, %v1277
        %v1282 = vld [vmem:[#allocation2] sm:$0xf]
        %v1283 = vld [vmem:[#allocation2 + $0x4] sm:$0xf]
        %v1284 = vld [vmem:[#allocation2 + $0x8] sm:$0xf]
        %v1285 = vld [vmem:[#allocation2 + $0xc] sm:$0xf]
        %s1286 = scalar_lea.vmem [#allocation2], 16
        %v1287 = vld [vmem:[%s1286] sm:$0xf]
        %v1288 = vld [vmem:[%s1286 + $0x4] sm:$0xf]
        %v1289 = vld [vmem:[%s1286 + $0x8] sm:$0xf]
        %v1290 = vld [vmem:[%s1286 + $0xc] sm:$0xf]
        %vm1291 = vcmask 64512
        %v1293 = vsel %vm1291, %v1278, 0
        %v1296 = vsel %vm1291, %v1282, 0
        %1298 = vmatprep.subr.bf16.mxu0 0
        %1299 = vmatpush1.bf16.xpose.msra.mxu0 0
        %1300 = vmatprep.subr.bf16.mxu0 0
        %1301 = vmatpush1.bf16.xpose.msra.mxu0 0
        %1302 = vmatprep.subr.bf16.mxu0 0
        %1303 = vmatpush1.bf16.xpose.msra.mxu0 0
        %1304 = vmatprep.subr.bf16.mxu0 0
        %1305 = vmatpush1.bf16.xpose.msra.mxu0 0
        %1306 = vmatprep.subr.bf16.mxu0 0
        %1307 = vmatpush1.bf16.xpose.msra.mxu0 0
        %1308 = vmatprep.subr.bf16.mxu0 0
        %1309 = vmatpush1.bf16.xpose.msra.mxu0 0
        %1310 = vmatprep.subr.bf16.mxu0 0
        %1311 = vmatpush1.bf16.xpose.msra.mxu0 0
        %1312 = vmatprep.subr.bf16.mxu0 0
        %1313 = vmatpush1.bf16.xpose.msra.mxu0 %v1296
        %1314 = vmatprep.subr.bf16.mxu0 0
        %1315 = vmatpush2.bf16.xpose.msra.mxu0 0
        %1316 = vmatprep.subr.bf16.mxu0 0
        %1317 = vmatpush2.bf16.xpose.msra.mxu0 0
        %1318 = vmatprep.subr.bf16.mxu0 0
        %1319 = vmatpush2.bf16.xpose.msra.mxu0 0
        %1320 = vmatprep.subr.bf16.mxu0 0
        %1321 = vmatpush2.bf16.xpose.msra.mxu0 0
        %1322 = vmatprep.subr.bf16.mxu0 0
        %1323 = vmatpush2.bf16.xpose.msra.mxu0 0
        %1324 = vmatprep.subr.bf16.mxu0 0
        %1325 = vmatpush2.bf16.xpose.msra.mxu0 0
        %1326 = vmatprep.subr.bf16.mxu0 0
        %1327 = vmatpush2.bf16.xpose.msra.mxu0 0
        %1328 = vmatprep.subr.bf16.mxu0 0
        %1329 = vmatpush2.bf16.xpose.msra.mxu0 0
        %1330 = vmatprep.mubr.bf16.mxu0 0
        %1331 = vmatmul.mubr.bf16.gmra.mxu0 %v1293
        %v1332 = vpop.f32.mrf.mxu0
        %v1333 = vadd.f32 0.0, %v1332
        %v1334 = vpop.f32.mrf.mxu0
        %v1335 = vpop.f32.mrf.mxu0
        %v1336 = vpop.f32.mrf.mxu0
        %1337 = vdwg.mxu0
        %v1339 = vsel %vm1291, %v1279, 0
        %v1342 = vsel %vm1291, %v1283, 0
        %1344 = vmatprep.subr.bf16.mxu0 0
        %1345 = vmatpush1.bf16.xpose.msra.mxu0 0
        %1346 = vmatprep.subr.bf16.mxu0 0
        %1347 = vmatpush1.bf16.xpose.msra.mxu0 0
        %1348 = vmatprep.subr.bf16.mxu0 0
        %1349 = vmatpush1.bf16.xpose.msra.mxu0 0
        %1350 = vmatprep.subr.bf16.mxu0 0
        %1351 = vmatpush1.bf16.xpose.msra.mxu0 0
        %1352 = vmatprep.subr.bf16.mxu0 0
        %1353 = vmatpush1.bf16.xpose.msra.mxu0 0
        %1354 = vmatprep.subr.bf16.mxu0 0
        %1355 = vmatpush1.bf16.xpose.msra.mxu0 0
        %1356 = vmatprep.subr.bf16.mxu0 0
        %1357 = vmatpush1.bf16.xpose.msra.mxu0 0
        %1358 = vmatprep.subr.bf16.mxu0 0
        %1359 = vmatpush1.bf16.xpose.msra.mxu0 %v1342
        %1360 = vmatprep.subr.bf16.mxu0 0
        %1361 = vmatpush2.bf16.xpose.msra.mxu0 0
        %1362 = vmatprep.subr.bf16.mxu0 0
        %1363 = vmatpush2.bf16.xpose.msra.mxu0 0
        %1364 = vmatprep.subr.bf16.mxu0 0
        %1365 = vmatpush2.bf16.xpose.msra.mxu0 0
        %1366 = vmatprep.subr.bf16.mxu0 0
        %1367 = vmatpush2.bf16.xpose.msra.mxu0 0
        %1368 = vmatprep.subr.bf16.mxu0 0
        %1369 = vmatpush2.bf16.xpose.msra.mxu0 0
        %1370 = vmatprep.subr.bf16.mxu0 0
        %1371 = vmatpush2.bf16.xpose.msra.mxu0 0
        %1372 = vmatprep.subr.bf16.mxu0 0
        %1373 = vmatpush2.bf16.xpose.msra.mxu0 0
        %1374 = vmatprep.subr.bf16.mxu0 0
        %1375 = vmatpush2.bf16.xpose.msra.mxu0 0
        %1376 = vmatprep.mubr.bf16.mxu0 0
        %1377 = vmatmul.mubr.bf16.gmra.mxu0 %v1339
        %v1378 = vpop.f32.mrf.mxu0
        %v1379 = vadd.f32 0.0, %v1378
        %v1380 = vpop.f32.mrf.mxu0
        %v1381 = vpop.f32.mrf.mxu0
        %v1382 = vpop.f32.mrf.mxu0
        %1383 = vdwg.mxu0
        %v1385 = vsel %vm1291, %v1280, 0
        %v1388 = vsel %vm1291, %v1284, 0
        %1390 = vmatprep.subr.bf16.mxu0 0
        %1391 = vmatpush1.bf16.xpose.msra.mxu0 0
        %1392 = vmatprep.subr.bf16.mxu0 0
        %1393 = vmatpush1.bf16.xpose.msra.mxu0 0
        %1394 = vmatprep.subr.bf16.mxu0 0
        %1395 = vmatpush1.bf16.xpose.msra.mxu0 0
        %1396 = vmatprep.subr.bf16.mxu0 0
        %1397 = vmatpush1.bf16.xpose.msra.mxu0 0
        %1398 = vmatprep.subr.bf16.mxu0 0
        %1399 = vmatpush1.bf16.xpose.msra.mxu0 0
        %1400 = vmatprep.subr.bf16.mxu0 0
        %1401 = vmatpush1.bf16.xpose.msra.mxu0 0
        %1402 = vmatprep.subr.bf16.mxu0 0
        %1403 = vmatpush1.bf16.xpose.msra.mxu0 0
        %1404 = vmatprep.subr.bf16.mxu0 0
        %1405 = vmatpush1.bf16.xpose.msra.mxu0 %v1388
        %1406 = vmatprep.subr.bf16.mxu0 0
        %1407 = vmatpush2.bf16.xpose.msra.mxu0 0
        %1408 = vmatprep.subr.bf16.mxu0 0
        %1409 = vmatpush2.bf16.xpose.msra.mxu0 0
        %1410 = vmatprep.subr.bf16.mxu0 0
        %1411 = vmatpush2.bf16.xpose.msra.mxu0 0
        %1412 = vmatprep.subr.bf16.mxu0 0
        %1413 = vmatpush2.bf16.xpose.msra.mxu0 0
        %1414 = vmatprep.subr.bf16.mxu0 0
        %1415 = vmatpush2.bf16.xpose.msra.mxu0 0
        %1416 = vmatprep.subr.bf16.mxu0 0
        %1417 = vmatpush2.bf16.xpose.msra.mxu0 0
        %1418 = vmatprep.subr.bf16.mxu0 0
        %1419 = vmatpush2.bf16.xpose.msra.mxu0 0
        %1420 = vmatprep.subr.bf16.mxu0 0
        %1421 = vmatpush2.bf16.xpose.msra.mxu0 0
        %1422 = vmatprep.mubr.bf16.mxu0 0
        %1423 = vmatmul.mubr.bf16.gmra.mxu0 %v1385
        %v1424 = vpop.f32.mrf.mxu0
        %v1425 = vadd.f32 0.0, %v1424
        %v1426 = vpop.f32.mrf.mxu0
        %v1427 = vpop.f32.mrf.mxu0
        %v1428 = vpop.f32.mrf.mxu0
        %1429 = vdwg.mxu0
        %v1431 = vsel %vm1291, %v1281, 0
        %v1434 = vsel %vm1291, %v1285, 0
        %1436 = vmatprep.subr.bf16.mxu0 0
        %1437 = vmatpush1.bf16.xpose.msra.mxu0 0
        %1438 = vmatprep.subr.bf16.mxu0 0
        %1439 = vmatpush1.bf16.xpose.msra.mxu0 0
        %1440 = vmatprep.subr.bf16.mxu0 0
        %1441 = vmatpush1.bf16.xpose.msra.mxu0 0
        %1442 = vmatprep.subr.bf16.mxu0 0
        %1443 = vmatpush1.bf16.xpose.msra.mxu0 0
        %1444 = vmatprep.subr.bf16.mxu0 0
        %1445 = vmatpush1.bf16.xpose.msra.mxu0 0
        %1446 = vmatprep.subr.bf16.mxu0 0
        %1447 = vmatpush1.bf16.xpose.msra.mxu0 0
        %1448 = vmatprep.subr.bf16.mxu0 0
        %1449 = vmatpush1.bf16.xpose.msra.mxu0 0
        %1450 = vmatprep.subr.bf16.mxu0 0
        %1451 = vmatpush1.bf16.xpose.msra.mxu0 %v1434
        %1452 = vmatprep.subr.bf16.mxu0 0
        %1453 = vmatpush2.bf16.xpose.msra.mxu0 0
        %1454 = vmatprep.subr.bf16.mxu0 0
        %1455 = vmatpush2.bf16.xpose.msra.mxu0 0
        %1456 = vmatprep.subr.bf16.mxu0 0
        %1457 = vmatpush2.bf16.xpose.msra.mxu0 0
        %1458 = vmatprep.subr.bf16.mxu0 0
        %1459 = vmatpush2.bf16.xpose.msra.mxu0 0
        %1460 = vmatprep.subr.bf16.mxu0 0
        %1461 = vmatpush2.bf16.xpose.msra.mxu0 0
        %1462 = vmatprep.subr.bf16.mxu0 0
        %1463 = vmatpush2.bf16.xpose.msra.mxu0 0
        %1464 = vmatprep.subr.bf16.mxu0 0
        %1465 = vmatpush2.bf16.xpose.msra.mxu0 0
        %1466 = vmatprep.subr.bf16.mxu0 0
        %1467 = vmatpush2.bf16.xpose.msra.mxu0 0
        %1468 = vmatprep.mubr.bf16.mxu0 0
        %1469 = vmatmul.mubr.bf16.gmra.mxu0 %v1431
        %v1470 = vpop.f32.mrf.mxu0
        %v1471 = vadd.f32 0.0, %v1470
        %v1472 = vpop.f32.mrf.mxu0
        %v1473 = vpop.f32.mrf.mxu0
        %v1474 = vpop.f32.mrf.mxu0
        %1475 = vdwg.mxu0
        %v1476 = vsel %vm1291, %v1333, -inf
        %1477 = vmax.xlane.f32.xlu0 %v1476
        %v1478 = vpop.xlane.xlu0 %1477
        %v1479 = vsel %vm1291, %v1379, -inf
        %1480 = vmax.xlane.f32.xlu0 %v1479
        %v1481 = vpop.xlane.xlu0 %1480
        %v1482 = vsel %vm1291, %v1425, -inf
        %1483 = vmax.xlane.f32.xlu0 %v1482
        %v1484 = vpop.xlane.xlu0 %1483
        %v1485 = vsel %vm1291, %v1471, -inf
        %1486 = vmax.xlane.f32.xlu0 %v1485
        %v1487 = vpop.xlane.xlu0 %1486
        %v1488 = vsub.f32 %v1333, %v1478
        %v1489 = vsub.f32 %v1379, %v1481
        %v1490 = vsub.f32 %v1425, %v1484
        %v1491 = vsub.f32 %v1471, %v1487
        %v1492 = vmul.f32 %v1488, 1.442695
        %v1493 = vpow.pop %v1492
        %v1494 = vmul.f32 %v1489, 1.442695
        %v1495 = vpow.pop %v1494
        %v1496 = vmul.f32 %v1490, 1.442695
        %v1497 = vpow.pop %v1496
        %v1498 = vmul.f32 %v1491, 1.442695
        %v1499 = vpow.pop %v1498
        %v1500 = vsel %vm1291, %v1493, 0.0
        %1501 = vadd.xlane.f32.xlu0 %v1500
        %v1502 = vpop.xlane.xlu0 %1501
        %v1503 = vsel %vm1291, %v1495, 0.0
        %1504 = vadd.xlane.f32.xlu0 %v1503
        %v1505 = vpop.xlane.xlu0 %1504
        %v1506 = vsel %vm1291, %v1497, 0.0
        %1507 = vadd.xlane.f32.xlu0 %v1506
        %v1508 = vpop.xlane.xlu0 %1507
        %v1509 = vsel %vm1291, %v1499, 0.0
        %1510 = vadd.xlane.f32.xlu0 %v1509
        %v1511 = vpop.xlane.xlu0 %1510
        %v1512 = vrcp.pop %v1502
        %v1513 = vmul.f32 1.0, %v1512
        %v1514 = vrcp.pop %v1505
        %v1515 = vmul.f32 1.0, %v1514
        %v1516 = vrcp.pop %v1508
        %v1517 = vmul.f32 1.0, %v1516
        %v1518 = vrcp.pop %v1511
        %v1519 = vmul.f32 1.0, %v1518
        %v1520 = vmul.f32 %v1493, %v1513
        %v1521 = vmul.f32 %v1495, %v1515
        %v1522 = vmul.f32 %v1497, %v1517
        %v1523 = vmul.f32 %v1499, %v1519
        %1524 = vst.msk [vmem:[%s610] sm:$0xff] %vm1291, %v1520
        %1525 = vst.msk [vmem:[%s610 + $0x8] sm:$0xff] %vm1291, %v1521
        %1526 = vst.msk [vmem:[%s610 + $0x10] sm:$0xff] %vm1291, %v1522
        %1527 = vst.msk [vmem:[%s610 + $0x18] sm:$0xff] %vm1291, %v1523
        %v1528 = vpack.c.bf16 %v1520, %v1520
        %v1529 = vpack.c.bf16 %v1521, %v1521
        %v1530 = vpack.c.bf16 %v1522, %v1522
        %v1531 = vpack.c.bf16 %v1523, %v1523
        %v1533 = vsel %vm1291, %v1528, 0
        %vm1535 = vcmask 1043456
        %v1537 = vsel %vm1535, %v1287, 0
        %1539 = vmatprep.subr.bf16.mxu0 0
        %1540 = vmatpush1.bf16.msra.mxu0 0
        %1541 = vmatprep.subr.bf16.mxu0 0
        %1542 = vmatpush1.bf16.msra.mxu0 0
        %1543 = vmatprep.subr.bf16.mxu0 0
        %1544 = vmatpush1.bf16.msra.mxu0 0
        %1545 = vmatprep.subr.bf16.mxu0 0
        %1546 = vmatpush1.bf16.msra.mxu0 0
        %1547 = vmatprep.subr.bf16.mxu0 0
        %1548 = vmatpush1.bf16.msra.mxu0 0
        %1549 = vmatprep.subr.bf16.mxu0 0
        %1550 = vmatpush1.bf16.msra.mxu0 0
        %1551 = vmatprep.subr.bf16.mxu0 0
        %1552 = vmatpush1.bf16.msra.mxu0 0
        %1553 = vmatprep.subr.bf16.mxu0 0
        %1554 = vmatpush1.bf16.msra.mxu0 %v1537
        %1555 = vmatprep.subr.bf16.mxu0 0
        %1556 = vmatpush2.bf16.msra.mxu0 0
        %1557 = vmatprep.subr.bf16.mxu0 0
        %1558 = vmatpush2.bf16.msra.mxu0 0
        %1559 = vmatprep.subr.bf16.mxu0 0
        %1560 = vmatpush2.bf16.msra.mxu0 0
        %1561 = vmatprep.subr.bf16.mxu0 0
        %1562 = vmatpush2.bf16.msra.mxu0 0
        %1563 = vmatprep.subr.bf16.mxu0 0
        %1564 = vmatpush2.bf16.msra.mxu0 0
        %1565 = vmatprep.subr.bf16.mxu0 0
        %1566 = vmatpush2.bf16.msra.mxu0 0
        %1567 = vmatprep.subr.bf16.mxu0 0
        %1568 = vmatpush2.bf16.msra.mxu0 0
        %1569 = vmatprep.subr.bf16.mxu0 0
        %1570 = vmatpush2.bf16.msra.mxu0 0
        %1571 = vmatprep.mubr.bf16.mxu0 0
        %1572 = vmatmul.mubr.bf16.gmra.mxu0 %v1533
        %v1573 = vpop.f32.mrf.mxu0
        %v1574 = vadd.f32 0.0, %v1573
        %v1575 = vpop.f32.mrf.mxu0
        %v1576 = vpop.f32.mrf.mxu0
        %v1577 = vpop.f32.mrf.mxu0
        %1578 = vdwg.mxu0
        %v1580 = vsel %vm1291, %v1529, 0
        %v1583 = vsel %vm1535, %v1288, 0
        %1585 = vmatprep.subr.bf16.mxu0 0
        %1586 = vmatpush1.bf16.msra.mxu0 0
        %1587 = vmatprep.subr.bf16.mxu0 0
        %1588 = vmatpush1.bf16.msra.mxu0 0
        %1589 = vmatprep.subr.bf16.mxu0 0
        %1590 = vmatpush1.bf16.msra.mxu0 0
        %1591 = vmatprep.subr.bf16.mxu0 0
        %1592 = vmatpush1.bf16.msra.mxu0 0
        %1593 = vmatprep.subr.bf16.mxu0 0
        %1594 = vmatpush1.bf16.msra.mxu0 0
        %1595 = vmatprep.subr.bf16.mxu0 0
        %1596 = vmatpush1.bf16.msra.mxu0 0
        %1597 = vmatprep.subr.bf16.mxu0 0
        %1598 = vmatpush1.bf16.msra.mxu0 0
        %1599 = vmatprep.subr.bf16.mxu0 0
        %1600 = vmatpush1.bf16.msra.mxu0 %v1583
        %1601 = vmatprep.subr.bf16.mxu0 0
        %1602 = vmatpush2.bf16.msra.mxu0 0
        %1603 = vmatprep.subr.bf16.mxu0 0
        %1604 = vmatpush2.bf16.msra.mxu0 0
        %1605 = vmatprep.subr.bf16.mxu0 0
        %1606 = vmatpush2.bf16.msra.mxu0 0
        %1607 = vmatprep.subr.bf16.mxu0 0
        %1608 = vmatpush2.bf16.msra.mxu0 0
        %1609 = vmatprep.subr.bf16.mxu0 0
        %1610 = vmatpush2.bf16.msra.mxu0 0
        %1611 = vmatprep.subr.bf16.mxu0 0
        %1612 = vmatpush2.bf16.msra.mxu0 0
        %1613 = vmatprep.subr.bf16.mxu0 0
        %1614 = vmatpush2.bf16.msra.mxu0 0
        %1615 = vmatprep.subr.bf16.mxu0 0
        %1616 = vmatpush2.bf16.msra.mxu0 0
        %1617 = vmatprep.mubr.bf16.mxu0 0
        %1618 = vmatmul.mubr.bf16.gmra.mxu0 %v1580
        %v1619 = vpop.f32.mrf.mxu0
        %v1620 = vadd.f32 0.0, %v1619
        %v1621 = vpop.f32.mrf.mxu0
        %v1622 = vpop.f32.mrf.mxu0
        %v1623 = vpop.f32.mrf.mxu0
        %1624 = vdwg.mxu0
        %v1626 = vsel %vm1291, %v1530, 0
        %v1629 = vsel %vm1535, %v1289, 0
        %1631 = vmatprep.subr.bf16.mxu0 0
        %1632 = vmatpush1.bf16.msra.mxu0 0
        %1633 = vmatprep.subr.bf16.mxu0 0
        %1634 = vmatpush1.bf16.msra.mxu0 0
        %1635 = vmatprep.subr.bf16.mxu0 0
        %1636 = vmatpush1.bf16.msra.mxu0 0
        %1637 = vmatprep.subr.bf16.mxu0 0
        %1638 = vmatpush1.bf16.msra.mxu0 0
        %1639 = vmatprep.subr.bf16.mxu0 0
        %1640 = vmatpush1.bf16.msra.mxu0 0
        %1641 = vmatprep.subr.bf16.mxu0 0
        %1642 = vmatpush1.bf16.msra.mxu0 0
        %1643 = vmatprep.subr.bf16.mxu0 0
        %1644 = vmatpush1.bf16.msra.mxu0 0
        %1645 = vmatprep.subr.bf16.mxu0 0
        %1646 = vmatpush1.bf16.msra.mxu0 %v1629
        %1647 = vmatprep.subr.bf16.mxu0 0
        %1648 = vmatpush2.bf16.msra.mxu0 0
        %1649 = vmatprep.subr.bf16.mxu0 0
        %1650 = vmatpush2.bf16.msra.mxu0 0
        %1651 = vmatprep.subr.bf16.mxu0 0
        %1652 = vmatpush2.bf16.msra.mxu0 0
        %1653 = vmatprep.subr.bf16.mxu0 0
        %1654 = vmatpush2.bf16.msra.mxu0 0
        %1655 = vmatprep.subr.bf16.mxu0 0
        %1656 = vmatpush2.bf16.msra.mxu0 0
        %1657 = vmatprep.subr.bf16.mxu0 0
        %1658 = vmatpush2.bf16.msra.mxu0 0
        %1659 = vmatprep.subr.bf16.mxu0 0
        %1660 = vmatpush2.bf16.msra.mxu0 0
        %1661 = vmatprep.subr.bf16.mxu0 0
        %1662 = vmatpush2.bf16.msra.mxu0 0
        %1663 = vmatprep.mubr.bf16.mxu0 0
        %1664 = vmatmul.mubr.bf16.gmra.mxu0 %v1626
        %v1665 = vpop.f32.mrf.mxu0
        %v1666 = vadd.f32 0.0, %v1665
        %v1667 = vpop.f32.mrf.mxu0
        %v1668 = vpop.f32.mrf.mxu0
        %v1669 = vpop.f32.mrf.mxu0
        %1670 = vdwg.mxu0
        %v1672 = vsel %vm1291, %v1531, 0
        %v1675 = vsel %vm1535, %v1290, 0
        %1677 = vmatprep.subr.bf16.mxu0 0
        %1678 = vmatpush1.bf16.msra.mxu0 0
        %1679 = vmatprep.subr.bf16.mxu0 0
        %1680 = vmatpush1.bf16.msra.mxu0 0
        %1681 = vmatprep.subr.bf16.mxu0 0
        %1682 = vmatpush1.bf16.msra.mxu0 0
        %1683 = vmatprep.subr.bf16.mxu0 0
        %1684 = vmatpush1.bf16.msra.mxu0 0
        %1685 = vmatprep.subr.bf16.mxu0 0
        %1686 = vmatpush1.bf16.msra.mxu0 0
        %1687 = vmatprep.subr.bf16.mxu0 0
        %1688 = vmatpush1.bf16.msra.mxu0 0
        %1689 = vmatprep.subr.bf16.mxu0 0
        %1690 = vmatpush1.bf16.msra.mxu0 0
        %1691 = vmatprep.subr.bf16.mxu0 0
        %1692 = vmatpush1.bf16.msra.mxu0 %v1675
        %1693 = vmatprep.subr.bf16.mxu0 0
        %1694 = vmatpush2.bf16.msra.mxu0 0
        %1695 = vmatprep.subr.bf16.mxu0 0
        %1696 = vmatpush2.bf16.msra.mxu0 0
        %1697 = vmatprep.subr.bf16.mxu0 0
        %1698 = vmatpush2.bf16.msra.mxu0 0
        %1699 = vmatprep.subr.bf16.mxu0 0
        %1700 = vmatpush2.bf16.msra.mxu0 0
        %1701 = vmatprep.subr.bf16.mxu0 0
        %1702 = vmatpush2.bf16.msra.mxu0 0
        %1703 = vmatprep.subr.bf16.mxu0 0
        %1704 = vmatpush2.bf16.msra.mxu0 0
        %1705 = vmatprep.subr.bf16.mxu0 0
        %1706 = vmatpush2.bf16.msra.mxu0 0
        %1707 = vmatprep.subr.bf16.mxu0 0
        %1708 = vmatpush2.bf16.msra.mxu0 0
        %1709 = vmatprep.mubr.bf16.mxu0 0
        %1710 = vmatmul.mubr.bf16.gmra.mxu0 %v1672
        %v1711 = vpop.f32.mrf.mxu0
        %v1712 = vadd.f32 0.0, %v1711
        %v1713 = vpop.f32.mrf.mxu0
        %v1714 = vpop.f32.mrf.mxu0
        %v1715 = vpop.f32.mrf.mxu0
        %1716 = vdwg.mxu0
        %v1717 = vcombine.low %v1574, %v1666
        %v1718 = vcombine.high %v1574, %v1666
        %v1720 = vunpack.c.l.s4 1983009808
        %v1721 = vunpack.c.0.s8 %v1720
        %v1722 = vlaneseq
        %v1723 = vshrl.u32 %v1722, 7
        %v1724 = vsub.s32 %v1721, %v1723
        %v1725 = vrot.slane %v1717, %v1724
        %v1727 = vunpack.c.l.s4 1983009808
        %v1728 = vunpack.c.0.s8 %v1727
        %v1729 = vlaneseq
        %v1730 = vshrl.u32 %v1729, 7
        %v1731 = vsub.s32 %v1728, %v1730
        %v1732 = vrot.slane %v1718, %v1731
        %v1733 = vcombine.low %v1620, %v1712
        %v1734 = vcombine.high %v1620, %v1712
        %v1736 = vunpack.c.l.s4 1983009808
        %v1737 = vunpack.c.0.s8 %v1736
        %v1738 = vlaneseq
        %v1739 = vshrl.u32 %v1738, 7
        %v1740 = vsub.s32 %v1737, %v1739
        %v1741 = vrot.slane %v1733, %v1740
        %v1743 = vunpack.c.l.s4 1983009808
        %v1744 = vunpack.c.0.s8 %v1743
        %v1745 = vlaneseq
        %v1746 = vshrl.u32 %v1745, 7
        %v1747 = vsub.s32 %v1744, %v1746
        %v1748 = vrot.slane %v1734, %v1747
        %v1749 = vcombine.low %v1725, %v1741
        %v1750 = vcombine.high %v1725, %v1741
        %v1752 = vunpack.c.l.s4 1934713408
        %v1753 = vunpack.c.0.s8 %v1752
        %v1754 = vlaneseq
        %v1755 = vshrl.u32 %v1754, 7
        %v1756 = vsub.s32 %v1753, %v1755
        %v1757 = vrot.slane %v1749, %v1756
        %v1759 = vunpack.c.l.s4 1934713408
        %v1760 = vunpack.c.0.s8 %v1759
        %v1761 = vlaneseq
        %v1762 = vshrl.u32 %v1761, 7
        %v1763 = vsub.s32 %v1760, %v1762
        %v1764 = vrot.slane %v1750, %v1763
        %v1765 = vcombine.low %v1732, %v1748
        %v1766 = vcombine.high %v1732, %v1748
        %v1768 = vunpack.c.l.s4 1934713408
        %v1769 = vunpack.c.0.s8 %v1768
        %v1770 = vlaneseq
        %v1771 = vshrl.u32 %v1770, 7
        %v1772 = vsub.s32 %v1769, %v1771
        %v1773 = vrot.slane %v1765, %v1772
        %v1775 = vunpack.c.l.s4 1934713408
        %v1776 = vunpack.c.0.s8 %v1775
        %v1777 = vlaneseq
        %v1778 = vshrl.u32 %v1777, 7
        %v1779 = vsub.s32 %v1776, %v1778
        %v1780 = vrot.slane %v1766, %v1779
        %v1781 = vcombine.high %v1757, 0.0
        %v1782 = vcombine.high %v1764, 0.0
        %v1783 = vcombine.high %v1773, 0.0
        %v1784 = vcombine.high %v1780, 0.0
        %v1785 = vcombine.low %v1757, %v1764
        %v1787 = vunpack.c.l.s4 1983009808
        %v1788 = vunpack.c.0.s8 %v1787
        %v1789 = vlaneseq
        %v1790 = vshrl.u32 %v1789, 7
        %v1791 = vsub.s32 %v1788, %v1790
        %v1792 = vrot.slane %v1785, %v1791
        %v1793 = vcombine.low %v1781, %v1782
        %v1795 = vunpack.c.l.s4 1983009808
        %v1796 = vunpack.c.0.s8 %v1795
        %v1797 = vlaneseq
        %v1798 = vshrl.u32 %v1797, 7
        %v1799 = vsub.s32 %v1796, %v1798
        %v1800 = vrot.slane %v1793, %v1799
        %v1801 = vcombine.low %v1773, %v1780
        %v1803 = vunpack.c.l.s4 1983009808
        %v1804 = vunpack.c.0.s8 %v1803
        %v1805 = vlaneseq
        %v1806 = vshrl.u32 %v1805, 7
        %v1807 = vsub.s32 %v1804, %v1806
        %v1808 = vrot.slane %v1801, %v1807
        %v1809 = vcombine.low %v1783, %v1784
        %v1811 = vunpack.c.l.s4 1983009808
        %v1812 = vunpack.c.0.s8 %v1811
        %v1813 = vlaneseq
        %v1814 = vshrl.u32 %v1813, 7
        %v1815 = vsub.s32 %v1812, %v1814
        %v1816 = vrot.slane %v1809, %v1815
        %v1817 = vcombine.low %v1792, %v1800
        %v1818 = vcombine.high %v1792, %v1800
        %v1820 = vunpack.c.l.s4 1934713408
        %v1821 = vunpack.c.0.s8 %v1820
        %v1822 = vlaneseq
        %v1823 = vshrl.u32 %v1822, 7
        %v1824 = vsub.s32 %v1821, %v1823
        %v1825 = vrot.slane %v1817, %v1824
        %v1827 = vunpack.c.l.s4 1934713408
        %v1828 = vunpack.c.0.s8 %v1827
        %v1829 = vlaneseq
        %v1830 = vshrl.u32 %v1829, 7
        %v1831 = vsub.s32 %v1828, %v1830
        %v1832 = vrot.slane %v1818, %v1831
        %v1833 = vcombine.low %v1808, %v1816
        %v1834 = vcombine.high %v1808, %v1816
        %v1836 = vunpack.c.l.s4 1934713408
        %v1837 = vunpack.c.0.s8 %v1836
        %v1838 = vlaneseq
        %v1839 = vshrl.u32 %v1838, 7
        %v1840 = vsub.s32 %v1837, %v1839
        %v1841 = vrot.slane %v1833, %v1840
        %v1843 = vunpack.c.l.s4 1934713408
        %v1844 = vunpack.c.0.s8 %v1843
        %v1845 = vlaneseq
        %v1846 = vshrl.u32 %v1845, 7
        %v1847 = vsub.s32 %v1844, %v1846
        %v1848 = vrot.slane %v1834, %v1847
        %v1849 = vcombine.low %v1825, %v1841
        %v1850 = vcombine.high %v1825, %v1841
        %v1851 = vcombine.low %v1832, %v1848
        %v1852 = vcombine.high %v1832, %v1848
        %1854 = vrot.lane.b32.xlu0 %v1850, 8
        %v1855 = vpop.permute.xlu0 %1854
        %1858 = vrot.lane.b32.xlu0 %v1851, 16
        %v1859 = vpop.permute.xlu0 %1858
        %1862 = vrot.lane.b32.xlu0 %v1852, 24
        %v1863 = vpop.permute.xlu0 %1862
        %v1865 = vsel %vm1291, %v1849, %v1855
        %vm1866 = vcmask 130048
        %v1867 = vsel %vm1866, %v1865, %v1859
        %vm1868 = vcmask 195584
        %v1869 = vsel %vm1868, %v1867, %v1863
        %v1870 = vpack.c.bf16 %v1869, %v1869
        %v1871 = vld [vmem:[%s9] sm:$0xf]
        %v1872 = vld [vmem:[%s9 + $0x4] sm:$0xf]
        %v1873 = vld [vmem:[%s9 + $0x8] sm:$0xf]
        %v1874 = vld [vmem:[%s9 + $0xc] sm:$0xf]
        %v1875 = vld [vmem:[%s10] sm:$0x1]
        %v1877 = vlaneseq
        %v1878 = vshrl.u32 %v1877, 7
        %v1879 = vsub.s32 0, %v1878
        %v1880 = vrot.slane %v1875, %v1879
        %v1886 = vunpack.c.l.b16 %v1871
        %v1887 = vunpack.c.l.b16 %v1872
        %v1888 = vunpack.c.l.b16 %v1873
        %v1889 = vunpack.c.l.b16 %v1874
        %v1890 = vpack.c.b16 %v1887, %v1886
        %v1891 = vpack.c.b16 %v1889, %v1888
        %v1895 = vsel %vm1088, %v1870, 0
        %1897 = vmatprep.subr.bf16.mxu0 0
        %1898 = vmatpush1.bf16.msra.mxu0 0
        %1899 = vmatprep.subr.bf16.mxu0 0
        %1900 = vmatpush1.bf16.msra.mxu0 0
        %1901 = vmatprep.subr.bf16.mxu0 0
        %1902 = vmatpush1.bf16.msra.mxu0 0
        %1903 = vmatprep.subr.bf16.mxu0 0
        %1904 = vmatpush1.bf16.msra.mxu0 0
        %1905 = vmatprep.subr.bf16.mxu0 0
        %1906 = vmatpush1.bf16.msra.mxu0 0
        %1907 = vmatprep.subr.bf16.mxu0 0
        %1908 = vmatpush1.bf16.msra.mxu0 0
        %1909 = vmatprep.subr.bf16.mxu0 0
        %1910 = vmatpush1.bf16.msra.mxu0 %v1891
        %1911 = vmatprep.subr.bf16.mxu0 0
        %1912 = vmatpush1.bf16.msra.mxu0 %v1890
        %1913 = vmatprep.subr.bf16.mxu0 0
        %1914 = vmatpush2.bf16.msra.mxu0 0
        %1915 = vmatprep.subr.bf16.mxu0 0
        %1916 = vmatpush2.bf16.msra.mxu0 0
        %1917 = vmatprep.subr.bf16.mxu0 0
        %1918 = vmatpush2.bf16.msra.mxu0 0
        %1919 = vmatprep.subr.bf16.mxu0 0
        %1920 = vmatpush2.bf16.msra.mxu0 0
        %1921 = vmatprep.subr.bf16.mxu0 0
        %1922 = vmatpush2.bf16.msra.mxu0 0
        %1923 = vmatprep.subr.bf16.mxu0 0
        %1924 = vmatpush2.bf16.msra.mxu0 0
        %1925 = vmatprep.subr.bf16.mxu0 0
        %1926 = vmatpush2.bf16.msra.mxu0 0
        %1927 = vmatprep.subr.bf16.mxu0 0
        %1928 = vmatpush2.bf16.msra.mxu0 0
        %1929 = vmatprep.mubr.bf16.mxu0 0
        %1930 = vmatmul.mubr.bf16.gmra.mxu0 %v1895
        %v1931 = vpop.f32.mrf.mxu0
        %v1932 = vadd.f32 %v1880, %v1931
        %v1933 = vpop.f32.mrf.mxu0
        %v1934 = vpop.f32.mrf.mxu0
        %v1935 = vpop.f32.mrf.mxu0
        %1936 = vdwg.mxu0
        %1937 = vst.msk [vmem:[%s603] sm:$0xff] %vm1088, %v1932
        %s1938 = sand.u32 %s309, 1
        %s1939 = scalar_lea.sflag [#allocation5], %s1938
        %s1940 = sand.u32 %s309, 1
        %s1941 = smul.addr %s1940, 8
        %s1942 = scalar_lea.vmem [#allocation18], %s1941
        %s1943 = sand.u32 %s337, 1
        %s1944 = scalar_lea.sflag [#allocation20], %s1943
        %s1945 = sand.u32 %s337, 1
        %s1946 = smul.addr %s1945, 32
        %s1947 = scalar_lea.vmem [#allocation19], %s1946
        // Predicated region
        $region105: #{tpu_custom_call.1} parent=63 // pred_check
          %p1948 = pneg %p319
        $region106: #{tpu_custom_call.1} parent=63 // pred_check_branch
          %1950 = sbr.rel (%p1948) target = $region108
        $region107: #{tpu_custom_call.1} parent=63 // pred_region
          %s1952 = ssub.s32 128, 128
          %1953 = vsyncadd %s1939, %s1952
          %s1954 = sadd.s32 %s44, %s43
          %s1955 = smul.addr %s1954, 128
          %s1956 = scalar_lea.hbm %s11, %s1955
          %s1958 = sshll.u32 %s1942, 4
          %s1959 = int_to_ptr.vmem [resolvable:$true] %s1958
          %1961 = dma.vmem_to_hbm [thread:$0]  %s1959, 128, %s1956, %s1939
        $region108: #{tpu_custom_call.1} parent=63 // pred_fallthru
          _
        // Predicated region
        $region109: #{tpu_custom_call.1} parent=63 // pred_check
          %p1962 = pneg %p347
        $region110: #{tpu_custom_call.1} parent=63 // pred_check_branch
          %1964 = sbr.rel (%p1962) target = $region112
        $region111: #{tpu_custom_call.1} parent=63 // pred_region
          %s1966 = ssub.s32 512, 512
          %1967 = vsyncadd %s1944, %s1966
          %s1968 = smul.addr %s43, 4
          %s1969 = sadd.s32 %s44, %s1968
          %s1970 = smul.addr %s1969, 128
          %s1971 = scalar_lea.hbm %s12, %s1970
          %s1972 = sshll.u32 %s1947, 4
          %s1973 = int_to_ptr.vmem [resolvable:$true] %s1972
          %1978 = dma.vmem_to_hbm [thread:$0]  %s1973, 512, %s1971, %s1944, 128, 128, 8
        $region112: #{tpu_custom_call.1} parent=63 // pred_fallthru
          _
      $region64: #{tpu_custom_call.1} parent=5 // pred_fallthru
        _
      %p1979 = scmp.le.s32.totalorder 2, %s34
      // Predicated region
      $region113: #{tpu_custom_call.1} parent=5 // pred_check
        %p1980 = pneg %p1979
      $region114: #{tpu_custom_call.1} parent=5 // pred_check_branch
        %1982 = sbr.rel (%p1980) target = $region116
      $region115: #{tpu_custom_call.1} parent=5 // pred_region
        %s1983 = ssub.s32 %s34, 2
        // Predicated region
        $region117: #{tpu_custom_call.1} parent=115 // pred_check
          %p1984 = pneg %p325
        $region118: #{tpu_custom_call.1} parent=115 // pred_check_branch
          %1986 = sbr.rel (%p1984) target = $region120
        $region119: #{tpu_custom_call.1} parent=115 // pred_region
          %s1987 = sand.u32 %s310, 1
          %s1988 = scalar_lea.sflag [#allocation5], %s1987
          %s1989 = sand.u32 %s310, 1
          %s1990 = smul.addr %s1989, 8
          %s1991 = scalar_lea.vmem [#allocation18], %s1990
          %1992 = dma.done %s1988, 128
        $region120: #{tpu_custom_call.1} parent=115 // pred_fallthru
          _
        // Predicated region
        $region121: #{tpu_custom_call.1} parent=115 // pred_check
          %p1993 = pneg %p353
        $region122: #{tpu_custom_call.1} parent=115 // pred_check_branch
          %1995 = sbr.rel (%p1993) target = $region124
        $region123: #{tpu_custom_call.1} parent=115 // pred_region
          %s1996 = sand.u32 %s338, 1
          %s1997 = scalar_lea.sflag [#allocation20], %s1996
          %s1998 = sand.u32 %s338, 1
          %s1999 = smul.addr %s1998, 32
          %s2000 = scalar_lea.vmem [#allocation19], %s1999
          %2001 = dma.done %s1997, 512
        $region124: #{tpu_custom_call.1} parent=115 // pred_fallthru
          _
      $region116: #{tpu_custom_call.1} parent=5 // pred_fallthru
        _
    $region6: #{tpu_custom_call.1} parent=1 // loop_footer
      %s38 = sadd.s32 1, %s34
    $region7: #{tpu_custom_call.1} parent=1 // loop_footer_branch
      %33 = sbr.rel target = $region3
    $region8: #{tpu_custom_call.1} parent=1 // loop_exit
      _
    %2002 = vsyncpa [#allocation4], 1
    %s2003 = scalar_lea.sflag [#allocation4], 1
    %2004 = vsyncpa %s2003, 1
    %2005 = vsyncpa [#allocation7], 1
    %s2006 = scalar_lea.sflag [#allocation7], 1
    %2007 = vsyncpa %s2006, 1
    %2008 = vsyncpa [#allocation10], 1
    %2009 = vsyncpa [#allocation13], 1
    %2010 = vsyncpa [#allocation16], 1
    %2011 = vsyncpa [#allocation5], 1
    %s2012 = scalar_lea.sflag [#allocation5], 1
    %2013 = vsyncpa %s2012, 1
    %2014 = vsyncpa [#allocation20], 1
    %s2015 = scalar_lea.sflag [#allocation20], 1
    %2016 = vsyncpa %s2015, 1

</llo_original>
